<compile_context>
chip_gen: v5e
topology: v5e:2x2
jax: 0.10.0
libtpu: 0.0.40
codegen_flags: <defaults>
</compile_context>

<pallas_src>
import jax
import jax.numpy as jnp
from jax import lax
from jax.experimental import pallas as pl
from jax.experimental.pallas import tpu as pltpu


NODE_TILE = 512     # stage-1 node-row tile (mem-bound dense path)
EDGE_TILE_I = 512   # stage-2 row tile: h_i stays VMEM-resident over the j loop
EDGE_TILE_J = 512   # stage-2 col tile: lane-dense bf16 stores (multiple of 128)
ROW_PAD = 512       # lcm of the tiles above; node axis padded to this multiple

_VMEM_LIMIT = 32 * 1024 * 1024  # explicit budget; safe on v5e/v6e/v7x


def node_kernel(z_ref, w1_ref, b1_ref, w2_ref, b2_ref, feat_ref, h_ref):
    """Per node-tile: h = ReLU(z@W1 + b1); feat = h@W2 + b2; emit h in bf16."""
    z = z_ref[...]                                                 # [T, in]
    h = jnp.dot(z, w1_ref[...], preferred_element_type=jnp.float32)
    h = jnp.maximum(h + b1_ref[...], 0.0)                          # [T, hidden]
    feat_ref[...] = (
        jnp.dot(h, w2_ref[...], preferred_element_type=jnp.float32)
        + b2_ref[...]
    )                                                              # [T, out] f32
    h_ref[...] = h.astype(h_ref.dtype)                             # bf16 for edge head


def edge_kernel(hi_ref, hj_ref, edge_ref):
    """Per (i, j) tile: sigmoid(h_i @ h_j^T) with a single-EUP sigmoid."""
    logits = lax.dot_general(
        hi_ref[...], hj_ref[...],
        dimension_numbers=(((1,), (1,)), ((), ())),   # contract last axes (no transpose)
        preferred_element_type=jnp.float32,
    )                                                              # [Ti, Tj] f32
    # sigmoid(x) = 0.5 * tanh(0.5 * x) + 0.5  -> one EUP push per element.
    probs = 0.5 * jnp.tanh(0.5 * logits) + 0.5
    edge_ref[...] = jnp.clip(probs, 0.0, 1.0).astype(edge_ref.dtype)


@jax.jit
def gnn_decoder_forward(z, w1, b1, w2, b2):
    """Tiled Pallas decoder forward.

    Args:
      z:  [num_nodes, input_dim] float32 latent representation.
      w1: [input_dim, hidden_dim], b1: [1, hidden_dim]
      w2: [hidden_dim, output_dim], b2: [1, output_dim]

    Returns:
      (node_features [num_nodes, output_dim] float32,
       edge_probs    [num_nodes, num_nodes] bfloat16)
    """
    n, in_dim = z.shape
    hidden = w1.shape[1]
    out_dim = w2.shape[1]

    pad = (-n) % ROW_PAD
    z_p = jnp.pad(z, ((0, pad), (0, 0))) if pad else z
    n_p = n + pad

    # ---- stage 1: dense layers, 1-D node-tile grid ------------------------
    feat_p, h_p = pl.pallas_call(
        node_kernel,
        out_shape=(
            jax.ShapeDtypeStruct((n_p, out_dim), jnp.float32),
            jax.ShapeDtypeStruct((n_p, hidden), jnp.bfloat16),
        ),
        grid=(n_p // NODE_TILE,),
        in_specs=[
            pl.BlockSpec((NODE_TILE, in_dim), lambda i: (i, 0)),
            pl.BlockSpec((in_dim, hidden), lambda i: (0, 0)),   # weights resident
            pl.BlockSpec((1, hidden), lambda i: (0, 0)),
            pl.BlockSpec((hidden, out_dim), lambda i: (0, 0)),
            pl.BlockSpec((1, out_dim), lambda i: (0, 0)),
        ],
        out_specs=(
            pl.BlockSpec((NODE_TILE, out_dim), lambda i: (i, 0)),
            pl.BlockSpec((NODE_TILE, hidden), lambda i: (i, 0)),
        ),
        compiler_params=pltpu.CompilerParams(
            dimension_semantics=("parallel",),
            vmem_limit_bytes=_VMEM_LIMIT),
    )(z_p, w1, b1, w2, b2)

    # ---- stage 2: edge head, 2-D (i, j) tile grid, i-outer / j-inner ------
    edges_p = pl.pallas_call(
        edge_kernel,
        out_shape=jax.ShapeDtypeStruct((n_p, n_p), jnp.bfloat16),
        grid=(n_p // EDGE_TILE_I, n_p // EDGE_TILE_J),
        in_specs=[
            pl.BlockSpec((EDGE_TILE_I, hidden), lambda i, j: (i, 0)),  # resident over j
            pl.BlockSpec((EDGE_TILE_J, hidden), lambda i, j: (j, 0)),  # streams
        ],
        out_specs=pl.BlockSpec((EDGE_TILE_I, EDGE_TILE_J), lambda i, j: (i, j)),
        compiler_params=pltpu.CompilerParams(
            dimension_semantics=("parallel", "parallel"),
            vmem_limit_bytes=_VMEM_LIMIT),
    )(h_p, h_p)

    if pad:
        # Only pay the slice-copy when n is not tile-aligned.
        return feat_p[:n], edges_p[:n, :n]
    return feat_p, edges_p


def reference_forward(z, w1, b1, w2, b2):
    """Pure-JAX f32 reference for correctness checking."""
    h = jnp.maximum(z @ w1 + b1, 0.0)
    feat = h @ w2 + b2
    edges = jax.nn.sigmoid(h @ h.T)
    return feat, edges


if __name__ == "__main__":
    # Shapes chosen so the kernels exercise real multi-tile grids (2 node
    # tiles, 2x2 edge tiles) while staying small and fast.
    num_nodes, input_dim, hidden_dim, output_dim = 1024, 32, 128, 128

    key = jax.random.PRNGKey(0)
    kz, k1, k2, k3, k4 = jax.random.split(key, 5)

    z = jax.random.normal(kz, (num_nodes, input_dim), dtype=jnp.float32)
    w1 = jax.random.normal(k1, (input_dim, hidden_dim), dtype=jnp.float32) * 0.1
    b1 = jax.random.normal(k2, (1, hidden_dim), dtype=jnp.float32) * 0.01
    w2 = jax.random.normal(k3, (hidden_dim, output_dim), dtype=jnp.float32) * 0.1
    b2 = jax.random.normal(k4, (1, output_dim), dtype=jnp.float32) * 0.01

    feat, edges = gnn_decoder_forward(z, w1, b1, w2, b2)
    jax.block_until_ready((feat, edges))

    feat_ref, edges_ref = reference_forward(z, w1, b1, w2, b2)
    assert feat.shape == (num_nodes, output_dim)
    assert edges.shape == (num_nodes, num_nodes)

    # Node-feature path is f32 end-to-end -> tight tolerance.
    assert jnp.allclose(feat, feat_ref, atol=1e-5, rtol=1e-5)
    # Edge head: bf16 MXU inputs (f32 accumulation), f32 tanh-sigmoid, bf16
    # output -> compare probabilities with a bf16-class tolerance.
    assert jnp.allclose(edges.astype(jnp.float32), edges_ref, atol=2e-2)
    # Clamped probabilities stay in [0, 1].
    e32 = edges.astype(jnp.float32)
    assert bool(jnp.all(e32 >= 0.0)) and bool(jnp.all(e32 <= 1.0))

    print("KERNEL_OK")
</pallas_src>

<mosaic_0001>
module attributes {stable_mosaic.version = 11 : i64} {
  func.func @edge_kernel(%arg0: i32, %arg1: i32, %arg2: memref<512x128xbf16, #tpu.memory_space<vmem>>, %arg3: memref<512x128xbf16, #tpu.memory_space<vmem>>, %arg4: memref<512x512xbf16, #tpu.memory_space<vmem>>) attributes {dimension_semantics = [#tpu.dimension_semantics<parallel>, #tpu.dimension_semantics<parallel>], iteration_bounds = array<i64: 2, 2>, scalar_prefetch = 0 : i64, scratch_operands = 0 : i64, tpu.core_type = #tpu.core_type<tc>, window_params = [{transform_indices = @transform_0, window_bounds = array<i64: 512, 128>}, {transform_indices = @transform_1, window_bounds = array<i64: 512, 128>}, {transform_indices = @transform_2, window_bounds = array<i64: 512, 512>}]} {
    %c0 = arith.constant 0 : index
    %c0_0 = arith.constant 0 : index
    %0 = vector.load %arg2[%c0, %c0_0] : memref<512x128xbf16, #tpu.memory_space<vmem>>, vector<512x128xbf16>
    %c0_1 = arith.constant 0 : index
    %c0_2 = arith.constant 0 : index
    %1 = vector.load %arg3[%c0_1, %c0_2] : memref<512x128xbf16, #tpu.memory_space<vmem>>, vector<512x128xbf16>
    %cst = arith.constant dense<0.000000e+00> : vector<512x512xf32>
    %2 = tpu.matmul %0, %1, %cst {dimension_numbers = #tpu.dot_dimension_numbers<[1], [1], [0], [0], [0, 0, 1, 0], [], []>} : vector<512x128xbf16>, vector<512x128xbf16>, vector<512x512xf32> -> vector<512x512xf32>
    %cst_3 = arith.constant 5.000000e-01 : f32
    %3 = vector.broadcast %cst_3 : f32 to vector<512x512xf32>
    %4 = arith.mulf %3, %2 : vector<512x512xf32>
    %5 = math.tanh %4 : vector<512x512xf32>
    %cst_4 = arith.constant 5.000000e-01 : f32
    %6 = vector.broadcast %cst_4 : f32 to vector<512x512xf32>
    %7 = arith.mulf %6, %5 : vector<512x512xf32>
    %cst_5 = arith.constant 5.000000e-01 : f32
    %8 = vector.broadcast %cst_5 : f32 to vector<512x512xf32>
    %9 = arith.addf %7, %8 : vector<512x512xf32>
    %cst_6 = arith.constant 0.000000e+00 : f32
    %cst_7 = arith.constant 1.000000e+00 : f32
    %10 = vector.broadcast %cst_6 : f32 to vector<512x512xf32>
    %11 = arith.maximumf %10, %9 : vector<512x512xf32>
    %12 = vector.broadcast %cst_7 : f32 to vector<512x512xf32>
    %13 = arith.minimumf %12, %11 : vector<512x512xf32>
    %14 = arith.truncf %13 : vector<512x512xf32> to vector<512x512xbf16>
    %c0_8 = arith.constant 0 : index
    %c0_9 = arith.constant 0 : index
    %15 = vector.load %arg4[%c0_8, %c0_9] : memref<512x512xbf16, #tpu.memory_space<vmem>>, vector<512x512xbf16>
    tpu.vector_store %arg4[%c0_8, %c0_9], %14 {strides = array<i32>} : memref<512x512xbf16, #tpu.memory_space<vmem>>, vector<512x512xbf16>,
    return
  }
  func.func @transform_0(%arg0: i32, %arg1: i32) -> (i32, i32) {
    %c0_i32 = arith.constant 0 : i32
    %c0_i32_0 = arith.constant 0 : i32
    return %arg0, %c0_i32 : i32, i32
  }
  func.func @transform_1(%arg0: i32, %arg1: i32) -> (i32, i32) {
    %c0_i32 = arith.constant 0 : i32
    %c0_i32_0 = arith.constant 0 : i32
    return %arg1, %c0_i32 : i32, i32
  }
  func.func @transform_2(%arg0: i32, %arg1: i32) -> (i32, i32) {
    %c0_i32 = arith.constant 0 : i32
    return %arg0, %arg1 : i32, i32
  }
}

module attributes {stable_mosaic.version = 11 : i64} {
  func.func @node_kernel(%arg0: i32, %arg1: memref<512x32xf32, #tpu.memory_space<vmem>>, %arg2: memref<32x128xf32, #tpu.memory_space<vmem>>, %arg3: memref<1x128xf32, #tpu.memory_space<vmem>>, %arg4: memref<128x128xf32, #tpu.memory_space<vmem>>, %arg5: memref<1x128xf32, #tpu.memory_space<vmem>>, %arg6: memref<512x128xf32, #tpu.memory_space<vmem>>, %arg7: memref<512x128xbf16, #tpu.memory_space<vmem>>) attributes {dimension_semantics = [#tpu.dimension_semantics<parallel>], iteration_bounds = array<i64: 2>, scalar_prefetch = 0 : i64, scratch_operands = 0 : i64, tpu.core_type = #tpu.core_type<tc>, window_params = [{transform_indices = @transform_0, window_bounds = array<i64: 512, 32>}, {pipeline_mode = #tpu.pipeline_mode<synchronous>, transform_indices = @transform_1, window_bounds = array<i64: 32, 128>}, {pipeline_mode = #tpu.pipeline_mode<synchronous>, transform_indices = @transform_2, window_bounds = array<i64: 1, 128>}, {pipeline_mode = #tpu.pipeline_mode<synchronous>, transform_indices = @transform_3, window_bounds = array<i64: 128, 128>}, {pipeline_mode = #tpu.pipeline_mode<synchronous>, transform_indices = @transform_4, window_bounds = array<i64: 1, 128>}, {transform_indices = @transform_5, window_bounds = array<i64: 512, 128>}, {transform_indices = @transform_6, window_bounds = array<i64: 512, 128>}]} {
    %c0 = arith.constant 0 : index
    %c0_0 = arith.constant 0 : index
    %0 = vector.load %arg1[%c0, %c0_0] : memref<512x32xf32, #tpu.memory_space<vmem>>, vector<512x32xf32>
    %c0_1 = arith.constant 0 : index
    %c0_2 = arith.constant 0 : index
    %1 = vector.load %arg2[%c0_1, %c0_2] : memref<32x128xf32, #tpu.memory_space<vmem>>, vector<32x128xf32>
    %cst = arith.constant dense<0.000000e+00> : vector<512x128xf32>
    %2 = tpu.matmul %0, %1, %cst {dimension_numbers = #tpu.dot_dimension_numbers<[1], [0], [0], [1], [0, 0, 1, 1], [], []>} : vector<512x32xf32>, vector<32x128xf32>, vector<512x128xf32> -> vector<512x128xf32>
    %c0_3 = arith.constant 0 : index
    %c0_4 = arith.constant 0 : index
    %3 = vector.load %arg3[%c0_3, %c0_4] : memref<1x128xf32, #tpu.memory_space<vmem>>, vector<1x128xf32>
    %4 = vector.broadcast %3 : vector<1x128xf32> to vector<512x128xf32>
    %5 = arith.addf %2, %4 : vector<512x128xf32>
    %cst_5 = arith.constant 0.000000e+00 : f32
    %6 = vector.broadcast %cst_5 : f32 to vector<512x128xf32>
    %7 = arith.maximumf %5, %6 : vector<512x128xf32>
    %c0_6 = arith.constant 0 : index
    %c0_7 = arith.constant 0 : index
    %8 = vector.load %arg4[%c0_6, %c0_7] : memref<128x128xf32, #tpu.memory_space<vmem>>, vector<128x128xf32>
    %cst_8 = arith.constant dense<0.000000e+00> : vector<512x128xf32>
    %9 = tpu.matmul %7, %8, %cst_8 {dimension_numbers = #tpu.dot_dimension_numbers<[1], [0], [0], [1], [0, 0, 1, 1], [], []>} : vector<512x128xf32>, vector<128x128xf32>, vector<512x128xf32> -> vector<512x128xf32>
    %c0_9 = arith.constant 0 : index
    %c0_10 = arith.constant 0 : index
    %10 = vector.load %arg5[%c0_9, %c0_10] : memref<1x128xf32, #tpu.memory_space<vmem>>, vector<1x128xf32>
    %11 = vector.broadcast %10 : vector<1x128xf32> to vector<512x128xf32>
    %12 = arith.addf %9, %11 : vector<512x128xf32>
    %c0_11 = arith.constant 0 : index
    %c0_12 = arith.constant 0 : index
    %13 = vector.load %arg6[%c0_11, %c0_12] : memref<512x128xf32, #tpu.memory_space<vmem>>, vector<512x128xf32>
    tpu.vector_store %arg6[%c0_11, %c0_12], %12 {strides = array<i32>} : memref<512x128xf32, #tpu.memory_space<vmem>>, vector<512x128xf32>,
    %14 = arith.truncf %7 : vector<512x128xf32> to vector<512x128xbf16>
    %c0_13 = arith.constant 0 : index
    %c0_14 = arith.constant 0 : index
    %15 = vector.load %arg7[%c0_13, %c0_14] : memref<512x128xbf16, #tpu.memory_space<vmem>>, vector<512x128xbf16>
    tpu.vector_store %arg7[%c0_13, %c0_14], %14 {strides = array<i32>} : memref<512x128xbf16, #tpu.memory_space<vmem>>, vector<512x128xbf16>,
    return
  }
  func.func @transform_0(%arg0: i32) -> (i32, i32) {
    %c0_i32 = arith.constant 0 : i32
    %c0_i32_0 = arith.constant 0 : i32
    return %arg0, %c0_i32 : i32, i32
  }
  func.func @transform_1(%arg0: i32) -> (i32, i32) {
    %c0_i32 = arith.constant 0 : i32
    %c0_i32_0 = arith.constant 0 : i32
    %c0_i32_1 = arith.constant 0 : i32
    return %c0_i32, %c0_i32_0 : i32, i32
  }
  func.func @transform_2(%arg0: i32) -> (i32, i32) {
    %c0_i32 = arith.constant 0 : i32
    %c0_i32_0 = arith.constant 0 : i32
    %c0_i32_1 = arith.constant 0 : i32
    return %c0_i32, %c0_i32_0 : i32, i32
  }
  func.func @transform_3(%arg0: i32) -> (i32, i32) {
    %c0_i32 = arith.constant 0 : i32
    %c0_i32_0 = arith.constant 0 : i32
    %c0_i32_1 = arith.constant 0 : i32
    return %c0_i32, %c0_i32_0 : i32, i32
  }
  func.func @transform_4(%arg0: i32) -> (i32, i32) {
    %c0_i32 = arith.constant 0 : i32
    %c0_i32_0 = arith.constant 0 : i32
    %c0_i32_1 = arith.constant 0 : i32
    return %c0_i32, %c0_i32_0 : i32, i32
  }
  func.func @transform_5(%arg0: i32) -> (i32, i32) {
    %c0_i32 = arith.constant 0 : i32
    %c0_i32_0 = arith.constant 0 : i32
    return %arg0, %c0_i32 : i32, i32
  }
  func.func @transform_6(%arg0: i32) -> (i32, i32) {
    %c0_i32 = arith.constant 0 : i32
    %c0_i32_0 = arith.constant 0 : i32
    return %arg0, %c0_i32 : i32, i32
  }
}

</mosaic_0001>

<llo_original>
// kernel: gnn_decoder_forward.2
$region0: #{gnn_decoder_forward.2}
  #allocation0 [shape = 'u32[]', space=smem, size = 0x4, offset = 0x4, fixed_abs, tag = 'smem constant byte address 0x4 - core index']
  #allocation1 [shape = 'u32[72,128]{1,0:T(1,128)}', space=vmem, size = 0x9000, scoped, tag = 'internal scratch']
  %s0 = inlined_call_operand.vmem [shape: f32[1024,32], index: 0, kind: input, shape index: {}]
  %s1 = inlined_call_operand.hbm [shape: f32[32,128], index: 1, kind: input, shape index: {}]
  %s2 = inlined_call_operand.hbm [shape: f32[1,128], index: 2, kind: input, shape index: {}]
  %s3 = inlined_call_operand.hbm [shape: f32[128,128], index: 3, kind: input, shape index: {}]
  %s4 = inlined_call_operand.hbm [shape: f32[1,128], index: 4, kind: input, shape index: {}]
  %s5 = inlined_call_operand.hbm [shape: f32[1024,128], index: 5, kind: output, shape index: {0}]
  %s6 = inlined_call_operand.vmem [shape: bf16[1024,128], index: 6, kind: output, shape index: {1}]
  %7 = xla_tuple %s5, %s6
  %s8 = sld [smem:[#allocation0]]
  $region77: #{gnn_decoder_forward.2} parent=0
    _
  %s10 = ssub.s32 1, %s8
  %s11 = scalar_select 0, %s10, %s8
  $region1: #{gnn_decoder_forward.2} parent=0
    #allocation2 [shape = 'u8[16384]{0}', space=vmem, size = 0x4000, scoped, tag = 'input window, operand 1, single buffered']
    #allocation3 [shape = 's32[2]{0}', space=sflag, size = 0x8, scoped, tag = 'scoped memory for gnn_decoder_forward.2']
    #allocation4 [shape = 's32[2]{0}', space=sflag, size = 0x8, scoped, tag = 'scoped memory for gnn_decoder_forward.2']
    #allocation5 [shape = 'u8[512]{0}', space=vmem, size = 0x400, scoped, tag = 'input window, operand 2, single buffered']
    #allocation6 [shape = 's32[1]{0}', space=sflag, size = 0x4, scoped, tag = 'scoped memory for gnn_decoder_forward.2']
    #allocation7 [shape = 'u8[65536]{0}', space=vmem, size = 0x10000, scoped, tag = 'input window, operand 3, single buffered']
    #allocation8 [shape = 'u8[512]{0}', space=vmem, size = 0x400, scoped, tag = 'input window, operand 4, single buffered']
    #allocation9 [shape = 's32[1]{0}', space=sflag, size = 0x4, scoped, tag = 'scoped memory for gnn_decoder_forward.2']
    #allocation10 [shape = 'u8[524288]{0}', space=vmem, size = 0x80000, scoped, tag = 'output window, operand 0']
    %12 = vsyncpa [#allocation3], 0
    %13 = vsyncpa [#allocation6], 0
    %14 = vsyncpa [#allocation9], 0
    %15 = vsyncpa [#allocation4], 0
    %s16 = scalar_lea.sflag [#allocation4], 1
    %17 = vsyncpa %s16, 0
    loop: start=0, step=1, limit=4
    $region2: #{gnn_decoder_forward.2} parent=1 // loop_pre_header
      _
    $region3: #{gnn_decoder_forward.2} parent=1 // loop_header
      %s19 = sphi 0, %s23
      %p20 = scmp.ge.s32.totalorder %s19, 4
      %s29 = sphi 0, %s31
      %s32 = sphi 0, %s29
      %s33 = sphi 0, %s32
      %s49 = sphi 0, %s33
      %s53 = sphi 0, %s53
      %s55 = sphi 0, %s53
      %s56 = sphi 0, %s55
      %s70 = sphi 0, %s56
      %s74 = sphi 0, %s74
      %s76 = sphi 0, %s74
      %s77 = sphi 0, %s76
      %s91 = sphi 0, %s77
      %s95 = sphi 0, %s95
      %s97 = sphi 0, %s95
      %s98 = sphi 0, %s97
      %s112 = sphi 0, %s98
      %s116 = sphi 0, %s116
      %s118 = sphi 0, %s116
      %s119 = sphi 0, %s118
      %s133 = sphi 0, %s119
      %s139 = sphi 0, %s141
      %s142 = sphi 0, %s139
      %s143 = sphi 0, %s142
      %s159 = sphi 0, %s143
      %s165 = sphi 0, %s167
      %s168 = sphi 0, %s165
      %s169 = sphi 0, %s168
      %s185 = sphi 0, %s169
    $region4: #{gnn_decoder_forward.2} parent=1 // loop_header_branch
      %22 = sbr.rel (%p20) target = $region8
    $region5: #{gnn_decoder_forward.2} parent=1 // loop_body
      %s24 = ssub.s32 %s19, 1
      %s25 = ssub.s32 %s19, 2
      %s26 = sadd.s32 %s19, 1
      %s27 = ssub.s32 %s19, %s26
      %p28 = scmp.eq.s32.totalorder %s27, 0
      %s30 = sadd.s32 %s29, 1
      %s31 = scalar_select %p28, %s29, %s30
      %p34 = pneg %p28
      %p35 = scmp.eq.s32.totalorder %s19, 1
      %p36 = por %p34, %p35
      %p37 = scmp.ne.s32.totalorder %s29, %s32
      %p38 = scmp.eq.s32.totalorder %s19, 0
      %p39 = por %p37, %p38
      %p40 = scmp.ne.s32.totalorder %s29, %s32
      %p41 = scmp.eq.s32.totalorder %s24, 1
      %p42 = por %p40, %p41
      %p43 = scmp.ne.s32.totalorder %s32, %s33
      %p44 = scmp.eq.s32.totalorder %s24, 0
      %p45 = por %p43, %p44
      %p46 = scmp.ne.s32.totalorder %s32, %s33
      %p47 = scmp.eq.s32.totalorder %s25, 1
      %p48 = por %p46, %p47
      %p50 = scmp.ne.s32.totalorder %s33, %s49
      %p51 = scmp.eq.s32.totalorder %s25, 0
      %p52 = por %p50, %p51
      %s54 = sadd.s32 %s53, 1
      %p57 = scmp.eq.s32.totalorder %s19, 1
      %p58 = scmp.ne.s32.totalorder %s53, %s55
      %p59 = scmp.eq.s32.totalorder %s19, 0
      %p60 = por %p58, %p59
      %p61 = scmp.ne.s32.totalorder %s53, %s55
      %p62 = scmp.eq.s32.totalorder %s24, 1
      %p63 = por %p61, %p62
      %p64 = scmp.ne.s32.totalorder %s55, %s56
      %p65 = scmp.eq.s32.totalorder %s24, 0
      %p66 = por %p64, %p65
      %p67 = scmp.ne.s32.totalorder %s55, %s56
      %p68 = scmp.eq.s32.totalorder %s25, 1
      %p69 = por %p67, %p68
      %p71 = scmp.ne.s32.totalorder %s56, %s70
      %p72 = scmp.eq.s32.totalorder %s25, 0
      %p73 = por %p71, %p72
      %s75 = sadd.s32 %s74, 1
      %p78 = scmp.eq.s32.totalorder %s19, 1
      %p79 = scmp.ne.s32.totalorder %s74, %s76
      %p80 = scmp.eq.s32.totalorder %s19, 0
      %p81 = por %p79, %p80
      %p82 = scmp.ne.s32.totalorder %s74, %s76
      %p83 = scmp.eq.s32.totalorder %s24, 1
      %p84 = por %p82, %p83
      %p85 = scmp.ne.s32.totalorder %s76, %s77
      %p86 = scmp.eq.s32.totalorder %s24, 0
      %p87 = por %p85, %p86
      %p88 = scmp.ne.s32.totalorder %s76, %s77
      %p89 = scmp.eq.s32.totalorder %s25, 1
      %p90 = por %p88, %p89
      %p92 = scmp.ne.s32.totalorder %s77, %s91
      %p93 = scmp.eq.s32.totalorder %s25, 0
      %p94 = por %p92, %p93
      %s96 = sadd.s32 %s95, 1
      %p99 = scmp.eq.s32.totalorder %s19, 1
      %p100 = scmp.ne.s32.totalorder %s95, %s97
      %p101 = scmp.eq.s32.totalorder %s19, 0
      %p102 = por %p100, %p101
      %p103 = scmp.ne.s32.totalorder %s95, %s97
      %p104 = scmp.eq.s32.totalorder %s24, 1
      %p105 = por %p103, %p104
      %p106 = scmp.ne.s32.totalorder %s97, %s98
      %p107 = scmp.eq.s32.totalorder %s24, 0
      %p108 = por %p106, %p107
      %p109 = scmp.ne.s32.totalorder %s97, %s98
      %p110 = scmp.eq.s32.totalorder %s25, 1
      %p111 = por %p109, %p110
      %p113 = scmp.ne.s32.totalorder %s98, %s112
      %p114 = scmp.eq.s32.totalorder %s25, 0
      %p115 = por %p113, %p114
      %s117 = sadd.s32 %s116, 1
      %p120 = scmp.eq.s32.totalorder %s19, 1
      %p121 = scmp.ne.s32.totalorder %s116, %s118
      %p122 = scmp.eq.s32.totalorder %s19, 0
      %p123 = por %p121, %p122
      %p124 = scmp.ne.s32.totalorder %s116, %s118
      %p125 = scmp.eq.s32.totalorder %s24, 1
      %p126 = por %p124, %p125
      %p127 = scmp.ne.s32.totalorder %s118, %s119
      %p128 = scmp.eq.s32.totalorder %s24, 0
      %p129 = por %p127, %p128
      %p130 = scmp.ne.s32.totalorder %s118, %s119
      %p131 = scmp.eq.s32.totalorder %s25, 1
      %p132 = por %p130, %p131
      %p134 = scmp.ne.s32.totalorder %s119, %s133
      %p135 = scmp.eq.s32.totalorder %s25, 0
      %p136 = por %p134, %p135
      %s137 = ssub.s32 %s19, %s26
      %p138 = scmp.eq.s32.totalorder %s137, 0
      %s140 = sadd.s32 %s139, 1
      %s141 = scalar_select %p138, %s139, %s140
      %p144 = pneg %p138
      %p145 = scmp.eq.s32.totalorder %s19, 1
      %p146 = por %p144, %p145
      %p147 = scmp.ne.s32.totalorder %s139, %s142
      %p148 = scmp.eq.s32.totalorder %s19, 0
      %p149 = por %p147, %p148
      %p150 = scmp.ne.s32.totalorder %s139, %s142
      %p151 = scmp.eq.s32.totalorder %s24, 1
      %p152 = por %p150, %p151
      %p153 = scmp.ne.s32.totalorder %s142, %s143
      %p154 = scmp.eq.s32.totalorder %s24, 0
      %p155 = por %p153, %p154
      %p156 = scmp.ne.s32.totalorder %s142, %s143
      %p157 = scmp.eq.s32.totalorder %s25, 1
      %p158 = por %p156, %p157
      %p160 = scmp.ne.s32.totalorder %s143, %s159
      %p161 = scmp.eq.s32.totalorder %s25, 0
      %p162 = por %p160, %p161
      %s163 = ssub.s32 %s19, %s26
      %p164 = scmp.eq.s32.totalorder %s163, 0
      %s166 = sadd.s32 %s165, 1
      %s167 = scalar_select %p164, %s165, %s166
      %p170 = pneg %p164
      %p171 = scmp.eq.s32.totalorder %s19, 1
      %p172 = por %p170, %p171
      %p173 = scmp.ne.s32.totalorder %s165, %s168
      %p174 = scmp.eq.s32.totalorder %s19, 0
      %p175 = por %p173, %p174
      %p176 = scmp.ne.s32.totalorder %s165, %s168
      %p177 = scmp.eq.s32.totalorder %s24, 1
      %p178 = por %p176, %p177
      %p179 = scmp.ne.s32.totalorder %s168, %s169
      %p180 = scmp.eq.s32.totalorder %s24, 0
      %p181 = por %p179, %p180
      %p182 = scmp.ne.s32.totalorder %s168, %s169
      %p183 = scmp.eq.s32.totalorder %s25, 1
      %p184 = por %p182, %p183
      %p186 = scmp.ne.s32.totalorder %s169, %s185
      %p187 = scmp.eq.s32.totalorder %s25, 0
      %p188 = por %p186, %p187
      %p189 = scmp.le.s32.totalorder 1, %s19
      %p190 = scmp.lt.s32.totalorder %s19, 3
      %p191 = pnand %p189, %p190
      %p192 = pneg %p191
      // Predicated region
      $region9: #{gnn_decoder_forward.2} parent=5 // pred_check
        _
      $region10: #{gnn_decoder_forward.2} parent=5 // pred_check_branch
        %194 = sbr.rel (%p191) target = $region12
      $region11: #{gnn_decoder_forward.2} parent=5 // pred_region
        %s195 = ssub.s32 %s19, 1
        // Predicated region
        $region13: #{gnn_decoder_forward.2} parent=11 // pred_check
          %p196 = pneg %p66
        $region14: #{gnn_decoder_forward.2} parent=11 // pred_check_branch
          %198 = sbr.rel (%p196) target = $region16
        $region15: #{gnn_decoder_forward.2} parent=11 // pred_region
          %200 = vsyncadd [#allocation3], 0
          %s201 = sshll.u32 %s1, 4
          %s202 = int_to_ptr.hbm [resolvable:$true] %s201
          %s203 = sshll.u32 [#allocation2], 4
          %s204 = int_to_ptr.vmem [resolvable:$true] %s203
          %209 = dma.hbm_to_vmem [thread:$0]  %s202, 512, %s204, [#allocation3], 128, 128, 8
        $region16: #{gnn_decoder_forward.2} parent=11 // pred_fallthru
          _
        // Predicated region
        $region17: #{gnn_decoder_forward.2} parent=11 // pred_check
          %p210 = pneg %p87
        $region18: #{gnn_decoder_forward.2} parent=11 // pred_check_branch
          %212 = sbr.rel (%p210) target = $region20
        $region19: #{gnn_decoder_forward.2} parent=11 // pred_region
          %214 = vsyncadd [#allocation6], 0
          %s216 = sshll.u32 %s2, 4
          %s217 = int_to_ptr.hbm [resolvable:$true] %s216
          %s218 = sshll.u32 [#allocation5], 4
          %s219 = int_to_ptr.vmem [resolvable:$true] %s218
          %221 = dma.hbm_to_vmem [thread:$0]  %s217, 16, %s219, [#allocation6]
        $region20: #{gnn_decoder_forward.2} parent=11 // pred_fallthru
          _
        // Predicated region
        $region21: #{gnn_decoder_forward.2} parent=11 // pred_check
          %p222 = pneg %p108
        $region22: #{gnn_decoder_forward.2} parent=11 // pred_check_branch
          %224 = sbr.rel (%p222) target = $region24
        $region23: #{gnn_decoder_forward.2} parent=11 // pred_region
          %226 = vsyncadd [#allocation6], 0
          %s227 = sshll.u32 %s3, 4
          %s228 = int_to_ptr.hbm [resolvable:$true] %s227
          %s229 = sshll.u32 [#allocation7], 4
          %s230 = int_to_ptr.vmem [resolvable:$true] %s229
          %235 = dma.hbm_to_vmem [thread:$0]  %s228, 2048, %s230, [#allocation6], 128, 128, 8
        $region24: #{gnn_decoder_forward.2} parent=11 // pred_fallthru
          _
        // Predicated region
        $region25: #{gnn_decoder_forward.2} parent=11 // pred_check
          %p236 = pneg %p129
        $region26: #{gnn_decoder_forward.2} parent=11 // pred_check_branch
          %238 = sbr.rel (%p236) target = $region28
        $region27: #{gnn_decoder_forward.2} parent=11 // pred_region
          %240 = vsyncadd [#allocation9], 0
          %s242 = sshll.u32 %s4, 4
          %s243 = int_to_ptr.hbm [resolvable:$true] %s242
          %s244 = sshll.u32 [#allocation8], 4
          %s245 = int_to_ptr.vmem [resolvable:$true] %s244
          %247 = dma.hbm_to_vmem [thread:$0]  %s243, 16, %s245, [#allocation9]
        $region28: #{gnn_decoder_forward.2} parent=11 // pred_fallthru
          _
      $region12: #{gnn_decoder_forward.2} parent=5 // pred_fallthru
        _
      %p248 = scmp.lt.s32.totalorder %s19, 2
      // Predicated region
      $region29: #{gnn_decoder_forward.2} parent=5 // pred_check
        %p249 = pneg %p248
      $region30: #{gnn_decoder_forward.2} parent=5 // pred_check_branch
        %251 = sbr.rel (%p249) target = $region32
      $region31: #{gnn_decoder_forward.2} parent=5 // pred_region
        // Predicated region
        $region33: #{gnn_decoder_forward.2} parent=31 // pred_check
          %p252 = pneg %p39
        $region34: #{gnn_decoder_forward.2} parent=31 // pred_check_branch
          %254 = sbr.rel (%p252) target = $region36
        $region35: #{gnn_decoder_forward.2} parent=31 // pred_region
          %s255 = smul.u32 64, %s19
          %p256 = scmp.lt.s32.totalorder %s255, 127
          %s257 = scalar_select %p256, %s255, 127
          %s258 = smul.addr %s257, 8
          %s259 = scalar_lea.vmem %s0, %s258
          %s260 = smul.u32 64, %s19
        $region36: #{gnn_decoder_forward.2} parent=31 // pred_fallthru
          _
      $region32: #{gnn_decoder_forward.2} parent=5 // pred_fallthru
        _
      %p261 = scmp.le.s32.totalorder 1, %s19
      %p262 = scmp.lt.s32.totalorder %s19, 3
      %p263 = pnand %p261, %p262
      %p264 = pneg %p263
      // Predicated region
      $region37: #{gnn_decoder_forward.2} parent=5 // pred_check
        _
      $region38: #{gnn_decoder_forward.2} parent=5 // pred_check_branch
        %266 = sbr.rel (%p263) target = $region40
      $region39: #{gnn_decoder_forward.2} parent=5 // pred_region
        %s267 = ssub.s32 %s19, 1
        // Predicated region
        $region41: #{gnn_decoder_forward.2} parent=39 // pred_check
          %p268 = pneg %p66
        $region42: #{gnn_decoder_forward.2} parent=39 // pred_check_branch
          %270 = sbr.rel (%p268) target = $region44
        $region43: #{gnn_decoder_forward.2} parent=39 // pred_region
          %272 = dma.done [#allocation3], 512
        $region44: #{gnn_decoder_forward.2} parent=39 // pred_fallthru
          _
        // Predicated region
        $region45: #{gnn_decoder_forward.2} parent=39 // pred_check
          %p273 = pneg %p87
        $region46: #{gnn_decoder_forward.2} parent=39 // pred_check_branch
          %275 = sbr.rel (%p273) target = $region48
        $region47: #{gnn_decoder_forward.2} parent=39 // pred_region
          %277 = dma.done [#allocation6], 16
        $region48: #{gnn_decoder_forward.2} parent=39 // pred_fallthru
          _
        // Predicated region
        $region49: #{gnn_decoder_forward.2} parent=39 // pred_check
          %p278 = pneg %p108
        $region50: #{gnn_decoder_forward.2} parent=39 // pred_check_branch
          %280 = sbr.rel (%p278) target = $region52
        $region51: #{gnn_decoder_forward.2} parent=39 // pred_region
          %282 = dma.done [#allocation6], 2048
        $region52: #{gnn_decoder_forward.2} parent=39 // pred_fallthru
          _
        // Predicated region
        $region53: #{gnn_decoder_forward.2} parent=39 // pred_check
          %p283 = pneg %p129
        $region54: #{gnn_decoder_forward.2} parent=39 // pred_check_branch
          %285 = sbr.rel (%p283) target = $region56
        $region55: #{gnn_decoder_forward.2} parent=39 // pred_region
          %287 = dma.done [#allocation9], 16
        $region56: #{gnn_decoder_forward.2} parent=39 // pred_fallthru
          _
        %s288 = smul.u32 64, %s24
        %p289 = scmp.lt.s32.totalorder %s288, 127
        %s290 = scalar_select %p289, %s288, 127
        %s291 = smul.addr %s290, 8
        %s292 = scalar_lea.vmem %s0, %s291
        %p293 = pneg %p45
        %p294 = pneg %p42
        %p295 = pneg %p66
        %p296 = pneg %p63
        %p297 = pneg %p87
        %p298 = pneg %p84
        %p299 = pneg %p108
        %p300 = pneg %p105
        %p301 = pneg %p129
        %p302 = pneg %p126
        %p303 = pneg %p155
        %p304 = pneg %p152
        %s305 = sand.u32 %s142, 1
        %s306 = scalar_lea.sflag [#allocation4], %s305
        %s307 = sand.u32 %s142, 1
        %s308 = smul.addr %s307, 512
        %s309 = scalar_lea.vmem [#allocation10], %s308
        %p310 = pneg %p181
        %p311 = pneg %p178
        %s312 = smul.u32 64, %s24
        %p313 = scmp.lt.s32.totalorder %s312, 127
        %s314 = scalar_select %p313, %s312, 127
        %s315 = smul.addr %s314, 4
        %s316 = scalar_lea.vmem %s6, %s315
        %s317 = smul.u32 64, %s24
        %p318 = scmp.lt.s32.totalorder %s317, 127
        %s319 = scalar_select %p318, %s317, 127
        %s320 = smul.addr %s319, 8
        %s321 = scalar_lea.vmem %s0, %s320
        %s322 = smul.u32 64, %s24
        %s323 = smul.u32 64, %s24
        %s324 = smul.u32 64, %s24
        %p325 = scmp.lt.s32.totalorder %s324, 127
        %s326 = scalar_select %p325, %s324, 127
        %s327 = smul.addr %s326, 4
        %s328 = scalar_lea.vmem %s6, %s327
        %s329 = smul.u32 64, %s24
        %v330 = vld [vmem:[%s321] sm:$0xff]
        %v331 = vld [vmem:[%s321 + $0x8] sm:$0xff]
        %v332 = vld [vmem:[%s321 + $0x10] sm:$0xff]
        %v333 = vld [vmem:[%s321 + $0x18] sm:$0xff]
        %v334 = vld [vmem:[%s321 + $0x20] sm:$0xff]
        %v335 = vld [vmem:[%s321 + $0x28] sm:$0xff]
        %v336 = vld [vmem:[%s321 + $0x30] sm:$0xff]
        %v337 = vld [vmem:[%s321 + $0x38] sm:$0xff]
        %v338 = vld [vmem:[%s321 + $0x40] sm:$0xff]
        %v339 = vld [vmem:[%s321 + $0x48] sm:$0xff]
        %v340 = vld [vmem:[%s321 + $0x50] sm:$0xff]
        %v341 = vld [vmem:[%s321 + $0x58] sm:$0xff]
        %v342 = vld [vmem:[%s321 + $0x60] sm:$0xff]
        %v343 = vld [vmem:[%s321 + $0x68] sm:$0xff]
        %v344 = vld [vmem:[%s321 + $0x70] sm:$0xff]
        %v345 = vld [vmem:[%s321 + $0x78] sm:$0xff]
        %v346 = vld [vmem:[%s321 + $0x80] sm:$0xff]
        %v347 = vld [vmem:[%s321 + $0x88] sm:$0xff]
        %v348 = vld [vmem:[%s321 + $0x90] sm:$0xff]
        %v349 = vld [vmem:[%s321 + $0x98] sm:$0xff]
        %v350 = vld [vmem:[%s321 + $0xa0] sm:$0xff]
        %v351 = vld [vmem:[%s321 + $0xa8] sm:$0xff]
        %v352 = vld [vmem:[%s321 + $0xb0] sm:$0xff]
        %v353 = vld [vmem:[%s321 + $0xb8] sm:$0xff]
        %v354 = vld [vmem:[%s321 + $0xc0] sm:$0xff]
        %v355 = vld [vmem:[%s321 + $0xc8] sm:$0xff]
        %v356 = vld [vmem:[%s321 + $0xd0] sm:$0xff]
        %v357 = vld [vmem:[%s321 + $0xd8] sm:$0xff]
        %v358 = vld [vmem:[%s321 + $0xe0] sm:$0xff]
        %v359 = vld [vmem:[%s321 + $0xe8] sm:$0xff]
        %v360 = vld [vmem:[%s321 + $0xf0] sm:$0xff]
        %v361 = vld [vmem:[%s321 + $0xf8] sm:$0xff]
        %v362 = vld [vmem:[%s321 + $0x100] sm:$0xff]
        %v363 = vld [vmem:[%s321 + $0x108] sm:$0xff]
        %v364 = vld [vmem:[%s321 + $0x110] sm:$0xff]
        %v365 = vld [vmem:[%s321 + $0x118] sm:$0xff]
        %v366 = vld [vmem:[%s321 + $0x120] sm:$0xff]
        %v367 = vld [vmem:[%s321 + $0x128] sm:$0xff]
        %v368 = vld [vmem:[%s321 + $0x130] sm:$0xff]
        %v369 = vld [vmem:[%s321 + $0x138] sm:$0xff]
        %v370 = vld [vmem:[%s321 + $0x140] sm:$0xff]
        %v371 = vld [vmem:[%s321 + $0x148] sm:$0xff]
        %v372 = vld [vmem:[%s321 + $0x150] sm:$0xff]
        %v373 = vld [vmem:[%s321 + $0x158] sm:$0xff]
        %v374 = vld [vmem:[%s321 + $0x160] sm:$0xff]
        %v375 = vld [vmem:[%s321 + $0x168] sm:$0xff]
        %v376 = vld [vmem:[%s321 + $0x170] sm:$0xff]
        %v377 = vld [vmem:[%s321 + $0x178] sm:$0xff]
        %v378 = vld [vmem:[%s321 + $0x180] sm:$0xff]
        %v379 = vld [vmem:[%s321 + $0x188] sm:$0xff]
        %v380 = vld [vmem:[%s321 + $0x190] sm:$0xff]
        %v381 = vld [vmem:[%s321 + $0x198] sm:$0xff]
        %v382 = vld [vmem:[%s321 + $0x1a0] sm:$0xff]
        %v383 = vld [vmem:[%s321 + $0x1a8] sm:$0xff]
        %v384 = vld [vmem:[%s321 + $0x1b0] sm:$0xff]
        %v385 = vld [vmem:[%s321 + $0x1b8] sm:$0xff]
        %v386 = vld [vmem:[%s321 + $0x1c0] sm:$0xff]
        %v387 = vld [vmem:[%s321 + $0x1c8] sm:$0xff]
        %v388 = vld [vmem:[%s321 + $0x1d0] sm:$0xff]
        %v389 = vld [vmem:[%s321 + $0x1d8] sm:$0xff]
        %v390 = vld [vmem:[%s321 + $0x1e0] sm:$0xff]
        %v391 = vld [vmem:[%s321 + $0x1e8] sm:$0xff]
        %v392 = vld [vmem:[%s321 + $0x1f0] sm:$0xff]
        %v393 = vld [vmem:[%s321 + $0x1f8] sm:$0xff]
        %v394 = vld [vmem:[#allocation2] sm:$0xff]
        %v395 = vld [vmem:[#allocation2 + $0x8] sm:$0xff]
        %v396 = vld [vmem:[#allocation2 + $0x10] sm:$0xff]
        %v397 = vld [vmem:[#allocation2 + $0x18] sm:$0xff]
        %v398 = vld [vmem:[#allocation5] sm:$0x1]
        %v400 = vperm.slane %v398, 0
        %vm402 = vcmask 261120
        %v404 = vsel %vm402, %v330, 0
        %v407 = vsel %vm402, %v331, 0
        %v410 = vsel %vm402, %v332, 0
        %v413 = vsel %vm402, %v333, 0
        %v416 = vsel %vm402, %v334, 0
        %v419 = vsel %vm402, %v335, 0
        %v422 = vsel %vm402, %v336, 0
        %v425 = vsel %vm402, %v337, 0
        %v428 = vsel %vm402, %v338, 0
        %v431 = vsel %vm402, %v339, 0
        %v434 = vsel %vm402, %v340, 0
        %v437 = vsel %vm402, %v341, 0
        %v440 = vsel %vm402, %v342, 0
        %v443 = vsel %vm402, %v343, 0
        %v446 = vsel %vm402, %v344, 0
        %v449 = vsel %vm402, %v345, 0
        %v452 = vsel %vm402, %v346, 0
        %v455 = vsel %vm402, %v347, 0
        %v458 = vsel %vm402, %v348, 0
        %v461 = vsel %vm402, %v349, 0
        %v464 = vsel %vm402, %v350, 0
        %v467 = vsel %vm402, %v351, 0
        %v470 = vsel %vm402, %v352, 0
        %v473 = vsel %vm402, %v353, 0
        %v476 = vsel %vm402, %v354, 0
        %v479 = vsel %vm402, %v355, 0
        %v482 = vsel %vm402, %v356, 0
        %v485 = vsel %vm402, %v357, 0
        %v488 = vsel %vm402, %v358, 0
        %v491 = vsel %vm402, %v359, 0
        %v494 = vsel %vm402, %v360, 0
        %v497 = vsel %vm402, %v361, 0
        %v500 = vsel %vm402, %v362, 0
        %v503 = vsel %vm402, %v363, 0
        %v506 = vsel %vm402, %v364, 0
        %v509 = vsel %vm402, %v365, 0
        %v512 = vsel %vm402, %v366, 0
        %v515 = vsel %vm402, %v367, 0
        %v518 = vsel %vm402, %v368, 0
        %v521 = vsel %vm402, %v369, 0
        %v524 = vsel %vm402, %v370, 0
        %v527 = vsel %vm402, %v371, 0
        %v530 = vsel %vm402, %v372, 0
        %v533 = vsel %vm402, %v373, 0
        %v536 = vsel %vm402, %v374, 0
        %v539 = vsel %vm402, %v375, 0
        %v542 = vsel %vm402, %v376, 0
        %v545 = vsel %vm402, %v377, 0
        %v548 = vsel %vm402, %v378, 0
        %v551 = vsel %vm402, %v379, 0
        %v554 = vsel %vm402, %v380, 0
        %v557 = vsel %vm402, %v381, 0
        %v560 = vsel %vm402, %v382, 0
        %v563 = vsel %vm402, %v383, 0
        %v566 = vsel %vm402, %v384, 0
        %v569 = vsel %vm402, %v385, 0
        %v572 = vsel %vm402, %v386, 0
        %v575 = vsel %vm402, %v387, 0
        %v578 = vsel %vm402, %v388, 0
        %v581 = vsel %vm402, %v389, 0
        %v584 = vsel %vm402, %v390, 0
        %v587 = vsel %vm402, %v391, 0
        %v590 = vsel %vm402, %v392, 0
        %v593 = vsel %vm402, %v393, 0
        %595 = vmatpush.msra.mxu0 0.0
        %596 = vmatpush.msra.mxu0 0.0
        %597 = vmatpush.msra.mxu0 0.0
        %598 = vmatpush.msra.mxu0 0.0
        %599 = vmatpush.msra.mxu0 0.0
        %600 = vmatpush.msra.mxu0 0.0
        %601 = vmatpush.msra.mxu0 0.0
        %602 = vmatpush.msra.mxu0 0.0
        %603 = vmatpush.msra.mxu0 0.0
        %604 = vmatpush.msra.mxu0 0.0
        %605 = vmatpush.msra.mxu0 0.0
        %606 = vmatpush.msra.mxu0 0.0
        %607 = vmatpush.msra.mxu0 %v397
        %608 = vmatpush.msra.mxu0 %v396
        %609 = vmatpush.msra.mxu0 %v395
        %610 = vmatpush.msra.mxu0 %v394
        %611 = vmatmul.f32.gmra.mxu0 %v404
        %v612 = vpop.f32.mrf.mxu0
        %v613 = vadd.f32 %v400, %v612
        %614 = vmatmul.f32.gmra.mxu0 %v407
        %v615 = vpop.f32.mrf.mxu0
        %v616 = vadd.f32 %v400, %v615
        %617 = vmatmul.f32.gmra.mxu0 %v410
        %v618 = vpop.f32.mrf.mxu0
        %v619 = vadd.f32 %v400, %v618
        %620 = vmatmul.f32.gmra.mxu0 %v413
        %v621 = vpop.f32.mrf.mxu0
        %v622 = vadd.f32 %v400, %v621
        %623 = vmatmul.f32.gmra.mxu0 %v416
        %v624 = vpop.f32.mrf.mxu0
        %v625 = vadd.f32 %v400, %v624
        %626 = vmatmul.f32.gmra.mxu0 %v419
        %v627 = vpop.f32.mrf.mxu0
        %v628 = vadd.f32 %v400, %v627
        %629 = vmatmul.f32.gmra.mxu0 %v422
        %v630 = vpop.f32.mrf.mxu0
        %v631 = vadd.f32 %v400, %v630
        %632 = vmatmul.f32.gmra.mxu0 %v425
        %v633 = vpop.f32.mrf.mxu0
        %v634 = vadd.f32 %v400, %v633
        %635 = vmatmul.f32.gmra.mxu0 %v428
        %v636 = vpop.f32.mrf.mxu0
        %v637 = vadd.f32 %v400, %v636
        %638 = vmatmul.f32.gmra.mxu0 %v431
        %v639 = vpop.f32.mrf.mxu0
        %v640 = vadd.f32 %v400, %v639
        %641 = vmatmul.f32.gmra.mxu0 %v434
        %v642 = vpop.f32.mrf.mxu0
        %v643 = vadd.f32 %v400, %v642
        %644 = vmatmul.f32.gmra.mxu0 %v437
        %v645 = vpop.f32.mrf.mxu0
        %v646 = vadd.f32 %v400, %v645
        %647 = vmatmul.f32.gmra.mxu0 %v440
        %v648 = vpop.f32.mrf.mxu0
        %v649 = vadd.f32 %v400, %v648
        %650 = vmatmul.f32.gmra.mxu0 %v443
        %v651 = vpop.f32.mrf.mxu0
        %v652 = vadd.f32 %v400, %v651
        %653 = vmatmul.f32.gmra.mxu0 %v446
        %v654 = vpop.f32.mrf.mxu0
        %v655 = vadd.f32 %v400, %v654
        %656 = vmatmul.f32.gmra.mxu0 %v449
        %v657 = vpop.f32.mrf.mxu0
        %v658 = vadd.f32 %v400, %v657
        %659 = vmatmul.f32.gmra.mxu0 %v452
        %v660 = vpop.f32.mrf.mxu0
        %v661 = vadd.f32 %v400, %v660
        %662 = vmatmul.f32.gmra.mxu0 %v455
        %v663 = vpop.f32.mrf.mxu0
        %v664 = vadd.f32 %v400, %v663
        %665 = vmatmul.f32.gmra.mxu0 %v458
        %v666 = vpop.f32.mrf.mxu0
        %v667 = vadd.f32 %v400, %v666
        %668 = vmatmul.f32.gmra.mxu0 %v461
        %v669 = vpop.f32.mrf.mxu0
        %v670 = vadd.f32 %v400, %v669
        %671 = vmatmul.f32.gmra.mxu0 %v464
        %v672 = vpop.f32.mrf.mxu0
        %v673 = vadd.f32 %v400, %v672
        %674 = vmatmul.f32.gmra.mxu0 %v467
        %v675 = vpop.f32.mrf.mxu0
        %v676 = vadd.f32 %v400, %v675
        %677 = vmatmul.f32.gmra.mxu0 %v470
        %v678 = vpop.f32.mrf.mxu0
        %v679 = vadd.f32 %v400, %v678
        %680 = vmatmul.f32.gmra.mxu0 %v473
        %v681 = vpop.f32.mrf.mxu0
        %v682 = vadd.f32 %v400, %v681
        %683 = vmatmul.f32.gmra.mxu0 %v476
        %v684 = vpop.f32.mrf.mxu0
        %v685 = vadd.f32 %v400, %v684
        %686 = vmatmul.f32.gmra.mxu0 %v479
        %v687 = vpop.f32.mrf.mxu0
        %v688 = vadd.f32 %v400, %v687
        %689 = vmatmul.f32.gmra.mxu0 %v482
        %v690 = vpop.f32.mrf.mxu0
        %v691 = vadd.f32 %v400, %v690
        %692 = vmatmul.f32.gmra.mxu0 %v485
        %v693 = vpop.f32.mrf.mxu0
        %v694 = vadd.f32 %v400, %v693
        %695 = vmatmul.f32.gmra.mxu0 %v488
        %v696 = vpop.f32.mrf.mxu0
        %v697 = vadd.f32 %v400, %v696
        %698 = vmatmul.f32.gmra.mxu0 %v491
        %v699 = vpop.f32.mrf.mxu0
        %v700 = vadd.f32 %v400, %v699
        %701 = vmatmul.f32.gmra.mxu0 %v494
        %v702 = vpop.f32.mrf.mxu0
        %v703 = vadd.f32 %v400, %v702
        %704 = vmatmul.f32.gmra.mxu0 %v497
        %v705 = vpop.f32.mrf.mxu0
        %v706 = vadd.f32 %v400, %v705
        %707 = vmatmul.f32.gmra.mxu0 %v500
        %v708 = vpop.f32.mrf.mxu0
        %v709 = vadd.f32 %v400, %v708
        %710 = vmatmul.f32.gmra.mxu0 %v503
        %v711 = vpop.f32.mrf.mxu0
        %v712 = vadd.f32 %v400, %v711
        %713 = vmatmul.f32.gmra.mxu0 %v506
        %v714 = vpop.f32.mrf.mxu0
        %v715 = vadd.f32 %v400, %v714
        %716 = vmatmul.f32.gmra.mxu0 %v509
        %v717 = vpop.f32.mrf.mxu0
        %v718 = vadd.f32 %v400, %v717
        %719 = vmatmul.f32.gmra.mxu0 %v512
        %v720 = vpop.f32.mrf.mxu0
        %v721 = vadd.f32 %v400, %v720
        %722 = vmatmul.f32.gmra.mxu0 %v515
        %v723 = vpop.f32.mrf.mxu0
        %v724 = vadd.f32 %v400, %v723
        %725 = vmatmul.f32.gmra.mxu0 %v518
        %v726 = vpop.f32.mrf.mxu0
        %v727 = vadd.f32 %v400, %v726
        %728 = vmatmul.f32.gmra.mxu0 %v521
        %v729 = vpop.f32.mrf.mxu0
        %v730 = vadd.f32 %v400, %v729
        %731 = vmatmul.f32.gmra.mxu0 %v524
        %v732 = vpop.f32.mrf.mxu0
        %v733 = vadd.f32 %v400, %v732
        %734 = vmatmul.f32.gmra.mxu0 %v527
        %v735 = vpop.f32.mrf.mxu0
        %v736 = vadd.f32 %v400, %v735
        %737 = vmatmul.f32.gmra.mxu0 %v530
        %v738 = vpop.f32.mrf.mxu0
        %v739 = vadd.f32 %v400, %v738
        %740 = vmatmul.f32.gmra.mxu0 %v533
        %v741 = vpop.f32.mrf.mxu0
        %v742 = vadd.f32 %v400, %v741
        %743 = vmatmul.f32.gmra.mxu0 %v536
        %v744 = vpop.f32.mrf.mxu0
        %v745 = vadd.f32 %v400, %v744
        %746 = vmatmul.f32.gmra.mxu0 %v539
        %v747 = vpop.f32.mrf.mxu0
        %v748 = vadd.f32 %v400, %v747
        %749 = vmatmul.f32.gmra.mxu0 %v542
        %v750 = vpop.f32.mrf.mxu0
        %v751 = vadd.f32 %v400, %v750
        %752 = vmatmul.f32.gmra.mxu0 %v545
        %v753 = vpop.f32.mrf.mxu0
        %v754 = vadd.f32 %v400, %v753
        %755 = vmatmul.f32.gmra.mxu0 %v548
        %v756 = vpop.f32.mrf.mxu0
        %v757 = vadd.f32 %v400, %v756
        %758 = vmatmul.f32.gmra.mxu0 %v551
        %v759 = vpop.f32.mrf.mxu0
        %v760 = vadd.f32 %v400, %v759
        %761 = vmatmul.f32.gmra.mxu0 %v554
        %v762 = vpop.f32.mrf.mxu0
        %v763 = vadd.f32 %v400, %v762
        %764 = vmatmul.f32.gmra.mxu0 %v557
        %v765 = vpop.f32.mrf.mxu0
        %v766 = vadd.f32 %v400, %v765
        %767 = vmatmul.f32.gmra.mxu0 %v560
        %v768 = vpop.f32.mrf.mxu0
        %v769 = vadd.f32 %v400, %v768
        %770 = vmatmul.f32.gmra.mxu0 %v563
        %v771 = vpop.f32.mrf.mxu0
        %v772 = vadd.f32 %v400, %v771
        %773 = vmatmul.f32.gmra.mxu0 %v566
        %v774 = vpop.f32.mrf.mxu0
        %v775 = vadd.f32 %v400, %v774
        %776 = vmatmul.f32.gmra.mxu0 %v569
        %v777 = vpop.f32.mrf.mxu0
        %v778 = vadd.f32 %v400, %v777
        %779 = vmatmul.f32.gmra.mxu0 %v572
        %v780 = vpop.f32.mrf.mxu0
        %v781 = vadd.f32 %v400, %v780
        %782 = vmatmul.f32.gmra.mxu0 %v575
        %v783 = vpop.f32.mrf.mxu0
        %v784 = vadd.f32 %v400, %v783
        %785 = vmatmul.f32.gmra.mxu0 %v578
        %v786 = vpop.f32.mrf.mxu0
        %v787 = vadd.f32 %v400, %v786
        %788 = vmatmul.f32.gmra.mxu0 %v581
        %v789 = vpop.f32.mrf.mxu0
        %v790 = vadd.f32 %v400, %v789
        %791 = vmatmul.f32.gmra.mxu0 %v584
        %v792 = vpop.f32.mrf.mxu0
        %v793 = vadd.f32 %v400, %v792
        %794 = vmatmul.f32.gmra.mxu0 %v587
        %v795 = vpop.f32.mrf.mxu0
        %v796 = vadd.f32 %v400, %v795
        %797 = vmatmul.f32.gmra.mxu0 %v590
        %v798 = vpop.f32.mrf.mxu0
        %v799 = vadd.f32 %v400, %v798
        %800 = vmatmul.f32.gmra.mxu0 %v593
        %v801 = vpop.f32.mrf.mxu0
        %v802 = vadd.f32 %v400, %v801
        %803 = vdwg.mxu0
        %v804 = vmax.f32 %v613, 0.0
        %v805 = vmax.f32 %v616, 0.0
        %v806 = vmax.f32 %v619, 0.0
        %v807 = vmax.f32 %v622, 0.0
        %v808 = vmax.f32 %v625, 0.0
        %v809 = vmax.f32 %v628, 0.0
        %v810 = vmax.f32 %v631, 0.0
        %v811 = vmax.f32 %v634, 0.0
        %v812 = vmax.f32 %v637, 0.0
        %v813 = vmax.f32 %v640, 0.0
        %v814 = vmax.f32 %v643, 0.0
        %v815 = vmax.f32 %v646, 0.0
        %v816 = vmax.f32 %v649, 0.0
        %v817 = vmax.f32 %v652, 0.0
        %v818 = vmax.f32 %v655, 0.0
        %v819 = vmax.f32 %v658, 0.0
        %v820 = vmax.f32 %v661, 0.0
        %v821 = vmax.f32 %v664, 0.0
        %v822 = vmax.f32 %v667, 0.0
        %v823 = vmax.f32 %v670, 0.0
        %v824 = vmax.f32 %v673, 0.0
        %v825 = vmax.f32 %v676, 0.0
        %v826 = vmax.f32 %v679, 0.0
        %v827 = vmax.f32 %v682, 0.0
        %v828 = vmax.f32 %v685, 0.0
        %v829 = vmax.f32 %v688, 0.0
        %v830 = vmax.f32 %v691, 0.0
        %v831 = vmax.f32 %v694, 0.0
        %v832 = vmax.f32 %v697, 0.0
        %v833 = vmax.f32 %v700, 0.0
        %v834 = vmax.f32 %v703, 0.0
        %v835 = vmax.f32 %v706, 0.0
        %v836 = vmax.f32 %v709, 0.0
        %v837 = vmax.f32 %v712, 0.0
        %v838 = vmax.f32 %v715, 0.0
        %v839 = vmax.f32 %v718, 0.0
        %v840 = vmax.f32 %v721, 0.0
        %v841 = vmax.f32 %v724, 0.0
        %v842 = vmax.f32 %v727, 0.0
        %v843 = vmax.f32 %v730, 0.0
        %v844 = vmax.f32 %v733, 0.0
        %v845 = vmax.f32 %v736, 0.0
        %v846 = vmax.f32 %v739, 0.0
        %v847 = vmax.f32 %v742, 0.0
        %v848 = vmax.f32 %v745, 0.0
        %v849 = vmax.f32 %v748, 0.0
        %v850 = vmax.f32 %v751, 0.0
        %v851 = vmax.f32 %v754, 0.0
        %v852 = vmax.f32 %v757, 0.0
        %v853 = vmax.f32 %v760, 0.0
        %v854 = vmax.f32 %v763, 0.0
        %v855 = vmax.f32 %v766, 0.0
        %v856 = vmax.f32 %v769, 0.0
        %v857 = vmax.f32 %v772, 0.0
        %v858 = vmax.f32 %v775, 0.0
        %v859 = vmax.f32 %v778, 0.0
        %v860 = vmax.f32 %v781, 0.0
        %v861 = vmax.f32 %v784, 0.0
        %v862 = vmax.f32 %v787, 0.0
        %v863 = vmax.f32 %v790, 0.0
        %v864 = vmax.f32 %v793, 0.0
        %v865 = vmax.f32 %v796, 0.0
        %v866 = vmax.f32 %v799, 0.0
        %v867 = vmax.f32 %v802, 0.0
        %v868 = vld [vmem:[#allocation7] sm:$0xff]
        %v869 = vld [vmem:[#allocation7 + $0x8] sm:$0xff]
        %v870 = vld [vmem:[#allocation7 + $0x10] sm:$0xff]
        %v871 = vld [vmem:[#allocation7 + $0x18] sm:$0xff]
        %v872 = vld [vmem:[#allocation7 + $0x20] sm:$0xff]
        %v873 = vld [vmem:[#allocation7 + $0x28] sm:$0xff]
        %v874 = vld [vmem:[#allocation7 + $0x30] sm:$0xff]
        %v875 = vld [vmem:[#allocation7 + $0x38] sm:$0xff]
        %v876 = vld [vmem:[#allocation7 + $0x40] sm:$0xff]
        %v877 = vld [vmem:[#allocation7 + $0x48] sm:$0xff]
        %v878 = vld [vmem:[#allocation7 + $0x50] sm:$0xff]
        %v879 = vld [vmem:[#allocation7 + $0x58] sm:$0xff]
        %v880 = vld [vmem:[#allocation7 + $0x60] sm:$0xff]
        %v881 = vld [vmem:[#allocation7 + $0x68] sm:$0xff]
        %v882 = vld [vmem:[#allocation7 + $0x70] sm:$0xff]
        %v883 = vld [vmem:[#allocation7 + $0x78] sm:$0xff]
        %v884 = vld [vmem:[#allocation8] sm:$0x1]
        %v886 = vperm.slane %v884, 0
        %888 = vmatpush.msra.mxu0 %v883
        %889 = vmatpush.msra.mxu0 %v882
        %890 = vmatpush.msra.mxu0 %v881
        %891 = vmatpush.msra.mxu0 %v880
        %892 = vmatpush.msra.mxu0 %v879
        %893 = vmatpush.msra.mxu0 %v878
        %894 = vmatpush.msra.mxu0 %v877
        %895 = vmatpush.msra.mxu0 %v876
        %896 = vmatpush.msra.mxu0 %v875
        %897 = vmatpush.msra.mxu0 %v874
        %898 = vmatpush.msra.mxu0 %v873
        %899 = vmatpush.msra.mxu0 %v872
        %900 = vmatpush.msra.mxu0 %v871
        %901 = vmatpush.msra.mxu0 %v870
        %902 = vmatpush.msra.mxu0 %v869
        %903 = vmatpush.msra.mxu0 %v868
        %904 = vmatmul.f32.gmra.mxu0 %v804
        %v905 = vpop.f32.mrf.mxu0
        %v906 = vadd.f32 %v886, %v905
        %907 = vmatmul.f32.gmra.mxu0 %v805
        %v908 = vpop.f32.mrf.mxu0
        %v909 = vadd.f32 %v886, %v908
        %910 = vmatmul.f32.gmra.mxu0 %v806
        %v911 = vpop.f32.mrf.mxu0
        %v912 = vadd.f32 %v886, %v911
        %913 = vmatmul.f32.gmra.mxu0 %v807
        %v914 = vpop.f32.mrf.mxu0
        %v915 = vadd.f32 %v886, %v914
        %916 = vmatmul.f32.gmra.mxu0 %v808
        %v917 = vpop.f32.mrf.mxu0
        %v918 = vadd.f32 %v886, %v917
        %919 = vmatmul.f32.gmra.mxu0 %v809
        %v920 = vpop.f32.mrf.mxu0
        %v921 = vadd.f32 %v886, %v920
        %922 = vmatmul.f32.gmra.mxu0 %v810
        %v923 = vpop.f32.mrf.mxu0
        %v924 = vadd.f32 %v886, %v923
        %925 = vmatmul.f32.gmra.mxu0 %v811
        %v926 = vpop.f32.mrf.mxu0
        %v927 = vadd.f32 %v886, %v926
        %928 = vmatmul.f32.gmra.mxu0 %v812
        %v929 = vpop.f32.mrf.mxu0
        %v930 = vadd.f32 %v886, %v929
        %931 = vmatmul.f32.gmra.mxu0 %v813
        %v932 = vpop.f32.mrf.mxu0
        %v933 = vadd.f32 %v886, %v932
        %934 = vmatmul.f32.gmra.mxu0 %v814
        %v935 = vpop.f32.mrf.mxu0
        %v936 = vadd.f32 %v886, %v935
        %937 = vmatmul.f32.gmra.mxu0 %v815
        %v938 = vpop.f32.mrf.mxu0
        %v939 = vadd.f32 %v886, %v938
        %940 = vmatmul.f32.gmra.mxu0 %v816
        %v941 = vpop.f32.mrf.mxu0
        %v942 = vadd.f32 %v886, %v941
        %943 = vmatmul.f32.gmra.mxu0 %v817
        %v944 = vpop.f32.mrf.mxu0
        %v945 = vadd.f32 %v886, %v944
        %946 = vmatmul.f32.gmra.mxu0 %v818
        %v947 = vpop.f32.mrf.mxu0
        %v948 = vadd.f32 %v886, %v947
        %949 = vmatmul.f32.gmra.mxu0 %v819
        %v950 = vpop.f32.mrf.mxu0
        %v951 = vadd.f32 %v886, %v950
        %952 = vmatmul.f32.gmra.mxu0 %v820
        %v953 = vpop.f32.mrf.mxu0
        %v954 = vadd.f32 %v886, %v953
        %955 = vmatmul.f32.gmra.mxu0 %v821
        %v956 = vpop.f32.mrf.mxu0
        %v957 = vadd.f32 %v886, %v956
        %958 = vmatmul.f32.gmra.mxu0 %v822
        %v959 = vpop.f32.mrf.mxu0
        %v960 = vadd.f32 %v886, %v959
        %961 = vmatmul.f32.gmra.mxu0 %v823
        %v962 = vpop.f32.mrf.mxu0
        %v963 = vadd.f32 %v886, %v962
        %964 = vmatmul.f32.gmra.mxu0 %v824
        %v965 = vpop.f32.mrf.mxu0
        %v966 = vadd.f32 %v886, %v965
        %967 = vmatmul.f32.gmra.mxu0 %v825
        %v968 = vpop.f32.mrf.mxu0
        %v969 = vadd.f32 %v886, %v968
        %970 = vmatmul.f32.gmra.mxu0 %v826
        %v971 = vpop.f32.mrf.mxu0
        %v972 = vadd.f32 %v886, %v971
        %973 = vmatmul.f32.gmra.mxu0 %v827
        %v974 = vpop.f32.mrf.mxu0
        %v975 = vadd.f32 %v886, %v974
        %976 = vmatmul.f32.gmra.mxu0 %v828
        %v977 = vpop.f32.mrf.mxu0
        %v978 = vadd.f32 %v886, %v977
        %979 = vmatmul.f32.gmra.mxu0 %v829
        %v980 = vpop.f32.mrf.mxu0
        %v981 = vadd.f32 %v886, %v980
        %982 = vmatmul.f32.gmra.mxu0 %v830
        %v983 = vpop.f32.mrf.mxu0
        %v984 = vadd.f32 %v886, %v983
        %985 = vmatmul.f32.gmra.mxu0 %v831
        %v986 = vpop.f32.mrf.mxu0
        %v987 = vadd.f32 %v886, %v986
        %988 = vmatmul.f32.gmra.mxu0 %v832
        %v989 = vpop.f32.mrf.mxu0
        %v990 = vadd.f32 %v886, %v989
        %991 = vmatmul.f32.gmra.mxu0 %v833
        %v992 = vpop.f32.mrf.mxu0
        %v993 = vadd.f32 %v886, %v992
        %994 = vmatmul.f32.gmra.mxu0 %v834
        %v995 = vpop.f32.mrf.mxu0
        %v996 = vadd.f32 %v886, %v995
        %997 = vmatmul.f32.gmra.mxu0 %v835
        %v998 = vpop.f32.mrf.mxu0
        %v999 = vadd.f32 %v886, %v998
        %1000 = vmatmul.f32.gmra.mxu0 %v836
        %v1001 = vpop.f32.mrf.mxu0
        %v1002 = vadd.f32 %v886, %v1001
        %1003 = vmatmul.f32.gmra.mxu0 %v837
        %v1004 = vpop.f32.mrf.mxu0
        %v1005 = vadd.f32 %v886, %v1004
        %1006 = vmatmul.f32.gmra.mxu0 %v838
        %v1007 = vpop.f32.mrf.mxu0
        %v1008 = vadd.f32 %v886, %v1007
        %1009 = vmatmul.f32.gmra.mxu0 %v839
        %v1010 = vpop.f32.mrf.mxu0
        %v1011 = vadd.f32 %v886, %v1010
        %1012 = vmatmul.f32.gmra.mxu0 %v840
        %v1013 = vpop.f32.mrf.mxu0
        %v1014 = vadd.f32 %v886, %v1013
        %1015 = vmatmul.f32.gmra.mxu0 %v841
        %v1016 = vpop.f32.mrf.mxu0
        %v1017 = vadd.f32 %v886, %v1016
        %1018 = vmatmul.f32.gmra.mxu0 %v842
        %v1019 = vpop.f32.mrf.mxu0
        %v1020 = vadd.f32 %v886, %v1019
        %1021 = vmatmul.f32.gmra.mxu0 %v843
        %v1022 = vpop.f32.mrf.mxu0
        %v1023 = vadd.f32 %v886, %v1022
        %1024 = vmatmul.f32.gmra.mxu0 %v844
        %v1025 = vpop.f32.mrf.mxu0
        %v1026 = vadd.f32 %v886, %v1025
        %1027 = vmatmul.f32.gmra.mxu0 %v845
        %v1028 = vpop.f32.mrf.mxu0
        %v1029 = vadd.f32 %v886, %v1028
        %1030 = vmatmul.f32.gmra.mxu0 %v846
        %v1031 = vpop.f32.mrf.mxu0
        %v1032 = vadd.f32 %v886, %v1031
        %1033 = vmatmul.f32.gmra.mxu0 %v847
        %v1034 = vpop.f32.mrf.mxu0
        %v1035 = vadd.f32 %v886, %v1034
        %1036 = vmatmul.f32.gmra.mxu0 %v848
        %v1037 = vpop.f32.mrf.mxu0
        %v1038 = vadd.f32 %v886, %v1037
        %1039 = vmatmul.f32.gmra.mxu0 %v849
        %v1040 = vpop.f32.mrf.mxu0
        %v1041 = vadd.f32 %v886, %v1040
        %1042 = vmatmul.f32.gmra.mxu0 %v850
        %v1043 = vpop.f32.mrf.mxu0
        %v1044 = vadd.f32 %v886, %v1043
        %1045 = vmatmul.f32.gmra.mxu0 %v851
        %v1046 = vpop.f32.mrf.mxu0
        %v1047 = vadd.f32 %v886, %v1046
        %1048 = vmatmul.f32.gmra.mxu0 %v852
        %v1049 = vpop.f32.mrf.mxu0
        %v1050 = vadd.f32 %v886, %v1049
        %1051 = vmatmul.f32.gmra.mxu0 %v853
        %v1052 = vpop.f32.mrf.mxu0
        %v1053 = vadd.f32 %v886, %v1052
        %1054 = vmatmul.f32.gmra.mxu0 %v854
        %v1055 = vpop.f32.mrf.mxu0
        %v1056 = vadd.f32 %v886, %v1055
        %1057 = vmatmul.f32.gmra.mxu0 %v855
        %v1058 = vpop.f32.mrf.mxu0
        %v1059 = vadd.f32 %v886, %v1058
        %1060 = vmatmul.f32.gmra.mxu0 %v856
        %v1061 = vpop.f32.mrf.mxu0
        %v1062 = vadd.f32 %v886, %v1061
        %1063 = vmatmul.f32.gmra.mxu0 %v857
        %v1064 = vpop.f32.mrf.mxu0
        %v1065 = vadd.f32 %v886, %v1064
        %1066 = vmatmul.f32.gmra.mxu0 %v858
        %v1067 = vpop.f32.mrf.mxu0
        %v1068 = vadd.f32 %v886, %v1067
        %1069 = vmatmul.f32.gmra.mxu0 %v859
        %v1070 = vpop.f32.mrf.mxu0
        %v1071 = vadd.f32 %v886, %v1070
        %1072 = vmatmul.f32.gmra.mxu0 %v860
        %v1073 = vpop.f32.mrf.mxu0
        %v1074 = vadd.f32 %v886, %v1073
        %1075 = vmatmul.f32.gmra.mxu0 %v861
        %v1076 = vpop.f32.mrf.mxu0
        %v1077 = vadd.f32 %v886, %v1076
        %1078 = vmatmul.f32.gmra.mxu0 %v862
        %v1079 = vpop.f32.mrf.mxu0
        %v1080 = vadd.f32 %v886, %v1079
        %1081 = vmatmul.f32.gmra.mxu0 %v863
        %v1082 = vpop.f32.mrf.mxu0
        %v1083 = vadd.f32 %v886, %v1082
        %1084 = vmatmul.f32.gmra.mxu0 %v864
        %v1085 = vpop.f32.mrf.mxu0
        %v1086 = vadd.f32 %v886, %v1085
        %1087 = vmatmul.f32.gmra.mxu0 %v865
        %v1088 = vpop.f32.mrf.mxu0
        %v1089 = vadd.f32 %v886, %v1088
        %1090 = vmatmul.f32.gmra.mxu0 %v866
        %v1091 = vpop.f32.mrf.mxu0
        %v1092 = vadd.f32 %v886, %v1091
        %1093 = vmatmul.f32.gmra.mxu0 %v867
        %v1094 = vpop.f32.mrf.mxu0
        %v1095 = vadd.f32 %v886, %v1094
        %1096 = vdwg.mxu0
        %1097 = vst [vmem:[%s309] sm:$0xff] %v906
        %1098 = vst [vmem:[%s309 + $0x8] sm:$0xff] %v909
        %1099 = vst [vmem:[%s309 + $0x10] sm:$0xff] %v912
        %1100 = vst [vmem:[%s309 + $0x18] sm:$0xff] %v915
        %1101 = vst [vmem:[%s309 + $0x20] sm:$0xff] %v918
        %1102 = vst [vmem:[%s309 + $0x28] sm:$0xff] %v921
        %1103 = vst [vmem:[%s309 + $0x30] sm:$0xff] %v924
        %1104 = vst [vmem:[%s309 + $0x38] sm:$0xff] %v927
        %1105 = vst [vmem:[%s309 + $0x40] sm:$0xff] %v930
        %1106 = vst [vmem:[%s309 + $0x48] sm:$0xff] %v933
        %1107 = vst [vmem:[%s309 + $0x50] sm:$0xff] %v936
        %1108 = vst [vmem:[%s309 + $0x58] sm:$0xff] %v939
        %1109 = vst [vmem:[%s309 + $0x60] sm:$0xff] %v942
        %1110 = vst [vmem:[%s309 + $0x68] sm:$0xff] %v945
        %1111 = vst [vmem:[%s309 + $0x70] sm:$0xff] %v948
        %1112 = vst [vmem:[%s309 + $0x78] sm:$0xff] %v951
        %1113 = vst [vmem:[%s309 + $0x80] sm:$0xff] %v954
        %1114 = vst [vmem:[%s309 + $0x88] sm:$0xff] %v957
        %1115 = vst [vmem:[%s309 + $0x90] sm:$0xff] %v960
        %1116 = vst [vmem:[%s309 + $0x98] sm:$0xff] %v963
        %1117 = vst [vmem:[%s309 + $0xa0] sm:$0xff] %v966
        %1118 = vst [vmem:[%s309 + $0xa8] sm:$0xff] %v969
        %1119 = vst [vmem:[%s309 + $0xb0] sm:$0xff] %v972
        %1120 = vst [vmem:[%s309 + $0xb8] sm:$0xff] %v975
        %1121 = vst [vmem:[%s309 + $0xc0] sm:$0xff] %v978
        %1122 = vst [vmem:[%s309 + $0xc8] sm:$0xff] %v981
        %1123 = vst [vmem:[%s309 + $0xd0] sm:$0xff] %v984
        %1124 = vst [vmem:[%s309 + $0xd8] sm:$0xff] %v987
        %1125 = vst [vmem:[%s309 + $0xe0] sm:$0xff] %v990
        %1126 = vst [vmem:[%s309 + $0xe8] sm:$0xff] %v993
        %1127 = vst [vmem:[%s309 + $0xf0] sm:$0xff] %v996
        %1128 = vst [vmem:[%s309 + $0xf8] sm:$0xff] %v999
        %1129 = vst [vmem:[%s309 + $0x100] sm:$0xff] %v1002
        %1130 = vst [vmem:[%s309 + $0x108] sm:$0xff] %v1005
        %1131 = vst [vmem:[%s309 + $0x110] sm:$0xff] %v1008
        %1132 = vst [vmem:[%s309 + $0x118] sm:$0xff] %v1011
        %1133 = vst [vmem:[%s309 + $0x120] sm:$0xff] %v1014
        %1134 = vst [vmem:[%s309 + $0x128] sm:$0xff] %v1017
        %1135 = vst [vmem:[%s309 + $0x130] sm:$0xff] %v1020
        %1136 = vst [vmem:[%s309 + $0x138] sm:$0xff] %v1023
        %1137 = vst [vmem:[%s309 + $0x140] sm:$0xff] %v1026
        %1138 = vst [vmem:[%s309 + $0x148] sm:$0xff] %v1029
        %1139 = vst [vmem:[%s309 + $0x150] sm:$0xff] %v1032
        %1140 = vst [vmem:[%s309 + $0x158] sm:$0xff] %v1035
        %1141 = vst [vmem:[%s309 + $0x160] sm:$0xff] %v1038
        %1142 = vst [vmem:[%s309 + $0x168] sm:$0xff] %v1041
        %1143 = vst [vmem:[%s309 + $0x170] sm:$0xff] %v1044
        %1144 = vst [vmem:[%s309 + $0x178] sm:$0xff] %v1047
        %1145 = vst [vmem:[%s309 + $0x180] sm:$0xff] %v1050
        %1146 = vst [vmem:[%s309 + $0x188] sm:$0xff] %v1053
        %1147 = vst [vmem:[%s309 + $0x190] sm:$0xff] %v1056
        %1148 = vst [vmem:[%s309 + $0x198] sm:$0xff] %v1059
        %1149 = vst [vmem:[%s309 + $0x1a0] sm:$0xff] %v1062
        %1150 = vst [vmem:[%s309 + $0x1a8] sm:$0xff] %v1065
        %1151 = vst [vmem:[%s309 + $0x1b0] sm:$0xff] %v1068
        %1152 = vst [vmem:[%s309 + $0x1b8] sm:$0xff] %v1071
        %1153 = vst [vmem:[%s309 + $0x1c0] sm:$0xff] %v1074
        %1154 = vst [vmem:[%s309 + $0x1c8] sm:$0xff] %v1077
        %1155 = vst [vmem:[%s309 + $0x1d0] sm:$0xff] %v1080
        %1156 = vst [vmem:[%s309 + $0x1d8] sm:$0xff] %v1083
        %1157 = vst [vmem:[%s309 + $0x1e0] sm:$0xff] %v1086
        %1158 = vst [vmem:[%s309 + $0x1e8] sm:$0xff] %v1089
        %1159 = vst [vmem:[%s309 + $0x1f0] sm:$0xff] %v1092
        %1160 = vst [vmem:[%s309 + $0x1f8] sm:$0xff] %v1095
        %v1161 = vpack.c.bf16 %v804, %v804
        %v1162 = vpack.c.bf16 %v805, %v805
        %v1163 = vpack.c.bf16 %v806, %v806
        %v1164 = vpack.c.bf16 %v807, %v807
        %v1165 = vpack.c.bf16 %v808, %v808
        %v1166 = vpack.c.bf16 %v809, %v809
        %v1167 = vpack.c.bf16 %v810, %v810
        %v1168 = vpack.c.bf16 %v811, %v811
        %v1169 = vpack.c.bf16 %v812, %v812
        %v1170 = vpack.c.bf16 %v813, %v813
        %v1171 = vpack.c.bf16 %v814, %v814
        %v1172 = vpack.c.bf16 %v815, %v815
        %v1173 = vpack.c.bf16 %v816, %v816
        %v1174 = vpack.c.bf16 %v817, %v817
        %v1175 = vpack.c.bf16 %v818, %v818
        %v1176 = vpack.c.bf16 %v819, %v819
        %v1177 = vpack.c.bf16 %v820, %v820
        %v1178 = vpack.c.bf16 %v821, %v821
        %v1179 = vpack.c.bf16 %v822, %v822
        %v1180 = vpack.c.bf16 %v823, %v823
        %v1181 = vpack.c.bf16 %v824, %v824
        %v1182 = vpack.c.bf16 %v825, %v825
        %v1183 = vpack.c.bf16 %v826, %v826
        %v1184 = vpack.c.bf16 %v827, %v827
        %v1185 = vpack.c.bf16 %v828, %v828
        %v1186 = vpack.c.bf16 %v829, %v829
        %v1187 = vpack.c.bf16 %v830, %v830
        %v1188 = vpack.c.bf16 %v831, %v831
        %v1189 = vpack.c.bf16 %v832, %v832
        %v1190 = vpack.c.bf16 %v833, %v833
        %v1191 = vpack.c.bf16 %v834, %v834
        %v1192 = vpack.c.bf16 %v835, %v835
        %v1193 = vpack.c.bf16 %v836, %v836
        %v1194 = vpack.c.bf16 %v837, %v837
        %v1195 = vpack.c.bf16 %v838, %v838
        %v1196 = vpack.c.bf16 %v839, %v839
        %v1197 = vpack.c.bf16 %v840, %v840
        %v1198 = vpack.c.bf16 %v841, %v841
        %v1199 = vpack.c.bf16 %v842, %v842
        %v1200 = vpack.c.bf16 %v843, %v843
        %v1201 = vpack.c.bf16 %v844, %v844
        %v1202 = vpack.c.bf16 %v845, %v845
        %v1203 = vpack.c.bf16 %v846, %v846
        %v1204 = vpack.c.bf16 %v847, %v847
        %v1205 = vpack.c.bf16 %v848, %v848
        %v1206 = vpack.c.bf16 %v849, %v849
        %v1207 = vpack.c.bf16 %v850, %v850
        %v1208 = vpack.c.bf16 %v851, %v851
        %v1209 = vpack.c.bf16 %v852, %v852
        %v1210 = vpack.c.bf16 %v853, %v853
        %v1211 = vpack.c.bf16 %v854, %v854
        %v1212 = vpack.c.bf16 %v855, %v855
        %v1213 = vpack.c.bf16 %v856, %v856
        %v1214 = vpack.c.bf16 %v857, %v857
        %v1215 = vpack.c.bf16 %v858, %v858
        %v1216 = vpack.c.bf16 %v859, %v859
        %v1217 = vpack.c.bf16 %v860, %v860
        %v1218 = vpack.c.bf16 %v861, %v861
        %v1219 = vpack.c.bf16 %v862, %v862
        %v1220 = vpack.c.bf16 %v863, %v863
        %v1221 = vpack.c.bf16 %v864, %v864
        %v1222 = vpack.c.bf16 %v865, %v865
        %v1223 = vpack.c.bf16 %v866, %v866
        %v1224 = vpack.c.bf16 %v867, %v867
        %1225 = vst [vmem:[%s328] sm:$0xf] %v1161
        %1226 = vst [vmem:[%s328 + $0x4] sm:$0xf] %v1162
        %1227 = vst [vmem:[%s328 + $0x8] sm:$0xf] %v1163
        %1228 = vst [vmem:[%s328 + $0xc] sm:$0xf] %v1164
        %1229 = vst [vmem:[%s328 + $0x10] sm:$0xf] %v1165
        %1230 = vst [vmem:[%s328 + $0x14] sm:$0xf] %v1166
        %1231 = vst [vmem:[%s328 + $0x18] sm:$0xf] %v1167
        %1232 = vst [vmem:[%s328 + $0x1c] sm:$0xf] %v1168
        %1233 = vst [vmem:[%s328 + $0x20] sm:$0xf] %v1169
        %1234 = vst [vmem:[%s328 + $0x24] sm:$0xf] %v1170
        %1235 = vst [vmem:[%s328 + $0x28] sm:$0xf] %v1171
        %1236 = vst [vmem:[%s328 + $0x2c] sm:$0xf] %v1172
        %1237 = vst [vmem:[%s328 + $0x30] sm:$0xf] %v1173
        %1238 = vst [vmem:[%s328 + $0x34] sm:$0xf] %v1174
        %1239 = vst [vmem:[%s328 + $0x38] sm:$0xf] %v1175
        %1240 = vst [vmem:[%s328 + $0x3c] sm:$0xf] %v1176
        %1241 = vst [vmem:[%s328 + $0x40] sm:$0xf] %v1177
        %1242 = vst [vmem:[%s328 + $0x44] sm:$0xf] %v1178
        %1243 = vst [vmem:[%s328 + $0x48] sm:$0xf] %v1179
        %1244 = vst [vmem:[%s328 + $0x4c] sm:$0xf] %v1180
        %1245 = vst [vmem:[%s328 + $0x50] sm:$0xf] %v1181
        %1246 = vst [vmem:[%s328 + $0x54] sm:$0xf] %v1182
        %1247 = vst [vmem:[%s328 + $0x58] sm:$0xf] %v1183
        %1248 = vst [vmem:[%s328 + $0x5c] sm:$0xf] %v1184
        %1249 = vst [vmem:[%s328 + $0x60] sm:$0xf] %v1185
        %1250 = vst [vmem:[%s328 + $0x64] sm:$0xf] %v1186
        %1251 = vst [vmem:[%s328 + $0x68] sm:$0xf] %v1187
        %1252 = vst [vmem:[%s328 + $0x6c] sm:$0xf] %v1188
        %1253 = vst [vmem:[%s328 + $0x70] sm:$0xf] %v1189
        %1254 = vst [vmem:[%s328 + $0x74] sm:$0xf] %v1190
        %1255 = vst [vmem:[%s328 + $0x78] sm:$0xf] %v1191
        %1256 = vst [vmem:[%s328 + $0x7c] sm:$0xf] %v1192
        %1257 = vst [vmem:[%s328 + $0x80] sm:$0xf] %v1193
        %1258 = vst [vmem:[%s328 + $0x84] sm:$0xf] %v1194
        %1259 = vst [vmem:[%s328 + $0x88] sm:$0xf] %v1195
        %1260 = vst [vmem:[%s328 + $0x8c] sm:$0xf] %v1196
        %1261 = vst [vmem:[%s328 + $0x90] sm:$0xf] %v1197
        %1262 = vst [vmem:[%s328 + $0x94] sm:$0xf] %v1198
        %1263 = vst [vmem:[%s328 + $0x98] sm:$0xf] %v1199
        %1264 = vst [vmem:[%s328 + $0x9c] sm:$0xf] %v1200
        %1265 = vst [vmem:[%s328 + $0xa0] sm:$0xf] %v1201
        %1266 = vst [vmem:[%s328 + $0xa4] sm:$0xf] %v1202
        %1267 = vst [vmem:[%s328 + $0xa8] sm:$0xf] %v1203
        %1268 = vst [vmem:[%s328 + $0xac] sm:$0xf] %v1204
        %1269 = vst [vmem:[%s328 + $0xb0] sm:$0xf] %v1205
        %1270 = vst [vmem:[%s328 + $0xb4] sm:$0xf] %v1206
        %1271 = vst [vmem:[%s328 + $0xb8] sm:$0xf] %v1207
        %1272 = vst [vmem:[%s328 + $0xbc] sm:$0xf] %v1208
        %1273 = vst [vmem:[%s328 + $0xc0] sm:$0xf] %v1209
        %1274 = vst [vmem:[%s328 + $0xc4] sm:$0xf] %v1210
        %1275 = vst [vmem:[%s328 + $0xc8] sm:$0xf] %v1211
        %1276 = vst [vmem:[%s328 + $0xcc] sm:$0xf] %v1212
        %1277 = vst [vmem:[%s328 + $0xd0] sm:$0xf] %v1213
        %1278 = vst [vmem:[%s328 + $0xd4] sm:$0xf] %v1214
        %1279 = vst [vmem:[%s328 + $0xd8] sm:$0xf] %v1215
        %1280 = vst [vmem:[%s328 + $0xdc] sm:$0xf] %v1216
        %1281 = vst [vmem:[%s328 + $0xe0] sm:$0xf] %v1217
        %1282 = vst [vmem:[%s328 + $0xe4] sm:$0xf] %v1218
        %1283 = vst [vmem:[%s328 + $0xe8] sm:$0xf] %v1219
        %1284 = vst [vmem:[%s328 + $0xec] sm:$0xf] %v1220
        %1285 = vst [vmem:[%s328 + $0xf0] sm:$0xf] %v1221
        %1286 = vst [vmem:[%s328 + $0xf4] sm:$0xf] %v1222
        %1287 = vst [vmem:[%s328 + $0xf8] sm:$0xf] %v1223
        %1288 = vst [vmem:[%s328 + $0xfc] sm:$0xf] %v1224
        %s1289 = sand.u32 %s142, 1
        %s1290 = scalar_lea.sflag [#allocation4], %s1289
        %s1291 = sand.u32 %s142, 1
        %s1292 = smul.addr %s1291, 512
        %s1293 = scalar_lea.vmem [#allocation10], %s1292
        %s1294 = smul.u32 64, %s24
        %p1295 = scmp.lt.s32.totalorder %s1294, 127
        %s1296 = scalar_select %p1295, %s1294, 127
        %s1297 = smul.addr %s1296, 4
        %s1298 = scalar_lea.vmem %s6, %s1297
        // Predicated region
        $region57: #{gnn_decoder_forward.2} parent=39 // pred_check
          %p1299 = pneg %p152
        $region58: #{gnn_decoder_forward.2} parent=39 // pred_check_branch
          %1301 = sbr.rel (%p1299) target = $region60
        $region59: #{gnn_decoder_forward.2} parent=39 // pred_region
          %s1302 = smul.u32 64, %s24
          %1304 = vsyncadd %s1290, 0
          %s1305 = smul.addr %s1302, 8
          %s1306 = scalar_lea.hbm %s5, %s1305
          %s1307 = sshll.u32 %s1293, 4
          %s1308 = int_to_ptr.vmem [resolvable:$true] %s1307
          %s1309 = sshll.u32 %s1306, 4
          %s1310 = int_to_ptr.hbm [resolvable:$true] %s1309
          %1315 = dma.vmem_to_hbm [thread:$0]  %s1308, 8192, %s1310, %s1290, 128, 128, 8
        $region60: #{gnn_decoder_forward.2} parent=39 // pred_fallthru
          _
        // Predicated region
        $region61: #{gnn_decoder_forward.2} parent=39 // pred_check
          %p1316 = pneg %p178
        $region62: #{gnn_decoder_forward.2} parent=39 // pred_check_branch
          %1318 = sbr.rel (%p1316) target = $region64
        $region63: #{gnn_decoder_forward.2} parent=39 // pred_region
          %s1319 = smul.u32 64, %s24
        $region64: #{gnn_decoder_forward.2} parent=39 // pred_fallthru
          _
      $region40: #{gnn_decoder_forward.2} parent=5 // pred_fallthru
        _
      %p1320 = scmp.le.s32.totalorder 2, %s19
      // Predicated region
      $region65: #{gnn_decoder_forward.2} parent=5 // pred_check
        %p1321 = pneg %p1320
      $region66: #{gnn_decoder_forward.2} parent=5 // pred_check_branch
        %1323 = sbr.rel (%p1321) target = $region68
      $region67: #{gnn_decoder_forward.2} parent=5 // pred_region
        %s1324 = ssub.s32 %s19, 2
        // Predicated region
        $region69: #{gnn_decoder_forward.2} parent=67 // pred_check
          %p1325 = pneg %p158
        $region70: #{gnn_decoder_forward.2} parent=67 // pred_check_branch
          %1327 = sbr.rel (%p1325) target = $region72
        $region71: #{gnn_decoder_forward.2} parent=67 // pred_region
          %s1328 = sand.u32 %s143, 1
          %s1329 = scalar_lea.sflag [#allocation4], %s1328
          %s1330 = sand.u32 %s143, 1
          %s1331 = smul.addr %s1330, 512
          %s1332 = scalar_lea.vmem [#allocation10], %s1331
          %1334 = dma.done %s1329, 8192
        $region72: #{gnn_decoder_forward.2} parent=67 // pred_fallthru
          _
        // Predicated region
        $region73: #{gnn_decoder_forward.2} parent=67 // pred_check
          %p1335 = pneg %p184
        $region74: #{gnn_decoder_forward.2} parent=67 // pred_check_branch
          %1337 = sbr.rel (%p1335) target = $region76
        $region75: #{gnn_decoder_forward.2} parent=67 // pred_region
          %s1338 = smul.u32 64, %s25
          %p1339 = scmp.lt.s32.totalorder %s1338, 127
          %s1340 = scalar_select %p1339, %s1338, 127
          %s1341 = smul.addr %s1340, 4
          %s1342 = scalar_lea.vmem %s6, %s1341
        $region76: #{gnn_decoder_forward.2} parent=67 // pred_fallthru
          _
      $region68: #{gnn_decoder_forward.2} parent=5 // pred_fallthru
        _
    $region6: #{gnn_decoder_forward.2} parent=1 // loop_footer
      %s23 = sadd.s32 1, %s19
    $region7: #{gnn_decoder_forward.2} parent=1 // loop_footer_branch
      %18 = sbr.rel target = $region3
    $region8: #{gnn_decoder_forward.2} parent=1 // loop_exit
      _
    %1343 = vsyncpa [#allocation3], 1
    %s1344 = scalar_lea.sflag [#allocation3], 1
    %1345 = vsyncpa %s1344, 1
    %1346 = vsyncpa [#allocation6], 1
    %1347 = vsyncpa [#allocation9], 1
    %1348 = vsyncpa [#allocation4], 1
    %s1349 = scalar_lea.sflag [#allocation4], 1
    %1350 = vsyncpa %s1349, 1

// kernel: gnn_decoder_forward.3
$region0: #{gnn_decoder_forward.3}
  #allocation0 [shape = 'u32[]', space=smem, size = 0x4, offset = 0x4, fixed_abs, tag = 'smem constant byte address 0x4 - core index']
  #allocation1 [shape = 'u32[72,128]{1,0:T(1,128)}', space=vmem, size = 0x9000, scoped, tag = 'internal scratch']
  %s0 = inlined_call_operand.vmem [shape: bf16[1024,128], index: 0, kind: input, shape index: {}, may-alias: {0,1}]
  %s1 = inlined_call_operand.vmem [shape: bf16[1024,128], index: 1, kind: input, shape index: {}, may-alias: {0,1}]
  %s2 = inlined_call_operand.hbm [shape: bf16[1024,1024], index: 2, kind: output, shape index: {}]
  %s3 = sld [smem:[#allocation0]]
  $region41: #{gnn_decoder_forward.3} parent=0
    _
  %s5 = ssub.s32 1, %s3
  %s6 = scalar_select 0, %s5, %s3
  $region1: #{gnn_decoder_forward.3} parent=0
    #allocation2 [shape = 'u8[1048576]{0}', space=vmem, size = 0x100000, scoped, tag = 'output window, operand 0']
    #allocation3 [shape = 's32[2]{0}', space=sflag, size = 0x8, scoped, tag = 'scoped memory for gnn_decoder_forward.3']
    %7 = vsyncpa [#allocation3], 0
    %s8 = scalar_lea.sflag [#allocation3], 1
    %9 = vsyncpa %s8, 0
    loop: start=0, step=1, limit=6
    $region2: #{gnn_decoder_forward.3} parent=1 // loop_pre_header
      _
    $region3: #{gnn_decoder_forward.3} parent=1 // loop_header
      %s11 = sphi 0, %s15
      %p12 = scmp.ge.s32.totalorder %s11, 6
      %s18 = sphi 0, %s30
      %s19 = sphi 0, %s26
      %s20 = sphi 0, %s18
      %s21 = sphi 0, %s19
      %s22 = sphi 0, %s20
      %s23 = sphi 0, %s21
      %s33 = sphi 0, %s35
      %s36 = sphi 0, %s33
      %s37 = sphi 0, %s36
      %s53 = sphi 0, %s37
      %s59 = sphi 0, %s61
      %s62 = sphi 0, %s59
      %s63 = sphi 0, %s62
      %s79 = sphi 0, %s63
      %s87 = sphi 0, %s89
      %s90 = sphi 0, %s87
      %s91 = sphi 0, %s90
      %s107 = sphi 0, %s91
    $region4: #{gnn_decoder_forward.3} parent=1 // loop_header_branch
      %14 = sbr.rel (%p12) target = $region8
    $region5: #{gnn_decoder_forward.3} parent=1 // loop_body
      %s16 = ssub.s32 %s11, 1
      %s17 = ssub.s32 %s11, 2
      %s24 = sadd.s32 1, %s19
      %p25 = scmp.ge.s32.totalorder %s24, 2
      %s26 = scalar_select %p25, 0, %s24
      %s27 = sadd.s32 1, %s18
      %s28 = scalar_select %p25, %s27, %s18
      %p29 = scmp.ge.s32.totalorder %s28, 2
      %s30 = scalar_select %p29, 0, %s28
      %s31 = ssub.s32 %s18, %s30
      %p32 = scmp.eq.s32.totalorder %s31, 0
      %s34 = sadd.s32 %s33, 1
      %s35 = scalar_select %p32, %s33, %s34
      %p38 = pneg %p32
      %p39 = scmp.eq.s32.totalorder %s11, 3
      %p40 = por %p38, %p39
      %p41 = scmp.ne.s32.totalorder %s33, %s36
      %p42 = scmp.eq.s32.totalorder %s11, 0
      %p43 = por %p41, %p42
      %p44 = scmp.ne.s32.totalorder %s33, %s36
      %p45 = scmp.eq.s32.totalorder %s16, 3
      %p46 = por %p44, %p45
      %p47 = scmp.ne.s32.totalorder %s36, %s37
      %p48 = scmp.eq.s32.totalorder %s16, 0
      %p49 = por %p47, %p48
      %p50 = scmp.ne.s32.totalorder %s36, %s37
      %p51 = scmp.eq.s32.totalorder %s17, 3
      %p52 = por %p50, %p51
      %p54 = scmp.ne.s32.totalorder %s37, %s53
      %p55 = scmp.eq.s32.totalorder %s17, 0
      %p56 = por %p54, %p55
      %s57 = ssub.s32 %s19, %s26
      %p58 = scmp.eq.s32.totalorder %s57, 0
      %s60 = sadd.s32 %s59, 1
      %s61 = scalar_select %p58, %s59, %s60
      %p64 = pneg %p58
      %p65 = scmp.eq.s32.totalorder %s11, 3
      %p66 = por %p64, %p65
      %p67 = scmp.ne.s32.totalorder %s59, %s62
      %p68 = scmp.eq.s32.totalorder %s11, 0
      %p69 = por %p67, %p68
      %p70 = scmp.ne.s32.totalorder %s59, %s62
      %p71 = scmp.eq.s32.totalorder %s16, 3
      %p72 = por %p70, %p71
      %p73 = scmp.ne.s32.totalorder %s62, %s63
      %p74 = scmp.eq.s32.totalorder %s16, 0
      %p75 = por %p73, %p74
      %p76 = scmp.ne.s32.totalorder %s62, %s63
      %p77 = scmp.eq.s32.totalorder %s17, 3
      %p78 = por %p76, %p77
      %p80 = scmp.ne.s32.totalorder %s63, %s79
      %p81 = scmp.eq.s32.totalorder %s17, 0
      %p82 = por %p80, %p81
      %s83 = ssub.s32 %s18, %s30
      %s84 = ssub.s32 %s19, %s26
      %s85 = sor.u32 %s83, %s84
      %p86 = scmp.eq.s32.totalorder %s85, 0
      %s88 = sadd.s32 %s87, 1
      %s89 = scalar_select %p86, %s87, %s88
      %p92 = pneg %p86
      %p93 = scmp.eq.s32.totalorder %s11, 3
      %p94 = por %p92, %p93
      %p95 = scmp.ne.s32.totalorder %s87, %s90
      %p96 = scmp.eq.s32.totalorder %s11, 0
      %p97 = por %p95, %p96
      %p98 = scmp.ne.s32.totalorder %s87, %s90
      %p99 = scmp.eq.s32.totalorder %s16, 3
      %p100 = por %p98, %p99
      %p101 = scmp.ne.s32.totalorder %s90, %s91
      %p102 = scmp.eq.s32.totalorder %s16, 0
      %p103 = por %p101, %p102
      %p104 = scmp.ne.s32.totalorder %s90, %s91
      %p105 = scmp.eq.s32.totalorder %s17, 3
      %p106 = por %p104, %p105
      %p108 = scmp.ne.s32.totalorder %s91, %s107
      %p109 = scmp.eq.s32.totalorder %s17, 0
      %p110 = por %p108, %p109
      %p111 = scmp.le.s32.totalorder 1, %s11
      %p112 = scmp.lt.s32.totalorder %s11, 5
      %p113 = pnand %p111, %p112
      %p114 = pneg %p113
      // Predicated region
      $region9: #{gnn_decoder_forward.3} parent=5 // pred_check
        _
      $region10: #{gnn_decoder_forward.3} parent=5 // pred_check_branch
        %116 = sbr.rel (%p113) target = $region12
      $region11: #{gnn_decoder_forward.3} parent=5 // pred_region
        %s117 = ssub.s32 %s11, 1
      $region12: #{gnn_decoder_forward.3} parent=5 // pred_fallthru
        _
      %p118 = scmp.lt.s32.totalorder %s11, 4
      // Predicated region
      $region13: #{gnn_decoder_forward.3} parent=5 // pred_check
        %p119 = pneg %p118
      $region14: #{gnn_decoder_forward.3} parent=5 // pred_check_branch
        %121 = sbr.rel (%p119) target = $region16
      $region15: #{gnn_decoder_forward.3} parent=5 // pred_region
        // Predicated region
        $region17: #{gnn_decoder_forward.3} parent=15 // pred_check
          %p122 = pneg %p43
        $region18: #{gnn_decoder_forward.3} parent=15 // pred_check_branch
          %124 = sbr.rel (%p122) target = $region20
        $region19: #{gnn_decoder_forward.3} parent=15 // pred_region
          %s125 = smul.u32 64, %s18
          %p126 = scmp.lt.s32.totalorder %s125, 127
          %s127 = scalar_select %p126, %s125, 127
          %s128 = smul.addr %s127, 4
          %s129 = scalar_lea.vmem %s0, %s128
          %s130 = smul.u32 64, %s18
        $region20: #{gnn_decoder_forward.3} parent=15 // pred_fallthru
          _
        // Predicated region
        $region21: #{gnn_decoder_forward.3} parent=15 // pred_check
          %p131 = pneg %p69
        $region22: #{gnn_decoder_forward.3} parent=15 // pred_check_branch
          %133 = sbr.rel (%p131) target = $region24
        $region23: #{gnn_decoder_forward.3} parent=15 // pred_region
          %s134 = smul.u32 64, %s19
          %p135 = scmp.lt.s32.totalorder %s134, 127
          %s136 = scalar_select %p135, %s134, 127
          %s137 = smul.addr %s136, 4
          %s138 = scalar_lea.vmem %s1, %s137
          %s139 = smul.u32 64, %s19
        $region24: #{gnn_decoder_forward.3} parent=15 // pred_fallthru
          _
      $region16: #{gnn_decoder_forward.3} parent=5 // pred_fallthru
        _
      %p140 = scmp.le.s32.totalorder 1, %s11
      %p141 = scmp.lt.s32.totalorder %s11, 5
      %p142 = pnand %p140, %p141
      %p143 = pneg %p142
      // Predicated region
      $region25: #{gnn_decoder_forward.3} parent=5 // pred_check
        _
      $region26: #{gnn_decoder_forward.3} parent=5 // pred_check_branch
        %145 = sbr.rel (%p142) target = $region28
      $region27: #{gnn_decoder_forward.3} parent=5 // pred_region
        %s146 = ssub.s32 %s11, 1
        %s147 = smul.u32 64, %s20
        %p148 = scmp.lt.s32.totalorder %s147, 127
        %s149 = scalar_select %p148, %s147, 127
        %s150 = smul.addr %s149, 4
        %s151 = scalar_lea.vmem %s0, %s150
        %p152 = pneg %p49
        %p153 = pneg %p46
        %s154 = smul.u32 64, %s21
        %p155 = scmp.lt.s32.totalorder %s154, 127
        %s156 = scalar_select %p155, %s154, 127
        %s157 = smul.addr %s156, 4
        %s158 = scalar_lea.vmem %s1, %s157
        %p159 = pneg %p75
        %p160 = pneg %p72
        %p161 = pneg %p103
        %p162 = pneg %p100
        %s163 = sand.u32 %s90, 1
        %s164 = scalar_lea.sflag [#allocation3], %s163
        %s165 = sand.u32 %s90, 1
        %s166 = smul.addr %s165, 1024
        %s167 = scalar_lea.vmem [#allocation2], %s166
        %s168 = smul.u32 64, %s20
        %p169 = scmp.lt.s32.totalorder %s168, 127
        %s170 = scalar_select %p169, %s168, 127
        %s171 = smul.addr %s170, 4
        %s172 = scalar_lea.vmem %s0, %s171
        %s173 = smul.u32 64, %s20
        %s174 = smul.u32 64, %s21
        %p175 = scmp.lt.s32.totalorder %s174, 127
        %s176 = scalar_select %p175, %s174, 127
        %s177 = smul.addr %s176, 4
        %s178 = scalar_lea.vmem %s1, %s177
        %s179 = smul.u32 64, %s21
        %s180 = smul.u32 64, %s20
        %s181 = smul.u32 4, %s21
        %v182 = vld [vmem:[%s172] sm:$0xf]
        %v183 = vld [vmem:[%s172 + $0x4] sm:$0xf]
        %v184 = vld [vmem:[%s172 + $0x8] sm:$0xf]
        %v185 = vld [vmem:[%s172 + $0xc] sm:$0xf]
        %v186 = vld [vmem:[%s172 + $0x10] sm:$0xf]
        %v187 = vld [vmem:[%s172 + $0x14] sm:$0xf]
        %v188 = vld [vmem:[%s172 + $0x18] sm:$0xf]
        %v189 = vld [vmem:[%s172 + $0x1c] sm:$0xf]
        %v190 = vld [vmem:[%s172 + $0x20] sm:$0xf]
        %v191 = vld [vmem:[%s172 + $0x24] sm:$0xf]
        %v192 = vld [vmem:[%s172 + $0x28] sm:$0xf]
        %v193 = vld [vmem:[%s172 + $0x2c] sm:$0xf]
        %v194 = vld [vmem:[%s172 + $0x30] sm:$0xf]
        %v195 = vld [vmem:[%s172 + $0x34] sm:$0xf]
        %v196 = vld [vmem:[%s172 + $0x38] sm:$0xf]
        %v197 = vld [vmem:[%s172 + $0x3c] sm:$0xf]
        %v198 = vld [vmem:[%s172 + $0x40] sm:$0xf]
        %v199 = vld [vmem:[%s172 + $0x44] sm:$0xf]
        %v200 = vld [vmem:[%s172 + $0x48] sm:$0xf]
        %v201 = vld [vmem:[%s172 + $0x4c] sm:$0xf]
        %v202 = vld [vmem:[%s172 + $0x50] sm:$0xf]
        %v203 = vld [vmem:[%s172 + $0x54] sm:$0xf]
        %v204 = vld [vmem:[%s172 + $0x58] sm:$0xf]
        %v205 = vld [vmem:[%s172 + $0x5c] sm:$0xf]
        %v206 = vld [vmem:[%s172 + $0x60] sm:$0xf]
        %v207 = vld [vmem:[%s172 + $0x64] sm:$0xf]
        %v208 = vld [vmem:[%s172 + $0x68] sm:$0xf]
        %v209 = vld [vmem:[%s172 + $0x6c] sm:$0xf]
        %v210 = vld [vmem:[%s172 + $0x70] sm:$0xf]
        %v211 = vld [vmem:[%s172 + $0x74] sm:$0xf]
        %v212 = vld [vmem:[%s172 + $0x78] sm:$0xf]
        %v213 = vld [vmem:[%s172 + $0x7c] sm:$0xf]
        %v214 = vld [vmem:[%s172 + $0x80] sm:$0xf]
        %v215 = vld [vmem:[%s172 + $0x84] sm:$0xf]
        %v216 = vld [vmem:[%s172 + $0x88] sm:$0xf]
        %v217 = vld [vmem:[%s172 + $0x8c] sm:$0xf]
        %v218 = vld [vmem:[%s172 + $0x90] sm:$0xf]
        %v219 = vld [vmem:[%s172 + $0x94] sm:$0xf]
        %v220 = vld [vmem:[%s172 + $0x98] sm:$0xf]
        %v221 = vld [vmem:[%s172 + $0x9c] sm:$0xf]
        %v222 = vld [vmem:[%s172 + $0xa0] sm:$0xf]
        %v223 = vld [vmem:[%s172 + $0xa4] sm:$0xf]
        %v224 = vld [vmem:[%s172 + $0xa8] sm:$0xf]
        %v225 = vld [vmem:[%s172 + $0xac] sm:$0xf]
        %v226 = vld [vmem:[%s172 + $0xb0] sm:$0xf]
        %v227 = vld [vmem:[%s172 + $0xb4] sm:$0xf]
        %v228 = vld [vmem:[%s172 + $0xb8] sm:$0xf]
        %v229 = vld [vmem:[%s172 + $0xbc] sm:$0xf]
        %v230 = vld [vmem:[%s172 + $0xc0] sm:$0xf]
        %v231 = vld [vmem:[%s172 + $0xc4] sm:$0xf]
        %v232 = vld [vmem:[%s172 + $0xc8] sm:$0xf]
        %v233 = vld [vmem:[%s172 + $0xcc] sm:$0xf]
        %v234 = vld [vmem:[%s172 + $0xd0] sm:$0xf]
        %v235 = vld [vmem:[%s172 + $0xd4] sm:$0xf]
        %v236 = vld [vmem:[%s172 + $0xd8] sm:$0xf]
        %v237 = vld [vmem:[%s172 + $0xdc] sm:$0xf]
        %v238 = vld [vmem:[%s172 + $0xe0] sm:$0xf]
        %v239 = vld [vmem:[%s172 + $0xe4] sm:$0xf]
        %v240 = vld [vmem:[%s172 + $0xe8] sm:$0xf]
        %v241 = vld [vmem:[%s172 + $0xec] sm:$0xf]
        %v242 = vld [vmem:[%s172 + $0xf0] sm:$0xf]
        %v243 = vld [vmem:[%s172 + $0xf4] sm:$0xf]
        %v244 = vld [vmem:[%s172 + $0xf8] sm:$0xf]
        %v245 = vld [vmem:[%s172 + $0xfc] sm:$0xf]
        %v246 = vld [vmem:[%s178] sm:$0xf]
        %v247 = vld [vmem:[%s178 + $0x4] sm:$0xf]
        %v248 = vld [vmem:[%s178 + $0x8] sm:$0xf]
        %v249 = vld [vmem:[%s178 + $0xc] sm:$0xf]
        %v250 = vld [vmem:[%s178 + $0x10] sm:$0xf]
        %v251 = vld [vmem:[%s178 + $0x14] sm:$0xf]
        %v252 = vld [vmem:[%s178 + $0x18] sm:$0xf]
        %v253 = vld [vmem:[%s178 + $0x1c] sm:$0xf]
        %v254 = vld [vmem:[%s178 + $0x20] sm:$0xf]
        %v255 = vld [vmem:[%s178 + $0x24] sm:$0xf]
        %v256 = vld [vmem:[%s178 + $0x28] sm:$0xf]
        %v257 = vld [vmem:[%s178 + $0x2c] sm:$0xf]
        %v258 = vld [vmem:[%s178 + $0x30] sm:$0xf]
        %v259 = vld [vmem:[%s178 + $0x34] sm:$0xf]
        %v260 = vld [vmem:[%s178 + $0x38] sm:$0xf]
        %v261 = vld [vmem:[%s178 + $0x3c] sm:$0xf]
        %v262 = vld [vmem:[%s178 + $0x40] sm:$0xf]
        %v263 = vld [vmem:[%s178 + $0x44] sm:$0xf]
        %v264 = vld [vmem:[%s178 + $0x48] sm:$0xf]
        %v265 = vld [vmem:[%s178 + $0x4c] sm:$0xf]
        %v266 = vld [vmem:[%s178 + $0x50] sm:$0xf]
        %v267 = vld [vmem:[%s178 + $0x54] sm:$0xf]
        %v268 = vld [vmem:[%s178 + $0x58] sm:$0xf]
        %v269 = vld [vmem:[%s178 + $0x5c] sm:$0xf]
        %v270 = vld [vmem:[%s178 + $0x60] sm:$0xf]
        %v271 = vld [vmem:[%s178 + $0x64] sm:$0xf]
        %v272 = vld [vmem:[%s178 + $0x68] sm:$0xf]
        %v273 = vld [vmem:[%s178 + $0x6c] sm:$0xf]
        %v274 = vld [vmem:[%s178 + $0x70] sm:$0xf]
        %v275 = vld [vmem:[%s178 + $0x74] sm:$0xf]
        %v276 = vld [vmem:[%s178 + $0x78] sm:$0xf]
        %v277 = vld [vmem:[%s178 + $0x7c] sm:$0xf]
        %v278 = vld [vmem:[%s178 + $0x80] sm:$0xf]
        %v279 = vld [vmem:[%s178 + $0x84] sm:$0xf]
        %v280 = vld [vmem:[%s178 + $0x88] sm:$0xf]
        %v281 = vld [vmem:[%s178 + $0x8c] sm:$0xf]
        %v282 = vld [vmem:[%s178 + $0x90] sm:$0xf]
        %v283 = vld [vmem:[%s178 + $0x94] sm:$0xf]
        %v284 = vld [vmem:[%s178 + $0x98] sm:$0xf]
        %v285 = vld [vmem:[%s178 + $0x9c] sm:$0xf]
        %v286 = vld [vmem:[%s178 + $0xa0] sm:$0xf]
        %v287 = vld [vmem:[%s178 + $0xa4] sm:$0xf]
        %v288 = vld [vmem:[%s178 + $0xa8] sm:$0xf]
        %v289 = vld [vmem:[%s178 + $0xac] sm:$0xf]
        %v290 = vld [vmem:[%s178 + $0xb0] sm:$0xf]
        %v291 = vld [vmem:[%s178 + $0xb4] sm:$0xf]
        %v292 = vld [vmem:[%s178 + $0xb8] sm:$0xf]
        %v293 = vld [vmem:[%s178 + $0xbc] sm:$0xf]
        %v294 = vld [vmem:[%s178 + $0xc0] sm:$0xf]
        %v295 = vld [vmem:[%s178 + $0xc4] sm:$0xf]
        %v296 = vld [vmem:[%s178 + $0xc8] sm:$0xf]
        %v297 = vld [vmem:[%s178 + $0xcc] sm:$0xf]
        %v298 = vld [vmem:[%s178 + $0xd0] sm:$0xf]
        %v299 = vld [vmem:[%s178 + $0xd4] sm:$0xf]
        %v300 = vld [vmem:[%s178 + $0xd8] sm:$0xf]
        %v301 = vld [vmem:[%s178 + $0xdc] sm:$0xf]
        %v302 = vld [vmem:[%s178 + $0xe0] sm:$0xf]
        %v303 = vld [vmem:[%s178 + $0xe4] sm:$0xf]
        %v304 = vld [vmem:[%s178 + $0xe8] sm:$0xf]
        %v305 = vld [vmem:[%s178 + $0xec] sm:$0xf]
        %v306 = vld [vmem:[%s178 + $0xf0] sm:$0xf]
        %v307 = vld [vmem:[%s178 + $0xf4] sm:$0xf]
        %v308 = vld [vmem:[%s178 + $0xf8] sm:$0xf]
        %v309 = vld [vmem:[%s178 + $0xfc] sm:$0xf]
        %v374 = vunpack.c.l.b16 %v182
        %v375 = vunpack.c.l.b16 %v183
        %v376 = vunpack.c.l.b16 %v184
        %v377 = vunpack.c.l.b16 %v185
        %v378 = vunpack.c.l.b16 %v186
        %v379 = vunpack.c.l.b16 %v187
        %v380 = vunpack.c.l.b16 %v188
        %v381 = vunpack.c.l.b16 %v189
        %v382 = vunpack.c.l.b16 %v190
        %v383 = vunpack.c.l.b16 %v191
        %v384 = vunpack.c.l.b16 %v192
        %v385 = vunpack.c.l.b16 %v193
        %v386 = vunpack.c.l.b16 %v194
        %v387 = vunpack.c.l.b16 %v195
        %v388 = vunpack.c.l.b16 %v196
        %v389 = vunpack.c.l.b16 %v197
        %v390 = vunpack.c.l.b16 %v198
        %v391 = vunpack.c.l.b16 %v199
        %v392 = vunpack.c.l.b16 %v200
        %v393 = vunpack.c.l.b16 %v201
        %v394 = vunpack.c.l.b16 %v202
        %v395 = vunpack.c.l.b16 %v203
        %v396 = vunpack.c.l.b16 %v204
        %v397 = vunpack.c.l.b16 %v205
        %v398 = vunpack.c.l.b16 %v206
        %v399 = vunpack.c.l.b16 %v207
        %v400 = vunpack.c.l.b16 %v208
        %v401 = vunpack.c.l.b16 %v209
        %v402 = vunpack.c.l.b16 %v210
        %v403 = vunpack.c.l.b16 %v211
        %v404 = vunpack.c.l.b16 %v212
        %v405 = vunpack.c.l.b16 %v213
        %v406 = vunpack.c.l.b16 %v214
        %v407 = vunpack.c.l.b16 %v215
        %v408 = vunpack.c.l.b16 %v216
        %v409 = vunpack.c.l.b16 %v217
        %v410 = vunpack.c.l.b16 %v218
        %v411 = vunpack.c.l.b16 %v219
        %v412 = vunpack.c.l.b16 %v220
        %v413 = vunpack.c.l.b16 %v221
        %v414 = vunpack.c.l.b16 %v222
        %v415 = vunpack.c.l.b16 %v223
        %v416 = vunpack.c.l.b16 %v224
        %v417 = vunpack.c.l.b16 %v225
        %v418 = vunpack.c.l.b16 %v226
        %v419 = vunpack.c.l.b16 %v227
        %v420 = vunpack.c.l.b16 %v228
        %v421 = vunpack.c.l.b16 %v229
        %v422 = vunpack.c.l.b16 %v230
        %v423 = vunpack.c.l.b16 %v231
        %v424 = vunpack.c.l.b16 %v232
        %v425 = vunpack.c.l.b16 %v233
        %v426 = vunpack.c.l.b16 %v234
        %v427 = vunpack.c.l.b16 %v235
        %v428 = vunpack.c.l.b16 %v236
        %v429 = vunpack.c.l.b16 %v237
        %v430 = vunpack.c.l.b16 %v238
        %v431 = vunpack.c.l.b16 %v239
        %v432 = vunpack.c.l.b16 %v240
        %v433 = vunpack.c.l.b16 %v241
        %v434 = vunpack.c.l.b16 %v242
        %v435 = vunpack.c.l.b16 %v243
        %v436 = vunpack.c.l.b16 %v244
        %v437 = vunpack.c.l.b16 %v245
        %v438 = vpack.c.b16 %v375, %v374
        %v439 = vpack.c.b16 %v377, %v376
        %v440 = vpack.c.b16 %v379, %v378
        %v441 = vpack.c.b16 %v381, %v380
        %v442 = vpack.c.b16 %v383, %v382
        %v443 = vpack.c.b16 %v385, %v384
        %v444 = vpack.c.b16 %v387, %v386
        %v445 = vpack.c.b16 %v389, %v388
        %v446 = vpack.c.b16 %v391, %v390
        %v447 = vpack.c.b16 %v393, %v392
        %v448 = vpack.c.b16 %v395, %v394
        %v449 = vpack.c.b16 %v397, %v396
        %v450 = vpack.c.b16 %v399, %v398
        %v451 = vpack.c.b16 %v401, %v400
        %v452 = vpack.c.b16 %v403, %v402
        %v453 = vpack.c.b16 %v405, %v404
        %v454 = vpack.c.b16 %v407, %v406
        %v455 = vpack.c.b16 %v409, %v408
        %v456 = vpack.c.b16 %v411, %v410
        %v457 = vpack.c.b16 %v413, %v412
        %v458 = vpack.c.b16 %v415, %v414
        %v459 = vpack.c.b16 %v417, %v416
        %v460 = vpack.c.b16 %v419, %v418
        %v461 = vpack.c.b16 %v421, %v420
        %v462 = vpack.c.b16 %v423, %v422
        %v463 = vpack.c.b16 %v425, %v424
        %v464 = vpack.c.b16 %v427, %v426
        %v465 = vpack.c.b16 %v429, %v428
        %v466 = vpack.c.b16 %v431, %v430
        %v467 = vpack.c.b16 %v433, %v432
        %v468 = vpack.c.b16 %v435, %v434
        %v469 = vpack.c.b16 %v437, %v436
        %v566 = vunpack.c.l.b16 %v246
        %v567 = vunpack.c.l.b16 %v247
        %v568 = vunpack.c.l.b16 %v248
        %v569 = vunpack.c.l.b16 %v249
        %v570 = vunpack.c.l.b16 %v250
        %v571 = vunpack.c.l.b16 %v251
        %v572 = vunpack.c.l.b16 %v252
        %v573 = vunpack.c.l.b16 %v253
        %v574 = vunpack.c.l.b16 %v254
        %v575 = vunpack.c.l.b16 %v255
        %v576 = vunpack.c.l.b16 %v256
        %v577 = vunpack.c.l.b16 %v257
        %v578 = vunpack.c.l.b16 %v258
        %v579 = vunpack.c.l.b16 %v259
        %v580 = vunpack.c.l.b16 %v260
        %v581 = vunpack.c.l.b16 %v261
        %v582 = vunpack.c.l.b16 %v262
        %v583 = vunpack.c.l.b16 %v263
        %v584 = vunpack.c.l.b16 %v264
        %v585 = vunpack.c.l.b16 %v265
        %v586 = vunpack.c.l.b16 %v266
        %v587 = vunpack.c.l.b16 %v267
        %v588 = vunpack.c.l.b16 %v268
        %v589 = vunpack.c.l.b16 %v269
        %v590 = vunpack.c.l.b16 %v270
        %v591 = vunpack.c.l.b16 %v271
        %v592 = vunpack.c.l.b16 %v272
        %v593 = vunpack.c.l.b16 %v273
        %v594 = vunpack.c.l.b16 %v274
        %v595 = vunpack.c.l.b16 %v275
        %v596 = vunpack.c.l.b16 %v276
        %v597 = vunpack.c.l.b16 %v277
        %v598 = vunpack.c.l.b16 %v278
        %v599 = vunpack.c.l.b16 %v279
        %v600 = vunpack.c.l.b16 %v280
        %v601 = vunpack.c.l.b16 %v281
        %v602 = vunpack.c.l.b16 %v282
        %v603 = vunpack.c.l.b16 %v283
        %v604 = vunpack.c.l.b16 %v284
        %v605 = vunpack.c.l.b16 %v285
        %v606 = vunpack.c.l.b16 %v286
        %v607 = vunpack.c.l.b16 %v287
        %v608 = vunpack.c.l.b16 %v288
        %v609 = vunpack.c.l.b16 %v289
        %v610 = vunpack.c.l.b16 %v290
        %v611 = vunpack.c.l.b16 %v291
        %v612 = vunpack.c.l.b16 %v292
        %v613 = vunpack.c.l.b16 %v293
        %v614 = vunpack.c.l.b16 %v294
        %v615 = vunpack.c.l.b16 %v295
        %v616 = vunpack.c.l.b16 %v296
        %v617 = vunpack.c.l.b16 %v297
        %v618 = vunpack.c.l.b16 %v298
        %v619 = vunpack.c.l.b16 %v299
        %v620 = vunpack.c.l.b16 %v300
        %v621 = vunpack.c.l.b16 %v301
        %v622 = vunpack.c.l.b16 %v302
        %v623 = vunpack.c.l.b16 %v303
        %v624 = vunpack.c.l.b16 %v304
        %v625 = vunpack.c.l.b16 %v305
        %v626 = vunpack.c.l.b16 %v306
        %v627 = vunpack.c.l.b16 %v307
        %v628 = vunpack.c.l.b16 %v308
        %v629 = vunpack.c.l.b16 %v309
        %v630 = vpack.c.b16 %v567, %v566
        %v631 = vpack.c.b16 %v569, %v568
        %v632 = vpack.c.b16 %v571, %v570
        %v633 = vpack.c.b16 %v573, %v572
        %v634 = vpack.c.b16 %v575, %v574
        %v635 = vpack.c.b16 %v577, %v576
        %v636 = vpack.c.b16 %v579, %v578
        %v637 = vpack.c.b16 %v581, %v580
        %v638 = vpack.c.b16 %v583, %v582
        %v639 = vpack.c.b16 %v585, %v584
        %v640 = vpack.c.b16 %v587, %v586
        %v641 = vpack.c.b16 %v589, %v588
        %v642 = vpack.c.b16 %v591, %v590
        %v643 = vpack.c.b16 %v593, %v592
        %v644 = vpack.c.b16 %v595, %v594
        %v645 = vpack.c.b16 %v597, %v596
        %v646 = vpack.c.b16 %v599, %v598
        %v647 = vpack.c.b16 %v601, %v600
        %v648 = vpack.c.b16 %v603, %v602
        %v649 = vpack.c.b16 %v605, %v604
        %v650 = vpack.c.b16 %v607, %v606
        %v651 = vpack.c.b16 %v609, %v608
        %v652 = vpack.c.b16 %v611, %v610
        %v653 = vpack.c.b16 %v613, %v612
        %v654 = vpack.c.b16 %v615, %v614
        %v655 = vpack.c.b16 %v617, %v616
        %v656 = vpack.c.b16 %v619, %v618
        %v657 = vpack.c.b16 %v621, %v620
        %v658 = vpack.c.b16 %v623, %v622
        %v659 = vpack.c.b16 %v625, %v624
        %v660 = vpack.c.b16 %v627, %v626
        %v661 = vpack.c.b16 %v629, %v628
        %694 = vmatpush.bf16.xpose.msra.mxu0 %v637
        %695 = vmatpush.bf16.xpose.msra.mxu0 %v636
        %696 = vmatpush.bf16.xpose.msra.mxu0 %v635
        %697 = vmatpush.bf16.xpose.msra.mxu0 %v634
        %698 = vmatpush.bf16.xpose.msra.mxu0 %v633
        %699 = vmatpush.bf16.xpose.msra.mxu0 %v632
        %700 = vmatpush.bf16.xpose.msra.mxu0 %v631
        %701 = vmatpush.bf16.xpose.msra.mxu0 %v630
        %702 = vmatmul.bf16.gmra.mxu0 %v438
        %v703 = vpop.f32.mrf.mxu0
        %v704 = vadd.f32 0.0, %v703
        %v705 = vpop.f32.mrf.mxu0
        %v706 = vadd.f32 0.0, %v705
        %707 = vmatmul.bf16.gmra.mxu0 %v439
        %v708 = vpop.f32.mrf.mxu0
        %v709 = vadd.f32 0.0, %v708
        %v710 = vpop.f32.mrf.mxu0
        %v711 = vadd.f32 0.0, %v710
        %712 = vmatmul.bf16.gmra.mxu0 %v440
        %v713 = vpop.f32.mrf.mxu0
        %v714 = vadd.f32 0.0, %v713
        %v715 = vpop.f32.mrf.mxu0
        %v716 = vadd.f32 0.0, %v715
        %717 = vmatmul.bf16.gmra.mxu0 %v441
        %v718 = vpop.f32.mrf.mxu0
        %v719 = vadd.f32 0.0, %v718
        %v720 = vpop.f32.mrf.mxu0
        %v721 = vadd.f32 0.0, %v720
        %722 = vmatmul.bf16.gmra.mxu0 %v442
        %v723 = vpop.f32.mrf.mxu0
        %v724 = vadd.f32 0.0, %v723
        %v725 = vpop.f32.mrf.mxu0
        %v726 = vadd.f32 0.0, %v725
        %727 = vmatmul.bf16.gmra.mxu0 %v443
        %v728 = vpop.f32.mrf.mxu0
        %v729 = vadd.f32 0.0, %v728
        %v730 = vpop.f32.mrf.mxu0
        %v731 = vadd.f32 0.0, %v730
        %732 = vmatmul.bf16.gmra.mxu0 %v444
        %v733 = vpop.f32.mrf.mxu0
        %v734 = vadd.f32 0.0, %v733
        %v735 = vpop.f32.mrf.mxu0
        %v736 = vadd.f32 0.0, %v735
        %737 = vmatmul.bf16.gmra.mxu0 %v445
        %v738 = vpop.f32.mrf.mxu0
        %v739 = vadd.f32 0.0, %v738
        %v740 = vpop.f32.mrf.mxu0
        %v741 = vadd.f32 0.0, %v740
        %742 = vmatmul.bf16.gmra.mxu0 %v446
        %v743 = vpop.f32.mrf.mxu0
        %v744 = vadd.f32 0.0, %v743
        %v745 = vpop.f32.mrf.mxu0
        %v746 = vadd.f32 0.0, %v745
        %747 = vmatmul.bf16.gmra.mxu0 %v447
        %v748 = vpop.f32.mrf.mxu0
        %v749 = vadd.f32 0.0, %v748
        %v750 = vpop.f32.mrf.mxu0
        %v751 = vadd.f32 0.0, %v750
        %752 = vmatmul.bf16.gmra.mxu0 %v448
        %v753 = vpop.f32.mrf.mxu0
        %v754 = vadd.f32 0.0, %v753
        %v755 = vpop.f32.mrf.mxu0
        %v756 = vadd.f32 0.0, %v755
        %757 = vmatmul.bf16.gmra.mxu0 %v449
        %v758 = vpop.f32.mrf.mxu0
        %v759 = vadd.f32 0.0, %v758
        %v760 = vpop.f32.mrf.mxu0
        %v761 = vadd.f32 0.0, %v760
        %762 = vmatmul.bf16.gmra.mxu0 %v450
        %v763 = vpop.f32.mrf.mxu0
        %v764 = vadd.f32 0.0, %v763
        %v765 = vpop.f32.mrf.mxu0
        %v766 = vadd.f32 0.0, %v765
        %767 = vmatmul.bf16.gmra.mxu0 %v451
        %v768 = vpop.f32.mrf.mxu0
        %v769 = vadd.f32 0.0, %v768
        %v770 = vpop.f32.mrf.mxu0
        %v771 = vadd.f32 0.0, %v770
        %772 = vmatmul.bf16.gmra.mxu0 %v452
        %v773 = vpop.f32.mrf.mxu0
        %v774 = vadd.f32 0.0, %v773
        %v775 = vpop.f32.mrf.mxu0
        %v776 = vadd.f32 0.0, %v775
        %777 = vmatmul.bf16.gmra.mxu0 %v453
        %v778 = vpop.f32.mrf.mxu0
        %v779 = vadd.f32 0.0, %v778
        %v780 = vpop.f32.mrf.mxu0
        %v781 = vadd.f32 0.0, %v780
        %782 = vmatmul.bf16.gmra.mxu0 %v454
        %v783 = vpop.f32.mrf.mxu0
        %v784 = vadd.f32 0.0, %v783
        %v785 = vpop.f32.mrf.mxu0
        %v786 = vadd.f32 0.0, %v785
        %787 = vmatmul.bf16.gmra.mxu0 %v455
        %v788 = vpop.f32.mrf.mxu0
        %v789 = vadd.f32 0.0, %v788
        %v790 = vpop.f32.mrf.mxu0
        %v791 = vadd.f32 0.0, %v790
        %792 = vmatmul.bf16.gmra.mxu0 %v456
        %v793 = vpop.f32.mrf.mxu0
        %v794 = vadd.f32 0.0, %v793
        %v795 = vpop.f32.mrf.mxu0
        %v796 = vadd.f32 0.0, %v795
        %797 = vmatmul.bf16.gmra.mxu0 %v457
        %v798 = vpop.f32.mrf.mxu0
        %v799 = vadd.f32 0.0, %v798
        %v800 = vpop.f32.mrf.mxu0
        %v801 = vadd.f32 0.0, %v800
        %802 = vmatmul.bf16.gmra.mxu0 %v458
        %v803 = vpop.f32.mrf.mxu0
        %v804 = vadd.f32 0.0, %v803
        %v805 = vpop.f32.mrf.mxu0
        %v806 = vadd.f32 0.0, %v805
        %807 = vmatmul.bf16.gmra.mxu0 %v459
        %v808 = vpop.f32.mrf.mxu0
        %v809 = vadd.f32 0.0, %v808
        %v810 = vpop.f32.mrf.mxu0
        %v811 = vadd.f32 0.0, %v810
        %812 = vmatmul.bf16.gmra.mxu0 %v460
        %v813 = vpop.f32.mrf.mxu0
        %v814 = vadd.f32 0.0, %v813
        %v815 = vpop.f32.mrf.mxu0
        %v816 = vadd.f32 0.0, %v815
        %817 = vmatmul.bf16.gmra.mxu0 %v461
        %v818 = vpop.f32.mrf.mxu0
        %v819 = vadd.f32 0.0, %v818
        %v820 = vpop.f32.mrf.mxu0
        %v821 = vadd.f32 0.0, %v820
        %822 = vmatmul.bf16.gmra.mxu0 %v462
        %v823 = vpop.f32.mrf.mxu0
        %v824 = vadd.f32 0.0, %v823
        %v825 = vpop.f32.mrf.mxu0
        %v826 = vadd.f32 0.0, %v825
        %827 = vmatmul.bf16.gmra.mxu0 %v463
        %v828 = vpop.f32.mrf.mxu0
        %v829 = vadd.f32 0.0, %v828
        %v830 = vpop.f32.mrf.mxu0
        %v831 = vadd.f32 0.0, %v830
        %832 = vmatmul.bf16.gmra.mxu0 %v464
        %v833 = vpop.f32.mrf.mxu0
        %v834 = vadd.f32 0.0, %v833
        %v835 = vpop.f32.mrf.mxu0
        %v836 = vadd.f32 0.0, %v835
        %837 = vmatmul.bf16.gmra.mxu0 %v465
        %v838 = vpop.f32.mrf.mxu0
        %v839 = vadd.f32 0.0, %v838
        %v840 = vpop.f32.mrf.mxu0
        %v841 = vadd.f32 0.0, %v840
        %842 = vmatmul.bf16.gmra.mxu0 %v466
        %v843 = vpop.f32.mrf.mxu0
        %v844 = vadd.f32 0.0, %v843
        %v845 = vpop.f32.mrf.mxu0
        %v846 = vadd.f32 0.0, %v845
        %847 = vmatmul.bf16.gmra.mxu0 %v467
        %v848 = vpop.f32.mrf.mxu0
        %v849 = vadd.f32 0.0, %v848
        %v850 = vpop.f32.mrf.mxu0
        %v851 = vadd.f32 0.0, %v850
        %852 = vmatmul.bf16.gmra.mxu0 %v468
        %v853 = vpop.f32.mrf.mxu0
        %v854 = vadd.f32 0.0, %v853
        %v855 = vpop.f32.mrf.mxu0
        %v856 = vadd.f32 0.0, %v855
        %857 = vmatmul.bf16.gmra.mxu0 %v469
        %v858 = vpop.f32.mrf.mxu0
        %v859 = vadd.f32 0.0, %v858
        %v860 = vpop.f32.mrf.mxu0
        %v861 = vadd.f32 0.0, %v860
        %862 = vdwg.mxu0
        %863 = vmatpush.bf16.xpose.msra.mxu0 %v645
        %864 = vmatpush.bf16.xpose.msra.mxu0 %v644
        %865 = vmatpush.bf16.xpose.msra.mxu0 %v643
        %866 = vmatpush.bf16.xpose.msra.mxu0 %v642
        %867 = vmatpush.bf16.xpose.msra.mxu0 %v641
        %868 = vmatpush.bf16.xpose.msra.mxu0 %v640
        %869 = vmatpush.bf16.xpose.msra.mxu0 %v639
        %870 = vmatpush.bf16.xpose.msra.mxu0 %v638
        %871 = vmatmul.bf16.gmra.mxu0 %v438
        %v872 = vpop.f32.mrf.mxu0
        %v873 = vadd.f32 0.0, %v872
        %v874 = vpop.f32.mrf.mxu0
        %v875 = vadd.f32 0.0, %v874
        %876 = vmatmul.bf16.gmra.mxu0 %v439
        %v877 = vpop.f32.mrf.mxu0
        %v878 = vadd.f32 0.0, %v877
        %v879 = vpop.f32.mrf.mxu0
        %v880 = vadd.f32 0.0, %v879
        %881 = vmatmul.bf16.gmra.mxu0 %v440
        %v882 = vpop.f32.mrf.mxu0
        %v883 = vadd.f32 0.0, %v882
        %v884 = vpop.f32.mrf.mxu0
        %v885 = vadd.f32 0.0, %v884
        %886 = vmatmul.bf16.gmra.mxu0 %v441
        %v887 = vpop.f32.mrf.mxu0
        %v888 = vadd.f32 0.0, %v887
        %v889 = vpop.f32.mrf.mxu0
        %v890 = vadd.f32 0.0, %v889
        %891 = vmatmul.bf16.gmra.mxu0 %v442
        %v892 = vpop.f32.mrf.mxu0
        %v893 = vadd.f32 0.0, %v892
        %v894 = vpop.f32.mrf.mxu0
        %v895 = vadd.f32 0.0, %v894
        %896 = vmatmul.bf16.gmra.mxu0 %v443
        %v897 = vpop.f32.mrf.mxu0
        %v898 = vadd.f32 0.0, %v897
        %v899 = vpop.f32.mrf.mxu0
        %v900 = vadd.f32 0.0, %v899
        %901 = vmatmul.bf16.gmra.mxu0 %v444
        %v902 = vpop.f32.mrf.mxu0
        %v903 = vadd.f32 0.0, %v902
        %v904 = vpop.f32.mrf.mxu0
        %v905 = vadd.f32 0.0, %v904
        %906 = vmatmul.bf16.gmra.mxu0 %v445
        %v907 = vpop.f32.mrf.mxu0
        %v908 = vadd.f32 0.0, %v907
        %v909 = vpop.f32.mrf.mxu0
        %v910 = vadd.f32 0.0, %v909
        %911 = vmatmul.bf16.gmra.mxu0 %v446
        %v912 = vpop.f32.mrf.mxu0
        %v913 = vadd.f32 0.0, %v912
        %v914 = vpop.f32.mrf.mxu0
        %v915 = vadd.f32 0.0, %v914
        %916 = vmatmul.bf16.gmra.mxu0 %v447
        %v917 = vpop.f32.mrf.mxu0
        %v918 = vadd.f32 0.0, %v917
        %v919 = vpop.f32.mrf.mxu0
        %v920 = vadd.f32 0.0, %v919
        %921 = vmatmul.bf16.gmra.mxu0 %v448
        %v922 = vpop.f32.mrf.mxu0
        %v923 = vadd.f32 0.0, %v922
        %v924 = vpop.f32.mrf.mxu0
        %v925 = vadd.f32 0.0, %v924
        %926 = vmatmul.bf16.gmra.mxu0 %v449
        %v927 = vpop.f32.mrf.mxu0
        %v928 = vadd.f32 0.0, %v927
        %v929 = vpop.f32.mrf.mxu0
        %v930 = vadd.f32 0.0, %v929
        %931 = vmatmul.bf16.gmra.mxu0 %v450
        %v932 = vpop.f32.mrf.mxu0
        %v933 = vadd.f32 0.0, %v932
        %v934 = vpop.f32.mrf.mxu0
        %v935 = vadd.f32 0.0, %v934
        %936 = vmatmul.bf16.gmra.mxu0 %v451
        %v937 = vpop.f32.mrf.mxu0
        %v938 = vadd.f32 0.0, %v937
        %v939 = vpop.f32.mrf.mxu0
        %v940 = vadd.f32 0.0, %v939
        %941 = vmatmul.bf16.gmra.mxu0 %v452
        %v942 = vpop.f32.mrf.mxu0
        %v943 = vadd.f32 0.0, %v942
        %v944 = vpop.f32.mrf.mxu0
        %v945 = vadd.f32 0.0, %v944
        %946 = vmatmul.bf16.gmra.mxu0 %v453
        %v947 = vpop.f32.mrf.mxu0
        %v948 = vadd.f32 0.0, %v947
        %v949 = vpop.f32.mrf.mxu0
        %v950 = vadd.f32 0.0, %v949
        %951 = vmatmul.bf16.gmra.mxu0 %v454
        %v952 = vpop.f32.mrf.mxu0
        %v953 = vadd.f32 0.0, %v952
        %v954 = vpop.f32.mrf.mxu0
        %v955 = vadd.f32 0.0, %v954
        %956 = vmatmul.bf16.gmra.mxu0 %v455
        %v957 = vpop.f32.mrf.mxu0
        %v958 = vadd.f32 0.0, %v957
        %v959 = vpop.f32.mrf.mxu0
        %v960 = vadd.f32 0.0, %v959
        %961 = vmatmul.bf16.gmra.mxu0 %v456
        %v962 = vpop.f32.mrf.mxu0
        %v963 = vadd.f32 0.0, %v962
        %v964 = vpop.f32.mrf.mxu0
        %v965 = vadd.f32 0.0, %v964
        %966 = vmatmul.bf16.gmra.mxu0 %v457
        %v967 = vpop.f32.mrf.mxu0
        %v968 = vadd.f32 0.0, %v967
        %v969 = vpop.f32.mrf.mxu0
        %v970 = vadd.f32 0.0, %v969
        %971 = vmatmul.bf16.gmra.mxu0 %v458
        %v972 = vpop.f32.mrf.mxu0
        %v973 = vadd.f32 0.0, %v972
        %v974 = vpop.f32.mrf.mxu0
        %v975 = vadd.f32 0.0, %v974
        %976 = vmatmul.bf16.gmra.mxu0 %v459
        %v977 = vpop.f32.mrf.mxu0
        %v978 = vadd.f32 0.0, %v977
        %v979 = vpop.f32.mrf.mxu0
        %v980 = vadd.f32 0.0, %v979
        %981 = vmatmul.bf16.gmra.mxu0 %v460
        %v982 = vpop.f32.mrf.mxu0
        %v983 = vadd.f32 0.0, %v982
        %v984 = vpop.f32.mrf.mxu0
        %v985 = vadd.f32 0.0, %v984
        %986 = vmatmul.bf16.gmra.mxu0 %v461
        %v987 = vpop.f32.mrf.mxu0
        %v988 = vadd.f32 0.0, %v987
        %v989 = vpop.f32.mrf.mxu0
        %v990 = vadd.f32 0.0, %v989
        %991 = vmatmul.bf16.gmra.mxu0 %v462
        %v992 = vpop.f32.mrf.mxu0
        %v993 = vadd.f32 0.0, %v992
        %v994 = vpop.f32.mrf.mxu0
        %v995 = vadd.f32 0.0, %v994
        %996 = vmatmul.bf16.gmra.mxu0 %v463
        %v997 = vpop.f32.mrf.mxu0
        %v998 = vadd.f32 0.0, %v997
        %v999 = vpop.f32.mrf.mxu0
        %v1000 = vadd.f32 0.0, %v999
        %1001 = vmatmul.bf16.gmra.mxu0 %v464
        %v1002 = vpop.f32.mrf.mxu0
        %v1003 = vadd.f32 0.0, %v1002
        %v1004 = vpop.f32.mrf.mxu0
        %v1005 = vadd.f32 0.0, %v1004
        %1006 = vmatmul.bf16.gmra.mxu0 %v465
        %v1007 = vpop.f32.mrf.mxu0
        %v1008 = vadd.f32 0.0, %v1007
        %v1009 = vpop.f32.mrf.mxu0
        %v1010 = vadd.f32 0.0, %v1009
        %1011 = vmatmul.bf16.gmra.mxu0 %v466
        %v1012 = vpop.f32.mrf.mxu0
        %v1013 = vadd.f32 0.0, %v1012
        %v1014 = vpop.f32.mrf.mxu0
        %v1015 = vadd.f32 0.0, %v1014
        %1016 = vmatmul.bf16.gmra.mxu0 %v467
        %v1017 = vpop.f32.mrf.mxu0
        %v1018 = vadd.f32 0.0, %v1017
        %v1019 = vpop.f32.mrf.mxu0
        %v1020 = vadd.f32 0.0, %v1019
        %1021 = vmatmul.bf16.gmra.mxu0 %v468
        %v1022 = vpop.f32.mrf.mxu0
        %v1023 = vadd.f32 0.0, %v1022
        %v1024 = vpop.f32.mrf.mxu0
        %v1025 = vadd.f32 0.0, %v1024
        %1026 = vmatmul.bf16.gmra.mxu0 %v469
        %v1027 = vpop.f32.mrf.mxu0
        %v1028 = vadd.f32 0.0, %v1027
        %v1029 = vpop.f32.mrf.mxu0
        %v1030 = vadd.f32 0.0, %v1029
        %1031 = vdwg.mxu0
        %1032 = vmatpush.bf16.xpose.msra.mxu0 %v653
        %1033 = vmatpush.bf16.xpose.msra.mxu0 %v652
        %1034 = vmatpush.bf16.xpose.msra.mxu0 %v651
        %1035 = vmatpush.bf16.xpose.msra.mxu0 %v650
        %1036 = vmatpush.bf16.xpose.msra.mxu0 %v649
        %1037 = vmatpush.bf16.xpose.msra.mxu0 %v648
        %1038 = vmatpush.bf16.xpose.msra.mxu0 %v647
        %1039 = vmatpush.bf16.xpose.msra.mxu0 %v646
        %1040 = vmatmul.bf16.gmra.mxu0 %v438
        %v1041 = vpop.f32.mrf.mxu0
        %v1042 = vadd.f32 0.0, %v1041
        %v1043 = vpop.f32.mrf.mxu0
        %v1044 = vadd.f32 0.0, %v1043
        %1045 = vmatmul.bf16.gmra.mxu0 %v439
        %v1046 = vpop.f32.mrf.mxu0
        %v1047 = vadd.f32 0.0, %v1046
        %v1048 = vpop.f32.mrf.mxu0
        %v1049 = vadd.f32 0.0, %v1048
        %1050 = vmatmul.bf16.gmra.mxu0 %v440
        %v1051 = vpop.f32.mrf.mxu0
        %v1052 = vadd.f32 0.0, %v1051
        %v1053 = vpop.f32.mrf.mxu0
        %v1054 = vadd.f32 0.0, %v1053
        %1055 = vmatmul.bf16.gmra.mxu0 %v441
        %v1056 = vpop.f32.mrf.mxu0
        %v1057 = vadd.f32 0.0, %v1056
        %v1058 = vpop.f32.mrf.mxu0
        %v1059 = vadd.f32 0.0, %v1058
        %1060 = vmatmul.bf16.gmra.mxu0 %v442
        %v1061 = vpop.f32.mrf.mxu0
        %v1062 = vadd.f32 0.0, %v1061
        %v1063 = vpop.f32.mrf.mxu0
        %v1064 = vadd.f32 0.0, %v1063
        %1065 = vmatmul.bf16.gmra.mxu0 %v443
        %v1066 = vpop.f32.mrf.mxu0
        %v1067 = vadd.f32 0.0, %v1066
        %v1068 = vpop.f32.mrf.mxu0
        %v1069 = vadd.f32 0.0, %v1068
        %1070 = vmatmul.bf16.gmra.mxu0 %v444
        %v1071 = vpop.f32.mrf.mxu0
        %v1072 = vadd.f32 0.0, %v1071
        %v1073 = vpop.f32.mrf.mxu0
        %v1074 = vadd.f32 0.0, %v1073
        %1075 = vmatmul.bf16.gmra.mxu0 %v445
        %v1076 = vpop.f32.mrf.mxu0
        %v1077 = vadd.f32 0.0, %v1076
        %v1078 = vpop.f32.mrf.mxu0
        %v1079 = vadd.f32 0.0, %v1078
        %1080 = vmatmul.bf16.gmra.mxu0 %v446
        %v1081 = vpop.f32.mrf.mxu0
        %v1082 = vadd.f32 0.0, %v1081
        %v1083 = vpop.f32.mrf.mxu0
        %v1084 = vadd.f32 0.0, %v1083
        %1085 = vmatmul.bf16.gmra.mxu0 %v447
        %v1086 = vpop.f32.mrf.mxu0
        %v1087 = vadd.f32 0.0, %v1086
        %v1088 = vpop.f32.mrf.mxu0
        %v1089 = vadd.f32 0.0, %v1088
        %1090 = vmatmul.bf16.gmra.mxu0 %v448
        %v1091 = vpop.f32.mrf.mxu0
        %v1092 = vadd.f32 0.0, %v1091
        %v1093 = vpop.f32.mrf.mxu0
        %v1094 = vadd.f32 0.0, %v1093
        %1095 = vmatmul.bf16.gmra.mxu0 %v449
        %v1096 = vpop.f32.mrf.mxu0
        %v1097 = vadd.f32 0.0, %v1096
        %v1098 = vpop.f32.mrf.mxu0
        %v1099 = vadd.f32 0.0, %v1098
        %1100 = vmatmul.bf16.gmra.mxu0 %v450
        %v1101 = vpop.f32.mrf.mxu0
        %v1102 = vadd.f32 0.0, %v1101
        %v1103 = vpop.f32.mrf.mxu0
        %v1104 = vadd.f32 0.0, %v1103
        %1105 = vmatmul.bf16.gmra.mxu0 %v451
        %v1106 = vpop.f32.mrf.mxu0
        %v1107 = vadd.f32 0.0, %v1106
        %v1108 = vpop.f32.mrf.mxu0
        %v1109 = vadd.f32 0.0, %v1108
        %1110 = vmatmul.bf16.gmra.mxu0 %v452
        %v1111 = vpop.f32.mrf.mxu0
        %v1112 = vadd.f32 0.0, %v1111
        %v1113 = vpop.f32.mrf.mxu0
        %v1114 = vadd.f32 0.0, %v1113
        %1115 = vmatmul.bf16.gmra.mxu0 %v453
        %v1116 = vpop.f32.mrf.mxu0
        %v1117 = vadd.f32 0.0, %v1116
        %v1118 = vpop.f32.mrf.mxu0
        %v1119 = vadd.f32 0.0, %v1118
        %1120 = vmatmul.bf16.gmra.mxu0 %v454
        %v1121 = vpop.f32.mrf.mxu0
        %v1122 = vadd.f32 0.0, %v1121
        %v1123 = vpop.f32.mrf.mxu0
        %v1124 = vadd.f32 0.0, %v1123
        %1125 = vmatmul.bf16.gmra.mxu0 %v455
        %v1126 = vpop.f32.mrf.mxu0
        %v1127 = vadd.f32 0.0, %v1126
        %v1128 = vpop.f32.mrf.mxu0
        %v1129 = vadd.f32 0.0, %v1128
        %1130 = vmatmul.bf16.gmra.mxu0 %v456
        %v1131 = vpop.f32.mrf.mxu0
        %v1132 = vadd.f32 0.0, %v1131
        %v1133 = vpop.f32.mrf.mxu0
        %v1134 = vadd.f32 0.0, %v1133
        %1135 = vmatmul.bf16.gmra.mxu0 %v457
        %v1136 = vpop.f32.mrf.mxu0
        %v1137 = vadd.f32 0.0, %v1136
        %v1138 = vpop.f32.mrf.mxu0
        %v1139 = vadd.f32 0.0, %v1138
        %1140 = vmatmul.bf16.gmra.mxu0 %v458
        %v1141 = vpop.f32.mrf.mxu0
        %v1142 = vadd.f32 0.0, %v1141
        %v1143 = vpop.f32.mrf.mxu0
        %v1144 = vadd.f32 0.0, %v1143
        %1145 = vmatmul.bf16.gmra.mxu0 %v459
        %v1146 = vpop.f32.mrf.mxu0
        %v1147 = vadd.f32 0.0, %v1146
        %v1148 = vpop.f32.mrf.mxu0
        %v1149 = vadd.f32 0.0, %v1148
        %1150 = vmatmul.bf16.gmra.mxu0 %v460
        %v1151 = vpop.f32.mrf.mxu0
        %v1152 = vadd.f32 0.0, %v1151
        %v1153 = vpop.f32.mrf.mxu0
        %v1154 = vadd.f32 0.0, %v1153
        %1155 = vmatmul.bf16.gmra.mxu0 %v461
        %v1156 = vpop.f32.mrf.mxu0
        %v1157 = vadd.f32 0.0, %v1156
        %v1158 = vpop.f32.mrf.mxu0
        %v1159 = vadd.f32 0.0, %v1158
        %1160 = vmatmul.bf16.gmra.mxu0 %v462
        %v1161 = vpop.f32.mrf.mxu0
        %v1162 = vadd.f32 0.0, %v1161
        %v1163 = vpop.f32.mrf.mxu0
        %v1164 = vadd.f32 0.0, %v1163
        %1165 = vmatmul.bf16.gmra.mxu0 %v463
        %v1166 = vpop.f32.mrf.mxu0
        %v1167 = vadd.f32 0.0, %v1166
        %v1168 = vpop.f32.mrf.mxu0
        %v1169 = vadd.f32 0.0, %v1168
        %1170 = vmatmul.bf16.gmra.mxu0 %v464
        %v1171 = vpop.f32.mrf.mxu0
        %v1172 = vadd.f32 0.0, %v1171
        %v1173 = vpop.f32.mrf.mxu0
        %v1174 = vadd.f32 0.0, %v1173
        %1175 = vmatmul.bf16.gmra.mxu0 %v465
        %v1176 = vpop.f32.mrf.mxu0
        %v1177 = vadd.f32 0.0, %v1176
        %v1178 = vpop.f32.mrf.mxu0
        %v1179 = vadd.f32 0.0, %v1178
        %1180 = vmatmul.bf16.gmra.mxu0 %v466
        %v1181 = vpop.f32.mrf.mxu0
        %v1182 = vadd.f32 0.0, %v1181
        %v1183 = vpop.f32.mrf.mxu0
        %v1184 = vadd.f32 0.0, %v1183
        %1185 = vmatmul.bf16.gmra.mxu0 %v467
        %v1186 = vpop.f32.mrf.mxu0
        %v1187 = vadd.f32 0.0, %v1186
        %v1188 = vpop.f32.mrf.mxu0
        %v1189 = vadd.f32 0.0, %v1188
        %1190 = vmatmul.bf16.gmra.mxu0 %v468
        %v1191 = vpop.f32.mrf.mxu0
        %v1192 = vadd.f32 0.0, %v1191
        %v1193 = vpop.f32.mrf.mxu0
        %v1194 = vadd.f32 0.0, %v1193
        %1195 = vmatmul.bf16.gmra.mxu0 %v469
        %v1196 = vpop.f32.mrf.mxu0
        %v1197 = vadd.f32 0.0, %v1196
        %v1198 = vpop.f32.mrf.mxu0
        %v1199 = vadd.f32 0.0, %v1198
        %1200 = vdwg.mxu0
        %1201 = vmatpush.bf16.xpose.msra.mxu0 %v661
        %1202 = vmatpush.bf16.xpose.msra.mxu0 %v660
        %1203 = vmatpush.bf16.xpose.msra.mxu0 %v659
        %1204 = vmatpush.bf16.xpose.msra.mxu0 %v658
        %1205 = vmatpush.bf16.xpose.msra.mxu0 %v657
        %1206 = vmatpush.bf16.xpose.msra.mxu0 %v656
        %1207 = vmatpush.bf16.xpose.msra.mxu0 %v655
        %1208 = vmatpush.bf16.xpose.msra.mxu0 %v654
        %1209 = vmatmul.bf16.gmra.mxu0 %v438
        %v1210 = vpop.f32.mrf.mxu0
        %v1211 = vadd.f32 0.0, %v1210
        %v1212 = vpop.f32.mrf.mxu0
        %v1213 = vadd.f32 0.0, %v1212
        %1214 = vmatmul.bf16.gmra.mxu0 %v439
        %v1215 = vpop.f32.mrf.mxu0
        %v1216 = vadd.f32 0.0, %v1215
        %v1217 = vpop.f32.mrf.mxu0
        %v1218 = vadd.f32 0.0, %v1217
        %1219 = vmatmul.bf16.gmra.mxu0 %v440
        %v1220 = vpop.f32.mrf.mxu0
        %v1221 = vadd.f32 0.0, %v1220
        %v1222 = vpop.f32.mrf.mxu0
        %v1223 = vadd.f32 0.0, %v1222
        %1224 = vmatmul.bf16.gmra.mxu0 %v441
        %v1225 = vpop.f32.mrf.mxu0
        %v1226 = vadd.f32 0.0, %v1225
        %v1227 = vpop.f32.mrf.mxu0
        %v1228 = vadd.f32 0.0, %v1227
        %1229 = vmatmul.bf16.gmra.mxu0 %v442
        %v1230 = vpop.f32.mrf.mxu0
        %v1231 = vadd.f32 0.0, %v1230
        %v1232 = vpop.f32.mrf.mxu0
        %v1233 = vadd.f32 0.0, %v1232
        %1234 = vmatmul.bf16.gmra.mxu0 %v443
        %v1235 = vpop.f32.mrf.mxu0
        %v1236 = vadd.f32 0.0, %v1235
        %v1237 = vpop.f32.mrf.mxu0
        %v1238 = vadd.f32 0.0, %v1237
        %1239 = vmatmul.bf16.gmra.mxu0 %v444
        %v1240 = vpop.f32.mrf.mxu0
        %v1241 = vadd.f32 0.0, %v1240
        %v1242 = vpop.f32.mrf.mxu0
        %v1243 = vadd.f32 0.0, %v1242
        %1244 = vmatmul.bf16.gmra.mxu0 %v445
        %v1245 = vpop.f32.mrf.mxu0
        %v1246 = vadd.f32 0.0, %v1245
        %v1247 = vpop.f32.mrf.mxu0
        %v1248 = vadd.f32 0.0, %v1247
        %1249 = vmatmul.bf16.gmra.mxu0 %v446
        %v1250 = vpop.f32.mrf.mxu0
        %v1251 = vadd.f32 0.0, %v1250
        %v1252 = vpop.f32.mrf.mxu0
        %v1253 = vadd.f32 0.0, %v1252
        %1254 = vmatmul.bf16.gmra.mxu0 %v447
        %v1255 = vpop.f32.mrf.mxu0
        %v1256 = vadd.f32 0.0, %v1255
        %v1257 = vpop.f32.mrf.mxu0
        %v1258 = vadd.f32 0.0, %v1257
        %1259 = vmatmul.bf16.gmra.mxu0 %v448
        %v1260 = vpop.f32.mrf.mxu0
        %v1261 = vadd.f32 0.0, %v1260
        %v1262 = vpop.f32.mrf.mxu0
        %v1263 = vadd.f32 0.0, %v1262
        %1264 = vmatmul.bf16.gmra.mxu0 %v449
        %v1265 = vpop.f32.mrf.mxu0
        %v1266 = vadd.f32 0.0, %v1265
        %v1267 = vpop.f32.mrf.mxu0
        %v1268 = vadd.f32 0.0, %v1267
        %1269 = vmatmul.bf16.gmra.mxu0 %v450
        %v1270 = vpop.f32.mrf.mxu0
        %v1271 = vadd.f32 0.0, %v1270
        %v1272 = vpop.f32.mrf.mxu0
        %v1273 = vadd.f32 0.0, %v1272
        %1274 = vmatmul.bf16.gmra.mxu0 %v451
        %v1275 = vpop.f32.mrf.mxu0
        %v1276 = vadd.f32 0.0, %v1275
        %v1277 = vpop.f32.mrf.mxu0
        %v1278 = vadd.f32 0.0, %v1277
        %1279 = vmatmul.bf16.gmra.mxu0 %v452
        %v1280 = vpop.f32.mrf.mxu0
        %v1281 = vadd.f32 0.0, %v1280
        %v1282 = vpop.f32.mrf.mxu0
        %v1283 = vadd.f32 0.0, %v1282
        %1284 = vmatmul.bf16.gmra.mxu0 %v453
        %v1285 = vpop.f32.mrf.mxu0
        %v1286 = vadd.f32 0.0, %v1285
        %v1287 = vpop.f32.mrf.mxu0
        %v1288 = vadd.f32 0.0, %v1287
        %1289 = vmatmul.bf16.gmra.mxu0 %v454
        %v1290 = vpop.f32.mrf.mxu0
        %v1291 = vadd.f32 0.0, %v1290
        %v1292 = vpop.f32.mrf.mxu0
        %v1293 = vadd.f32 0.0, %v1292
        %1294 = vmatmul.bf16.gmra.mxu0 %v455
        %v1295 = vpop.f32.mrf.mxu0
        %v1296 = vadd.f32 0.0, %v1295
        %v1297 = vpop.f32.mrf.mxu0
        %v1298 = vadd.f32 0.0, %v1297
        %1299 = vmatmul.bf16.gmra.mxu0 %v456
        %v1300 = vpop.f32.mrf.mxu0
        %v1301 = vadd.f32 0.0, %v1300
        %v1302 = vpop.f32.mrf.mxu0
        %v1303 = vadd.f32 0.0, %v1302
        %1304 = vmatmul.bf16.gmra.mxu0 %v457
        %v1305 = vpop.f32.mrf.mxu0
        %v1306 = vadd.f32 0.0, %v1305
        %v1307 = vpop.f32.mrf.mxu0
        %v1308 = vadd.f32 0.0, %v1307
        %1309 = vmatmul.bf16.gmra.mxu0 %v458
        %v1310 = vpop.f32.mrf.mxu0
        %v1311 = vadd.f32 0.0, %v1310
        %v1312 = vpop.f32.mrf.mxu0
        %v1313 = vadd.f32 0.0, %v1312
        %1314 = vmatmul.bf16.gmra.mxu0 %v459
        %v1315 = vpop.f32.mrf.mxu0
        %v1316 = vadd.f32 0.0, %v1315
        %v1317 = vpop.f32.mrf.mxu0
        %v1318 = vadd.f32 0.0, %v1317
        %1319 = vmatmul.bf16.gmra.mxu0 %v460
        %v1320 = vpop.f32.mrf.mxu0
        %v1321 = vadd.f32 0.0, %v1320
        %v1322 = vpop.f32.mrf.mxu0
        %v1323 = vadd.f32 0.0, %v1322
        %1324 = vmatmul.bf16.gmra.mxu0 %v461
        %v1325 = vpop.f32.mrf.mxu0
        %v1326 = vadd.f32 0.0, %v1325
        %v1327 = vpop.f32.mrf.mxu0
        %v1328 = vadd.f32 0.0, %v1327
        %1329 = vmatmul.bf16.gmra.mxu0 %v462
        %v1330 = vpop.f32.mrf.mxu0
        %v1331 = vadd.f32 0.0, %v1330
        %v1332 = vpop.f32.mrf.mxu0
        %v1333 = vadd.f32 0.0, %v1332
        %1334 = vmatmul.bf16.gmra.mxu0 %v463
        %v1335 = vpop.f32.mrf.mxu0
        %v1336 = vadd.f32 0.0, %v1335
        %v1337 = vpop.f32.mrf.mxu0
        %v1338 = vadd.f32 0.0, %v1337
        %1339 = vmatmul.bf16.gmra.mxu0 %v464
        %v1340 = vpop.f32.mrf.mxu0
        %v1341 = vadd.f32 0.0, %v1340
        %v1342 = vpop.f32.mrf.mxu0
        %v1343 = vadd.f32 0.0, %v1342
        %1344 = vmatmul.bf16.gmra.mxu0 %v465
        %v1345 = vpop.f32.mrf.mxu0
        %v1346 = vadd.f32 0.0, %v1345
        %v1347 = vpop.f32.mrf.mxu0
        %v1348 = vadd.f32 0.0, %v1347
        %1349 = vmatmul.bf16.gmra.mxu0 %v466
        %v1350 = vpop.f32.mrf.mxu0
        %v1351 = vadd.f32 0.0, %v1350
        %v1352 = vpop.f32.mrf.mxu0
        %v1353 = vadd.f32 0.0, %v1352
        %1354 = vmatmul.bf16.gmra.mxu0 %v467
        %v1355 = vpop.f32.mrf.mxu0
        %v1356 = vadd.f32 0.0, %v1355
        %v1357 = vpop.f32.mrf.mxu0
        %v1358 = vadd.f32 0.0, %v1357
        %1359 = vmatmul.bf16.gmra.mxu0 %v468
        %v1360 = vpop.f32.mrf.mxu0
        %v1361 = vadd.f32 0.0, %v1360
        %v1362 = vpop.f32.mrf.mxu0
        %v1363 = vadd.f32 0.0, %v1362
        %1364 = vmatmul.bf16.gmra.mxu0 %v469
        %v1365 = vpop.f32.mrf.mxu0
        %v1366 = vadd.f32 0.0, %v1365
        %v1367 = vpop.f32.mrf.mxu0
        %v1368 = vadd.f32 0.0, %v1367
        %1369 = vdwg.mxu0
        %v1370 = vmul.f32 %v704, 0.5
        %v1371 = vmul.f32 %v873, 0.5
        %v1372 = vmul.f32 %v1042, 0.5
        %v1373 = vmul.f32 %v1211, 0.5
        %v1374 = vmul.f32 %v706, 0.5
        %v1375 = vmul.f32 %v875, 0.5
        %v1376 = vmul.f32 %v1044, 0.5
        %v1377 = vmul.f32 %v1213, 0.5
        %v1378 = vmul.f32 %v709, 0.5
        %v1379 = vmul.f32 %v878, 0.5
        %v1380 = vmul.f32 %v1047, 0.5
        %v1381 = vmul.f32 %v1216, 0.5
        %v1382 = vmul.f32 %v711, 0.5
        %v1383 = vmul.f32 %v880, 0.5
        %v1384 = vmul.f32 %v1049, 0.5
        %v1385 = vmul.f32 %v1218, 0.5
        %v1386 = vmul.f32 %v714, 0.5
        %v1387 = vmul.f32 %v883, 0.5
        %v1388 = vmul.f32 %v1052, 0.5
        %v1389 = vmul.f32 %v1221, 0.5
        %v1390 = vmul.f32 %v716, 0.5
        %v1391 = vmul.f32 %v885, 0.5
        %v1392 = vmul.f32 %v1054, 0.5
        %v1393 = vmul.f32 %v1223, 0.5
        %v1394 = vmul.f32 %v719, 0.5
        %v1395 = vmul.f32 %v888, 0.5
        %v1396 = vmul.f32 %v1057, 0.5
        %v1397 = vmul.f32 %v1226, 0.5
        %v1398 = vmul.f32 %v721, 0.5
        %v1399 = vmul.f32 %v890, 0.5
        %v1400 = vmul.f32 %v1059, 0.5
        %v1401 = vmul.f32 %v1228, 0.5
        %v1402 = vmul.f32 %v724, 0.5
        %v1403 = vmul.f32 %v893, 0.5
        %v1404 = vmul.f32 %v1062, 0.5
        %v1405 = vmul.f32 %v1231, 0.5
        %v1406 = vmul.f32 %v726, 0.5
        %v1407 = vmul.f32 %v895, 0.5
        %v1408 = vmul.f32 %v1064, 0.5
        %v1409 = vmul.f32 %v1233, 0.5
        %v1410 = vmul.f32 %v729, 0.5
        %v1411 = vmul.f32 %v898, 0.5
        %v1412 = vmul.f32 %v1067, 0.5
        %v1413 = vmul.f32 %v1236, 0.5
        %v1414 = vmul.f32 %v731, 0.5
        %v1415 = vmul.f32 %v900, 0.5
        %v1416 = vmul.f32 %v1069, 0.5
        %v1417 = vmul.f32 %v1238, 0.5
        %v1418 = vmul.f32 %v734, 0.5
        %v1419 = vmul.f32 %v903, 0.5
        %v1420 = vmul.f32 %v1072, 0.5
        %v1421 = vmul.f32 %v1241, 0.5
        %v1422 = vmul.f32 %v736, 0.5
        %v1423 = vmul.f32 %v905, 0.5
        %v1424 = vmul.f32 %v1074, 0.5
        %v1425 = vmul.f32 %v1243, 0.5
        %v1426 = vmul.f32 %v739, 0.5
        %v1427 = vmul.f32 %v908, 0.5
        %v1428 = vmul.f32 %v1077, 0.5
        %v1429 = vmul.f32 %v1246, 0.5
        %v1430 = vmul.f32 %v741, 0.5
        %v1431 = vmul.f32 %v910, 0.5
        %v1432 = vmul.f32 %v1079, 0.5
        %v1433 = vmul.f32 %v1248, 0.5
        %v1434 = vmul.f32 %v744, 0.5
        %v1435 = vmul.f32 %v913, 0.5
        %v1436 = vmul.f32 %v1082, 0.5
        %v1437 = vmul.f32 %v1251, 0.5
        %v1438 = vmul.f32 %v746, 0.5
        %v1439 = vmul.f32 %v915, 0.5
        %v1440 = vmul.f32 %v1084, 0.5
        %v1441 = vmul.f32 %v1253, 0.5
        %v1442 = vmul.f32 %v749, 0.5
        %v1443 = vmul.f32 %v918, 0.5
        %v1444 = vmul.f32 %v1087, 0.5
        %v1445 = vmul.f32 %v1256, 0.5
        %v1446 = vmul.f32 %v751, 0.5
        %v1447 = vmul.f32 %v920, 0.5
        %v1448 = vmul.f32 %v1089, 0.5
        %v1449 = vmul.f32 %v1258, 0.5
        %v1450 = vmul.f32 %v754, 0.5
        %v1451 = vmul.f32 %v923, 0.5
        %v1452 = vmul.f32 %v1092, 0.5
        %v1453 = vmul.f32 %v1261, 0.5
        %v1454 = vmul.f32 %v756, 0.5
        %v1455 = vmul.f32 %v925, 0.5
        %v1456 = vmul.f32 %v1094, 0.5
        %v1457 = vmul.f32 %v1263, 0.5
        %v1458 = vmul.f32 %v759, 0.5
        %v1459 = vmul.f32 %v928, 0.5
        %v1460 = vmul.f32 %v1097, 0.5
        %v1461 = vmul.f32 %v1266, 0.5
        %v1462 = vmul.f32 %v761, 0.5
        %v1463 = vmul.f32 %v930, 0.5
        %v1464 = vmul.f32 %v1099, 0.5
        %v1465 = vmul.f32 %v1268, 0.5
        %v1466 = vmul.f32 %v764, 0.5
        %v1467 = vmul.f32 %v933, 0.5
        %v1468 = vmul.f32 %v1102, 0.5
        %v1469 = vmul.f32 %v1271, 0.5
        %v1470 = vmul.f32 %v766, 0.5
        %v1471 = vmul.f32 %v935, 0.5
        %v1472 = vmul.f32 %v1104, 0.5
        %v1473 = vmul.f32 %v1273, 0.5
        %v1474 = vmul.f32 %v769, 0.5
        %v1475 = vmul.f32 %v938, 0.5
        %v1476 = vmul.f32 %v1107, 0.5
        %v1477 = vmul.f32 %v1276, 0.5
        %v1478 = vmul.f32 %v771, 0.5
        %v1479 = vmul.f32 %v940, 0.5
        %v1480 = vmul.f32 %v1109, 0.5
        %v1481 = vmul.f32 %v1278, 0.5
        %v1482 = vmul.f32 %v774, 0.5
        %v1483 = vmul.f32 %v943, 0.5
        %v1484 = vmul.f32 %v1112, 0.5
        %v1485 = vmul.f32 %v1281, 0.5
        %v1486 = vmul.f32 %v776, 0.5
        %v1487 = vmul.f32 %v945, 0.5
        %v1488 = vmul.f32 %v1114, 0.5
        %v1489 = vmul.f32 %v1283, 0.5
        %v1490 = vmul.f32 %v779, 0.5
        %v1491 = vmul.f32 %v948, 0.5
        %v1492 = vmul.f32 %v1117, 0.5
        %v1493 = vmul.f32 %v1286, 0.5
        %v1494 = vmul.f32 %v781, 0.5
        %v1495 = vmul.f32 %v950, 0.5
        %v1496 = vmul.f32 %v1119, 0.5
        %v1497 = vmul.f32 %v1288, 0.5
        %v1498 = vmul.f32 %v784, 0.5
        %v1499 = vmul.f32 %v953, 0.5
        %v1500 = vmul.f32 %v1122, 0.5
        %v1501 = vmul.f32 %v1291, 0.5
        %v1502 = vmul.f32 %v786, 0.5
        %v1503 = vmul.f32 %v955, 0.5
        %v1504 = vmul.f32 %v1124, 0.5
        %v1505 = vmul.f32 %v1293, 0.5
        %v1506 = vmul.f32 %v789, 0.5
        %v1507 = vmul.f32 %v958, 0.5
        %v1508 = vmul.f32 %v1127, 0.5
        %v1509 = vmul.f32 %v1296, 0.5
        %v1510 = vmul.f32 %v791, 0.5
        %v1511 = vmul.f32 %v960, 0.5
        %v1512 = vmul.f32 %v1129, 0.5
        %v1513 = vmul.f32 %v1298, 0.5
        %v1514 = vmul.f32 %v794, 0.5
        %v1515 = vmul.f32 %v963, 0.5
        %v1516 = vmul.f32 %v1132, 0.5
        %v1517 = vmul.f32 %v1301, 0.5
        %v1518 = vmul.f32 %v796, 0.5
        %v1519 = vmul.f32 %v965, 0.5
        %v1520 = vmul.f32 %v1134, 0.5
        %v1521 = vmul.f32 %v1303, 0.5
        %v1522 = vmul.f32 %v799, 0.5
        %v1523 = vmul.f32 %v968, 0.5
        %v1524 = vmul.f32 %v1137, 0.5
        %v1525 = vmul.f32 %v1306, 0.5
        %v1526 = vmul.f32 %v801, 0.5
        %v1527 = vmul.f32 %v970, 0.5
        %v1528 = vmul.f32 %v1139, 0.5
        %v1529 = vmul.f32 %v1308, 0.5
        %v1530 = vmul.f32 %v804, 0.5
        %v1531 = vmul.f32 %v973, 0.5
        %v1532 = vmul.f32 %v1142, 0.5
        %v1533 = vmul.f32 %v1311, 0.5
        %v1534 = vmul.f32 %v806, 0.5
        %v1535 = vmul.f32 %v975, 0.5
        %v1536 = vmul.f32 %v1144, 0.5
        %v1537 = vmul.f32 %v1313, 0.5
        %v1538 = vmul.f32 %v809, 0.5
        %v1539 = vmul.f32 %v978, 0.5
        %v1540 = vmul.f32 %v1147, 0.5
        %v1541 = vmul.f32 %v1316, 0.5
        %v1542 = vmul.f32 %v811, 0.5
        %v1543 = vmul.f32 %v980, 0.5
        %v1544 = vmul.f32 %v1149, 0.5
        %v1545 = vmul.f32 %v1318, 0.5
        %v1546 = vmul.f32 %v814, 0.5
        %v1547 = vmul.f32 %v983, 0.5
        %v1548 = vmul.f32 %v1152, 0.5
        %v1549 = vmul.f32 %v1321, 0.5
        %v1550 = vmul.f32 %v816, 0.5
        %v1551 = vmul.f32 %v985, 0.5
        %v1552 = vmul.f32 %v1154, 0.5
        %v1553 = vmul.f32 %v1323, 0.5
        %v1554 = vmul.f32 %v819, 0.5
        %v1555 = vmul.f32 %v988, 0.5
        %v1556 = vmul.f32 %v1157, 0.5
        %v1557 = vmul.f32 %v1326, 0.5
        %v1558 = vmul.f32 %v821, 0.5
        %v1559 = vmul.f32 %v990, 0.5
        %v1560 = vmul.f32 %v1159, 0.5
        %v1561 = vmul.f32 %v1328, 0.5
        %v1562 = vmul.f32 %v824, 0.5
        %v1563 = vmul.f32 %v993, 0.5
        %v1564 = vmul.f32 %v1162, 0.5
        %v1565 = vmul.f32 %v1331, 0.5
        %v1566 = vmul.f32 %v826, 0.5
        %v1567 = vmul.f32 %v995, 0.5
        %v1568 = vmul.f32 %v1164, 0.5
        %v1569 = vmul.f32 %v1333, 0.5
        %v1570 = vmul.f32 %v829, 0.5
        %v1571 = vmul.f32 %v998, 0.5
        %v1572 = vmul.f32 %v1167, 0.5
        %v1573 = vmul.f32 %v1336, 0.5
        %v1574 = vmul.f32 %v831, 0.5
        %v1575 = vmul.f32 %v1000, 0.5
        %v1576 = vmul.f32 %v1169, 0.5
        %v1577 = vmul.f32 %v1338, 0.5
        %v1578 = vmul.f32 %v834, 0.5
        %v1579 = vmul.f32 %v1003, 0.5
        %v1580 = vmul.f32 %v1172, 0.5
        %v1581 = vmul.f32 %v1341, 0.5
        %v1582 = vmul.f32 %v836, 0.5
        %v1583 = vmul.f32 %v1005, 0.5
        %v1584 = vmul.f32 %v1174, 0.5
        %v1585 = vmul.f32 %v1343, 0.5
        %v1586 = vmul.f32 %v839, 0.5
        %v1587 = vmul.f32 %v1008, 0.5
        %v1588 = vmul.f32 %v1177, 0.5
        %v1589 = vmul.f32 %v1346, 0.5
        %v1590 = vmul.f32 %v841, 0.5
        %v1591 = vmul.f32 %v1010, 0.5
        %v1592 = vmul.f32 %v1179, 0.5
        %v1593 = vmul.f32 %v1348, 0.5
        %v1594 = vmul.f32 %v844, 0.5
        %v1595 = vmul.f32 %v1013, 0.5
        %v1596 = vmul.f32 %v1182, 0.5
        %v1597 = vmul.f32 %v1351, 0.5
        %v1598 = vmul.f32 %v846, 0.5
        %v1599 = vmul.f32 %v1015, 0.5
        %v1600 = vmul.f32 %v1184, 0.5
        %v1601 = vmul.f32 %v1353, 0.5
        %v1602 = vmul.f32 %v849, 0.5
        %v1603 = vmul.f32 %v1018, 0.5
        %v1604 = vmul.f32 %v1187, 0.5
        %v1605 = vmul.f32 %v1356, 0.5
        %v1606 = vmul.f32 %v851, 0.5
        %v1607 = vmul.f32 %v1020, 0.5
        %v1608 = vmul.f32 %v1189, 0.5
        %v1609 = vmul.f32 %v1358, 0.5
        %v1610 = vmul.f32 %v854, 0.5
        %v1611 = vmul.f32 %v1023, 0.5
        %v1612 = vmul.f32 %v1192, 0.5
        %v1613 = vmul.f32 %v1361, 0.5
        %v1614 = vmul.f32 %v856, 0.5
        %v1615 = vmul.f32 %v1025, 0.5
        %v1616 = vmul.f32 %v1194, 0.5
        %v1617 = vmul.f32 %v1363, 0.5
        %v1618 = vmul.f32 %v859, 0.5
        %v1619 = vmul.f32 %v1028, 0.5
        %v1620 = vmul.f32 %v1197, 0.5
        %v1621 = vmul.f32 %v1366, 0.5
        %v1622 = vmul.f32 %v861, 0.5
        %v1623 = vmul.f32 %v1030, 0.5
        %v1624 = vmul.f32 %v1199, 0.5
        %v1625 = vmul.f32 %v1368, 0.5
        %v1626 = vtanh.pop %v1370
        %v1627 = vtanh.pop %v1371
        %v1628 = vtanh.pop %v1372
        %v1629 = vtanh.pop %v1373
        %v1630 = vtanh.pop %v1374
        %v1631 = vtanh.pop %v1375
        %v1632 = vtanh.pop %v1376
        %v1633 = vtanh.pop %v1377
        %v1634 = vtanh.pop %v1378
        %v1635 = vtanh.pop %v1379
        %v1636 = vtanh.pop %v1380
        %v1637 = vtanh.pop %v1381
        %v1638 = vtanh.pop %v1382
        %v1639 = vtanh.pop %v1383
        %v1640 = vtanh.pop %v1384
        %v1641 = vtanh.pop %v1385
        %v1642 = vtanh.pop %v1386
        %v1643 = vtanh.pop %v1387
        %v1644 = vtanh.pop %v1388
        %v1645 = vtanh.pop %v1389
        %v1646 = vtanh.pop %v1390
        %v1647 = vtanh.pop %v1391
        %v1648 = vtanh.pop %v1392
        %v1649 = vtanh.pop %v1393
        %v1650 = vtanh.pop %v1394
        %v1651 = vtanh.pop %v1395
        %v1652 = vtanh.pop %v1396
        %v1653 = vtanh.pop %v1397
        %v1654 = vtanh.pop %v1398
        %v1655 = vtanh.pop %v1399
        %v1656 = vtanh.pop %v1400
        %v1657 = vtanh.pop %v1401
        %v1658 = vtanh.pop %v1402
        %v1659 = vtanh.pop %v1403
        %v1660 = vtanh.pop %v1404
        %v1661 = vtanh.pop %v1405
        %v1662 = vtanh.pop %v1406
        %v1663 = vtanh.pop %v1407
        %v1664 = vtanh.pop %v1408
        %v1665 = vtanh.pop %v1409
        %v1666 = vtanh.pop %v1410
        %v1667 = vtanh.pop %v1411
        %v1668 = vtanh.pop %v1412
        %v1669 = vtanh.pop %v1413
        %v1670 = vtanh.pop %v1414
        %v1671 = vtanh.pop %v1415
        %v1672 = vtanh.pop %v1416
        %v1673 = vtanh.pop %v1417
        %v1674 = vtanh.pop %v1418
        %v1675 = vtanh.pop %v1419
        %v1676 = vtanh.pop %v1420
        %v1677 = vtanh.pop %v1421
        %v1678 = vtanh.pop %v1422
        %v1679 = vtanh.pop %v1423
        %v1680 = vtanh.pop %v1424
        %v1681 = vtanh.pop %v1425
        %v1682 = vtanh.pop %v1426
        %v1683 = vtanh.pop %v1427
        %v1684 = vtanh.pop %v1428
        %v1685 = vtanh.pop %v1429
        %v1686 = vtanh.pop %v1430
        %v1687 = vtanh.pop %v1431
        %v1688 = vtanh.pop %v1432
        %v1689 = vtanh.pop %v1433
        %v1690 = vtanh.pop %v1434
        %v1691 = vtanh.pop %v1435
        %v1692 = vtanh.pop %v1436
        %v1693 = vtanh.pop %v1437
        %v1694 = vtanh.pop %v1438
        %v1695 = vtanh.pop %v1439
        %v1696 = vtanh.pop %v1440
        %v1697 = vtanh.pop %v1441
        %v1698 = vtanh.pop %v1442
        %v1699 = vtanh.pop %v1443
        %v1700 = vtanh.pop %v1444
        %v1701 = vtanh.pop %v1445
        %v1702 = vtanh.pop %v1446
        %v1703 = vtanh.pop %v1447
        %v1704 = vtanh.pop %v1448
        %v1705 = vtanh.pop %v1449
        %v1706 = vtanh.pop %v1450
        %v1707 = vtanh.pop %v1451
        %v1708 = vtanh.pop %v1452
        %v1709 = vtanh.pop %v1453
        %v1710 = vtanh.pop %v1454
        %v1711 = vtanh.pop %v1455
        %v1712 = vtanh.pop %v1456
        %v1713 = vtanh.pop %v1457
        %v1714 = vtanh.pop %v1458
        %v1715 = vtanh.pop %v1459
        %v1716 = vtanh.pop %v1460
        %v1717 = vtanh.pop %v1461
        %v1718 = vtanh.pop %v1462
        %v1719 = vtanh.pop %v1463
        %v1720 = vtanh.pop %v1464
        %v1721 = vtanh.pop %v1465
        %v1722 = vtanh.pop %v1466
        %v1723 = vtanh.pop %v1467
        %v1724 = vtanh.pop %v1468
        %v1725 = vtanh.pop %v1469
        %v1726 = vtanh.pop %v1470
        %v1727 = vtanh.pop %v1471
        %v1728 = vtanh.pop %v1472
        %v1729 = vtanh.pop %v1473
        %v1730 = vtanh.pop %v1474
        %v1731 = vtanh.pop %v1475
        %v1732 = vtanh.pop %v1476
        %v1733 = vtanh.pop %v1477
        %v1734 = vtanh.pop %v1478
        %v1735 = vtanh.pop %v1479
        %v1736 = vtanh.pop %v1480
        %v1737 = vtanh.pop %v1481
        %v1738 = vtanh.pop %v1482
        %v1739 = vtanh.pop %v1483
        %v1740 = vtanh.pop %v1484
        %v1741 = vtanh.pop %v1485
        %v1742 = vtanh.pop %v1486
        %v1743 = vtanh.pop %v1487
        %v1744 = vtanh.pop %v1488
        %v1745 = vtanh.pop %v1489
        %v1746 = vtanh.pop %v1490
        %v1747 = vtanh.pop %v1491
        %v1748 = vtanh.pop %v1492
        %v1749 = vtanh.pop %v1493
        %v1750 = vtanh.pop %v1494
        %v1751 = vtanh.pop %v1495
        %v1752 = vtanh.pop %v1496
        %v1753 = vtanh.pop %v1497
        %v1754 = vtanh.pop %v1498
        %v1755 = vtanh.pop %v1499
        %v1756 = vtanh.pop %v1500
        %v1757 = vtanh.pop %v1501
        %v1758 = vtanh.pop %v1502
        %v1759 = vtanh.pop %v1503
        %v1760 = vtanh.pop %v1504
        %v1761 = vtanh.pop %v1505
        %v1762 = vtanh.pop %v1506
        %v1763 = vtanh.pop %v1507
        %v1764 = vtanh.pop %v1508
        %v1765 = vtanh.pop %v1509
        %v1766 = vtanh.pop %v1510
        %v1767 = vtanh.pop %v1511
        %v1768 = vtanh.pop %v1512
        %v1769 = vtanh.pop %v1513
        %v1770 = vtanh.pop %v1514
        %v1771 = vtanh.pop %v1515
        %v1772 = vtanh.pop %v1516
        %v1773 = vtanh.pop %v1517
        %v1774 = vtanh.pop %v1518
        %v1775 = vtanh.pop %v1519
        %v1776 = vtanh.pop %v1520
        %v1777 = vtanh.pop %v1521
        %v1778 = vtanh.pop %v1522
        %v1779 = vtanh.pop %v1523
        %v1780 = vtanh.pop %v1524
        %v1781 = vtanh.pop %v1525
        %v1782 = vtanh.pop %v1526
        %v1783 = vtanh.pop %v1527
        %v1784 = vtanh.pop %v1528
        %v1785 = vtanh.pop %v1529
        %v1786 = vtanh.pop %v1530
        %v1787 = vtanh.pop %v1531
        %v1788 = vtanh.pop %v1532
        %v1789 = vtanh.pop %v1533
        %v1790 = vtanh.pop %v1534
        %v1791 = vtanh.pop %v1535
        %v1792 = vtanh.pop %v1536
        %v1793 = vtanh.pop %v1537
        %v1794 = vtanh.pop %v1538
        %v1795 = vtanh.pop %v1539
        %v1796 = vtanh.pop %v1540
        %v1797 = vtanh.pop %v1541
        %v1798 = vtanh.pop %v1542
        %v1799 = vtanh.pop %v1543
        %v1800 = vtanh.pop %v1544
        %v1801 = vtanh.pop %v1545
        %v1802 = vtanh.pop %v1546
        %v1803 = vtanh.pop %v1547
        %v1804 = vtanh.pop %v1548
        %v1805 = vtanh.pop %v1549
        %v1806 = vtanh.pop %v1550
        %v1807 = vtanh.pop %v1551
        %v1808 = vtanh.pop %v1552
        %v1809 = vtanh.pop %v1553
        %v1810 = vtanh.pop %v1554
        %v1811 = vtanh.pop %v1555
        %v1812 = vtanh.pop %v1556
        %v1813 = vtanh.pop %v1557
        %v1814 = vtanh.pop %v1558
        %v1815 = vtanh.pop %v1559
        %v1816 = vtanh.pop %v1560
        %v1817 = vtanh.pop %v1561
        %v1818 = vtanh.pop %v1562
        %v1819 = vtanh.pop %v1563
        %v1820 = vtanh.pop %v1564
        %v1821 = vtanh.pop %v1565
        %v1822 = vtanh.pop %v1566
        %v1823 = vtanh.pop %v1567
        %v1824 = vtanh.pop %v1568
        %v1825 = vtanh.pop %v1569
        %v1826 = vtanh.pop %v1570
        %v1827 = vtanh.pop %v1571
        %v1828 = vtanh.pop %v1572
        %v1829 = vtanh.pop %v1573
        %v1830 = vtanh.pop %v1574
        %v1831 = vtanh.pop %v1575
        %v1832 = vtanh.pop %v1576
        %v1833 = vtanh.pop %v1577
        %v1834 = vtanh.pop %v1578
        %v1835 = vtanh.pop %v1579
        %v1836 = vtanh.pop %v1580
        %v1837 = vtanh.pop %v1581
        %v1838 = vtanh.pop %v1582
        %v1839 = vtanh.pop %v1583
        %v1840 = vtanh.pop %v1584
        %v1841 = vtanh.pop %v1585
        %v1842 = vtanh.pop %v1586
        %v1843 = vtanh.pop %v1587
        %v1844 = vtanh.pop %v1588
        %v1845 = vtanh.pop %v1589
        %v1846 = vtanh.pop %v1590
        %v1847 = vtanh.pop %v1591
        %v1848 = vtanh.pop %v1592
        %v1849 = vtanh.pop %v1593
        %v1850 = vtanh.pop %v1594
        %v1851 = vtanh.pop %v1595
        %v1852 = vtanh.pop %v1596
        %v1853 = vtanh.pop %v1597
        %v1854 = vtanh.pop %v1598
        %v1855 = vtanh.pop %v1599
        %v1856 = vtanh.pop %v1600
        %v1857 = vtanh.pop %v1601
        %v1858 = vtanh.pop %v1602
        %v1859 = vtanh.pop %v1603
        %v1860 = vtanh.pop %v1604
        %v1861 = vtanh.pop %v1605
        %v1862 = vtanh.pop %v1606
        %v1863 = vtanh.pop %v1607
        %v1864 = vtanh.pop %v1608
        %v1865 = vtanh.pop %v1609
        %v1866 = vtanh.pop %v1610
        %v1867 = vtanh.pop %v1611
        %v1868 = vtanh.pop %v1612
        %v1869 = vtanh.pop %v1613
        %v1870 = vtanh.pop %v1614
        %v1871 = vtanh.pop %v1615
        %v1872 = vtanh.pop %v1616
        %v1873 = vtanh.pop %v1617
        %v1874 = vtanh.pop %v1618
        %v1875 = vtanh.pop %v1619
        %v1876 = vtanh.pop %v1620
        %v1877 = vtanh.pop %v1621
        %v1878 = vtanh.pop %v1622
        %v1879 = vtanh.pop %v1623
        %v1880 = vtanh.pop %v1624
        %v1881 = vtanh.pop %v1625
        %v1882 = vmul.f32 %v1626, 0.5
        %v1883 = vmul.f32 %v1627, 0.5
        %v1884 = vmul.f32 %v1628, 0.5
        %v1885 = vmul.f32 %v1629, 0.5
        %v1886 = vmul.f32 %v1630, 0.5
        %v1887 = vmul.f32 %v1631, 0.5
        %v1888 = vmul.f32 %v1632, 0.5
        %v1889 = vmul.f32 %v1633, 0.5
        %v1890 = vmul.f32 %v1634, 0.5
        %v1891 = vmul.f32 %v1635, 0.5
        %v1892 = vmul.f32 %v1636, 0.5
        %v1893 = vmul.f32 %v1637, 0.5
        %v1894 = vmul.f32 %v1638, 0.5
        %v1895 = vmul.f32 %v1639, 0.5
        %v1896 = vmul.f32 %v1640, 0.5
        %v1897 = vmul.f32 %v1641, 0.5
        %v1898 = vmul.f32 %v1642, 0.5
        %v1899 = vmul.f32 %v1643, 0.5
        %v1900 = vmul.f32 %v1644, 0.5
        %v1901 = vmul.f32 %v1645, 0.5
        %v1902 = vmul.f32 %v1646, 0.5
        %v1903 = vmul.f32 %v1647, 0.5
        %v1904 = vmul.f32 %v1648, 0.5
        %v1905 = vmul.f32 %v1649, 0.5
        %v1906 = vmul.f32 %v1650, 0.5
        %v1907 = vmul.f32 %v1651, 0.5
        %v1908 = vmul.f32 %v1652, 0.5
        %v1909 = vmul.f32 %v1653, 0.5
        %v1910 = vmul.f32 %v1654, 0.5
        %v1911 = vmul.f32 %v1655, 0.5
        %v1912 = vmul.f32 %v1656, 0.5
        %v1913 = vmul.f32 %v1657, 0.5
        %v1914 = vmul.f32 %v1658, 0.5
        %v1915 = vmul.f32 %v1659, 0.5
        %v1916 = vmul.f32 %v1660, 0.5
        %v1917 = vmul.f32 %v1661, 0.5
        %v1918 = vmul.f32 %v1662, 0.5
        %v1919 = vmul.f32 %v1663, 0.5
        %v1920 = vmul.f32 %v1664, 0.5
        %v1921 = vmul.f32 %v1665, 0.5
        %v1922 = vmul.f32 %v1666, 0.5
        %v1923 = vmul.f32 %v1667, 0.5
        %v1924 = vmul.f32 %v1668, 0.5
        %v1925 = vmul.f32 %v1669, 0.5
        %v1926 = vmul.f32 %v1670, 0.5
        %v1927 = vmul.f32 %v1671, 0.5
        %v1928 = vmul.f32 %v1672, 0.5
        %v1929 = vmul.f32 %v1673, 0.5
        %v1930 = vmul.f32 %v1674, 0.5
        %v1931 = vmul.f32 %v1675, 0.5
        %v1932 = vmul.f32 %v1676, 0.5
        %v1933 = vmul.f32 %v1677, 0.5
        %v1934 = vmul.f32 %v1678, 0.5
        %v1935 = vmul.f32 %v1679, 0.5
        %v1936 = vmul.f32 %v1680, 0.5
        %v1937 = vmul.f32 %v1681, 0.5
        %v1938 = vmul.f32 %v1682, 0.5
        %v1939 = vmul.f32 %v1683, 0.5
        %v1940 = vmul.f32 %v1684, 0.5
        %v1941 = vmul.f32 %v1685, 0.5
        %v1942 = vmul.f32 %v1686, 0.5
        %v1943 = vmul.f32 %v1687, 0.5
        %v1944 = vmul.f32 %v1688, 0.5
        %v1945 = vmul.f32 %v1689, 0.5
        %v1946 = vmul.f32 %v1690, 0.5
        %v1947 = vmul.f32 %v1691, 0.5
        %v1948 = vmul.f32 %v1692, 0.5
        %v1949 = vmul.f32 %v1693, 0.5
        %v1950 = vmul.f32 %v1694, 0.5
        %v1951 = vmul.f32 %v1695, 0.5
        %v1952 = vmul.f32 %v1696, 0.5
        %v1953 = vmul.f32 %v1697, 0.5
        %v1954 = vmul.f32 %v1698, 0.5
        %v1955 = vmul.f32 %v1699, 0.5
        %v1956 = vmul.f32 %v1700, 0.5
        %v1957 = vmul.f32 %v1701, 0.5
        %v1958 = vmul.f32 %v1702, 0.5
        %v1959 = vmul.f32 %v1703, 0.5
        %v1960 = vmul.f32 %v1704, 0.5
        %v1961 = vmul.f32 %v1705, 0.5
        %v1962 = vmul.f32 %v1706, 0.5
        %v1963 = vmul.f32 %v1707, 0.5
        %v1964 = vmul.f32 %v1708, 0.5
        %v1965 = vmul.f32 %v1709, 0.5
        %v1966 = vmul.f32 %v1710, 0.5
        %v1967 = vmul.f32 %v1711, 0.5
        %v1968 = vmul.f32 %v1712, 0.5
        %v1969 = vmul.f32 %v1713, 0.5
        %v1970 = vmul.f32 %v1714, 0.5
        %v1971 = vmul.f32 %v1715, 0.5
        %v1972 = vmul.f32 %v1716, 0.5
        %v1973 = vmul.f32 %v1717, 0.5
        %v1974 = vmul.f32 %v1718, 0.5
        %v1975 = vmul.f32 %v1719, 0.5
        %v1976 = vmul.f32 %v1720, 0.5
        %v1977 = vmul.f32 %v1721, 0.5
        %v1978 = vmul.f32 %v1722, 0.5
        %v1979 = vmul.f32 %v1723, 0.5
        %v1980 = vmul.f32 %v1724, 0.5
        %v1981 = vmul.f32 %v1725, 0.5
        %v1982 = vmul.f32 %v1726, 0.5
        %v1983 = vmul.f32 %v1727, 0.5
        %v1984 = vmul.f32 %v1728, 0.5
        %v1985 = vmul.f32 %v1729, 0.5
        %v1986 = vmul.f32 %v1730, 0.5
        %v1987 = vmul.f32 %v1731, 0.5
        %v1988 = vmul.f32 %v1732, 0.5
        %v1989 = vmul.f32 %v1733, 0.5
        %v1990 = vmul.f32 %v1734, 0.5
        %v1991 = vmul.f32 %v1735, 0.5
        %v1992 = vmul.f32 %v1736, 0.5
        %v1993 = vmul.f32 %v1737, 0.5
        %v1994 = vmul.f32 %v1738, 0.5
        %v1995 = vmul.f32 %v1739, 0.5
        %v1996 = vmul.f32 %v1740, 0.5
        %v1997 = vmul.f32 %v1741, 0.5
        %v1998 = vmul.f32 %v1742, 0.5
        %v1999 = vmul.f32 %v1743, 0.5
        %v2000 = vmul.f32 %v1744, 0.5
        %v2001 = vmul.f32 %v1745, 0.5
        %v2002 = vmul.f32 %v1746, 0.5
        %v2003 = vmul.f32 %v1747, 0.5
        %v2004 = vmul.f32 %v1748, 0.5
        %v2005 = vmul.f32 %v1749, 0.5
        %v2006 = vmul.f32 %v1750, 0.5
        %v2007 = vmul.f32 %v1751, 0.5
        %v2008 = vmul.f32 %v1752, 0.5
        %v2009 = vmul.f32 %v1753, 0.5
        %v2010 = vmul.f32 %v1754, 0.5
        %v2011 = vmul.f32 %v1755, 0.5
        %v2012 = vmul.f32 %v1756, 0.5
        %v2013 = vmul.f32 %v1757, 0.5
        %v2014 = vmul.f32 %v1758, 0.5
        %v2015 = vmul.f32 %v1759, 0.5
        %v2016 = vmul.f32 %v1760, 0.5
        %v2017 = vmul.f32 %v1761, 0.5
        %v2018 = vmul.f32 %v1762, 0.5
        %v2019 = vmul.f32 %v1763, 0.5
        %v2020 = vmul.f32 %v1764, 0.5
        %v2021 = vmul.f32 %v1765, 0.5
        %v2022 = vmul.f32 %v1766, 0.5
        %v2023 = vmul.f32 %v1767, 0.5
        %v2024 = vmul.f32 %v1768, 0.5
        %v2025 = vmul.f32 %v1769, 0.5
        %v2026 = vmul.f32 %v1770, 0.5
        %v2027 = vmul.f32 %v1771, 0.5
        %v2028 = vmul.f32 %v1772, 0.5
        %v2029 = vmul.f32 %v1773, 0.5
        %v2030 = vmul.f32 %v1774, 0.5
        %v2031 = vmul.f32 %v1775, 0.5
        %v2032 = vmul.f32 %v1776, 0.5
        %v2033 = vmul.f32 %v1777, 0.5
        %v2034 = vmul.f32 %v1778, 0.5
        %v2035 = vmul.f32 %v1779, 0.5
        %v2036 = vmul.f32 %v1780, 0.5
        %v2037 = vmul.f32 %v1781, 0.5
        %v2038 = vmul.f32 %v1782, 0.5
        %v2039 = vmul.f32 %v1783, 0.5
        %v2040 = vmul.f32 %v1784, 0.5
        %v2041 = vmul.f32 %v1785, 0.5
        %v2042 = vmul.f32 %v1786, 0.5
        %v2043 = vmul.f32 %v1787, 0.5
        %v2044 = vmul.f32 %v1788, 0.5
        %v2045 = vmul.f32 %v1789, 0.5
        %v2046 = vmul.f32 %v1790, 0.5
        %v2047 = vmul.f32 %v1791, 0.5
        %v2048 = vmul.f32 %v1792, 0.5
        %v2049 = vmul.f32 %v1793, 0.5
        %v2050 = vmul.f32 %v1794, 0.5
        %v2051 = vmul.f32 %v1795, 0.5
        %v2052 = vmul.f32 %v1796, 0.5
        %v2053 = vmul.f32 %v1797, 0.5
        %v2054 = vmul.f32 %v1798, 0.5
        %v2055 = vmul.f32 %v1799, 0.5
        %v2056 = vmul.f32 %v1800, 0.5
        %v2057 = vmul.f32 %v1801, 0.5
        %v2058 = vmul.f32 %v1802, 0.5
        %v2059 = vmul.f32 %v1803, 0.5
        %v2060 = vmul.f32 %v1804, 0.5
        %v2061 = vmul.f32 %v1805, 0.5
        %v2062 = vmul.f32 %v1806, 0.5
        %v2063 = vmul.f32 %v1807, 0.5
        %v2064 = vmul.f32 %v1808, 0.5
        %v2065 = vmul.f32 %v1809, 0.5
        %v2066 = vmul.f32 %v1810, 0.5
        %v2067 = vmul.f32 %v1811, 0.5
        %v2068 = vmul.f32 %v1812, 0.5
        %v2069 = vmul.f32 %v1813, 0.5
        %v2070 = vmul.f32 %v1814, 0.5
        %v2071 = vmul.f32 %v1815, 0.5
        %v2072 = vmul.f32 %v1816, 0.5
        %v2073 = vmul.f32 %v1817, 0.5
        %v2074 = vmul.f32 %v1818, 0.5
        %v2075 = vmul.f32 %v1819, 0.5
        %v2076 = vmul.f32 %v1820, 0.5
        %v2077 = vmul.f32 %v1821, 0.5
        %v2078 = vmul.f32 %v1822, 0.5
        %v2079 = vmul.f32 %v1823, 0.5
        %v2080 = vmul.f32 %v1824, 0.5
        %v2081 = vmul.f32 %v1825, 0.5
        %v2082 = vmul.f32 %v1826, 0.5
        %v2083 = vmul.f32 %v1827, 0.5
        %v2084 = vmul.f32 %v1828, 0.5
        %v2085 = vmul.f32 %v1829, 0.5
        %v2086 = vmul.f32 %v1830, 0.5
        %v2087 = vmul.f32 %v1831, 0.5
        %v2088 = vmul.f32 %v1832, 0.5
        %v2089 = vmul.f32 %v1833, 0.5
        %v2090 = vmul.f32 %v1834, 0.5
        %v2091 = vmul.f32 %v1835, 0.5
        %v2092 = vmul.f32 %v1836, 0.5
        %v2093 = vmul.f32 %v1837, 0.5
        %v2094 = vmul.f32 %v1838, 0.5
        %v2095 = vmul.f32 %v1839, 0.5
        %v2096 = vmul.f32 %v1840, 0.5
        %v2097 = vmul.f32 %v1841, 0.5
        %v2098 = vmul.f32 %v1842, 0.5
        %v2099 = vmul.f32 %v1843, 0.5
        %v2100 = vmul.f32 %v1844, 0.5
        %v2101 = vmul.f32 %v1845, 0.5
        %v2102 = vmul.f32 %v1846, 0.5
        %v2103 = vmul.f32 %v1847, 0.5
        %v2104 = vmul.f32 %v1848, 0.5
        %v2105 = vmul.f32 %v1849, 0.5
        %v2106 = vmul.f32 %v1850, 0.5
        %v2107 = vmul.f32 %v1851, 0.5
        %v2108 = vmul.f32 %v1852, 0.5
        %v2109 = vmul.f32 %v1853, 0.5
        %v2110 = vmul.f32 %v1854, 0.5
        %v2111 = vmul.f32 %v1855, 0.5
        %v2112 = vmul.f32 %v1856, 0.5
        %v2113 = vmul.f32 %v1857, 0.5
        %v2114 = vmul.f32 %v1858, 0.5
        %v2115 = vmul.f32 %v1859, 0.5
        %v2116 = vmul.f32 %v1860, 0.5
        %v2117 = vmul.f32 %v1861, 0.5
        %v2118 = vmul.f32 %v1862, 0.5
        %v2119 = vmul.f32 %v1863, 0.5
        %v2120 = vmul.f32 %v1864, 0.5
        %v2121 = vmul.f32 %v1865, 0.5
        %v2122 = vmul.f32 %v1866, 0.5
        %v2123 = vmul.f32 %v1867, 0.5
        %v2124 = vmul.f32 %v1868, 0.5
        %v2125 = vmul.f32 %v1869, 0.5
        %v2126 = vmul.f32 %v1870, 0.5
        %v2127 = vmul.f32 %v1871, 0.5
        %v2128 = vmul.f32 %v1872, 0.5
        %v2129 = vmul.f32 %v1873, 0.5
        %v2130 = vmul.f32 %v1874, 0.5
        %v2131 = vmul.f32 %v1875, 0.5
        %v2132 = vmul.f32 %v1876, 0.5
        %v2133 = vmul.f32 %v1877, 0.5
        %v2134 = vmul.f32 %v1878, 0.5
        %v2135 = vmul.f32 %v1879, 0.5
        %v2136 = vmul.f32 %v1880, 0.5
        %v2137 = vmul.f32 %v1881, 0.5
        %v2138 = vadd.f32 %v1882, 0.5
        %v2139 = vadd.f32 %v1883, 0.5
        %v2140 = vadd.f32 %v1884, 0.5
        %v2141 = vadd.f32 %v1885, 0.5
        %v2142 = vadd.f32 %v1886, 0.5
        %v2143 = vadd.f32 %v1887, 0.5
        %v2144 = vadd.f32 %v1888, 0.5
        %v2145 = vadd.f32 %v1889, 0.5
        %v2146 = vadd.f32 %v1890, 0.5
        %v2147 = vadd.f32 %v1891, 0.5
        %v2148 = vadd.f32 %v1892, 0.5
        %v2149 = vadd.f32 %v1893, 0.5
        %v2150 = vadd.f32 %v1894, 0.5
        %v2151 = vadd.f32 %v1895, 0.5
        %v2152 = vadd.f32 %v1896, 0.5
        %v2153 = vadd.f32 %v1897, 0.5
        %v2154 = vadd.f32 %v1898, 0.5
        %v2155 = vadd.f32 %v1899, 0.5
        %v2156 = vadd.f32 %v1900, 0.5
        %v2157 = vadd.f32 %v1901, 0.5
        %v2158 = vadd.f32 %v1902, 0.5
        %v2159 = vadd.f32 %v1903, 0.5
        %v2160 = vadd.f32 %v1904, 0.5
        %v2161 = vadd.f32 %v1905, 0.5
        %v2162 = vadd.f32 %v1906, 0.5
        %v2163 = vadd.f32 %v1907, 0.5
        %v2164 = vadd.f32 %v1908, 0.5
        %v2165 = vadd.f32 %v1909, 0.5
        %v2166 = vadd.f32 %v1910, 0.5
        %v2167 = vadd.f32 %v1911, 0.5
        %v2168 = vadd.f32 %v1912, 0.5
        %v2169 = vadd.f32 %v1913, 0.5
        %v2170 = vadd.f32 %v1914, 0.5
        %v2171 = vadd.f32 %v1915, 0.5
        %v2172 = vadd.f32 %v1916, 0.5
        %v2173 = vadd.f32 %v1917, 0.5
        %v2174 = vadd.f32 %v1918, 0.5
        %v2175 = vadd.f32 %v1919, 0.5
        %v2176 = vadd.f32 %v1920, 0.5
        %v2177 = vadd.f32 %v1921, 0.5
        %v2178 = vadd.f32 %v1922, 0.5
        %v2179 = vadd.f32 %v1923, 0.5
        %v2180 = vadd.f32 %v1924, 0.5
        %v2181 = vadd.f32 %v1925, 0.5
        %v2182 = vadd.f32 %v1926, 0.5
        %v2183 = vadd.f32 %v1927, 0.5
        %v2184 = vadd.f32 %v1928, 0.5
        %v2185 = vadd.f32 %v1929, 0.5
        %v2186 = vadd.f32 %v1930, 0.5
        %v2187 = vadd.f32 %v1931, 0.5
        %v2188 = vadd.f32 %v1932, 0.5
        %v2189 = vadd.f32 %v1933, 0.5
        %v2190 = vadd.f32 %v1934, 0.5
        %v2191 = vadd.f32 %v1935, 0.5
        %v2192 = vadd.f32 %v1936, 0.5
        %v2193 = vadd.f32 %v1937, 0.5
        %v2194 = vadd.f32 %v1938, 0.5
        %v2195 = vadd.f32 %v1939, 0.5
        %v2196 = vadd.f32 %v1940, 0.5
        %v2197 = vadd.f32 %v1941, 0.5
        %v2198 = vadd.f32 %v1942, 0.5
        %v2199 = vadd.f32 %v1943, 0.5
        %v2200 = vadd.f32 %v1944, 0.5
        %v2201 = vadd.f32 %v1945, 0.5
        %v2202 = vadd.f32 %v1946, 0.5
        %v2203 = vadd.f32 %v1947, 0.5
        %v2204 = vadd.f32 %v1948, 0.5
        %v2205 = vadd.f32 %v1949, 0.5
        %v2206 = vadd.f32 %v1950, 0.5
        %v2207 = vadd.f32 %v1951, 0.5
        %v2208 = vadd.f32 %v1952, 0.5
        %v2209 = vadd.f32 %v1953, 0.5
        %v2210 = vadd.f32 %v1954, 0.5
        %v2211 = vadd.f32 %v1955, 0.5
        %v2212 = vadd.f32 %v1956, 0.5
        %v2213 = vadd.f32 %v1957, 0.5
        %v2214 = vadd.f32 %v1958, 0.5
        %v2215 = vadd.f32 %v1959, 0.5
        %v2216 = vadd.f32 %v1960, 0.5
        %v2217 = vadd.f32 %v1961, 0.5
        %v2218 = vadd.f32 %v1962, 0.5
        %v2219 = vadd.f32 %v1963, 0.5
        %v2220 = vadd.f32 %v1964, 0.5
        %v2221 = vadd.f32 %v1965, 0.5
        %v2222 = vadd.f32 %v1966, 0.5
        %v2223 = vadd.f32 %v1967, 0.5
        %v2224 = vadd.f32 %v1968, 0.5
        %v2225 = vadd.f32 %v1969, 0.5
        %v2226 = vadd.f32 %v1970, 0.5
        %v2227 = vadd.f32 %v1971, 0.5
        %v2228 = vadd.f32 %v1972, 0.5
        %v2229 = vadd.f32 %v1973, 0.5
        %v2230 = vadd.f32 %v1974, 0.5
        %v2231 = vadd.f32 %v1975, 0.5
        %v2232 = vadd.f32 %v1976, 0.5
        %v2233 = vadd.f32 %v1977, 0.5
        %v2234 = vadd.f32 %v1978, 0.5
        %v2235 = vadd.f32 %v1979, 0.5
        %v2236 = vadd.f32 %v1980, 0.5
        %v2237 = vadd.f32 %v1981, 0.5
        %v2238 = vadd.f32 %v1982, 0.5
        %v2239 = vadd.f32 %v1983, 0.5
        %v2240 = vadd.f32 %v1984, 0.5
        %v2241 = vadd.f32 %v1985, 0.5
        %v2242 = vadd.f32 %v1986, 0.5
        %v2243 = vadd.f32 %v1987, 0.5
        %v2244 = vadd.f32 %v1988, 0.5
        %v2245 = vadd.f32 %v1989, 0.5
        %v2246 = vadd.f32 %v1990, 0.5
        %v2247 = vadd.f32 %v1991, 0.5
        %v2248 = vadd.f32 %v1992, 0.5
        %v2249 = vadd.f32 %v1993, 0.5
        %v2250 = vadd.f32 %v1994, 0.5
        %v2251 = vadd.f32 %v1995, 0.5
        %v2252 = vadd.f32 %v1996, 0.5
        %v2253 = vadd.f32 %v1997, 0.5
        %v2254 = vadd.f32 %v1998, 0.5
        %v2255 = vadd.f32 %v1999, 0.5
        %v2256 = vadd.f32 %v2000, 0.5
        %v2257 = vadd.f32 %v2001, 0.5
        %v2258 = vadd.f32 %v2002, 0.5
        %v2259 = vadd.f32 %v2003, 0.5
        %v2260 = vadd.f32 %v2004, 0.5
        %v2261 = vadd.f32 %v2005, 0.5
        %v2262 = vadd.f32 %v2006, 0.5
        %v2263 = vadd.f32 %v2007, 0.5
        %v2264 = vadd.f32 %v2008, 0.5
        %v2265 = vadd.f32 %v2009, 0.5
        %v2266 = vadd.f32 %v2010, 0.5
        %v2267 = vadd.f32 %v2011, 0.5
        %v2268 = vadd.f32 %v2012, 0.5
        %v2269 = vadd.f32 %v2013, 0.5
        %v2270 = vadd.f32 %v2014, 0.5
        %v2271 = vadd.f32 %v2015, 0.5
        %v2272 = vadd.f32 %v2016, 0.5
        %v2273 = vadd.f32 %v2017, 0.5
        %v2274 = vadd.f32 %v2018, 0.5
        %v2275 = vadd.f32 %v2019, 0.5
        %v2276 = vadd.f32 %v2020, 0.5
        %v2277 = vadd.f32 %v2021, 0.5
        %v2278 = vadd.f32 %v2022, 0.5
        %v2279 = vadd.f32 %v2023, 0.5
        %v2280 = vadd.f32 %v2024, 0.5
        %v2281 = vadd.f32 %v2025, 0.5
        %v2282 = vadd.f32 %v2026, 0.5
        %v2283 = vadd.f32 %v2027, 0.5
        %v2284 = vadd.f32 %v2028, 0.5
        %v2285 = vadd.f32 %v2029, 0.5
        %v2286 = vadd.f32 %v2030, 0.5
        %v2287 = vadd.f32 %v2031, 0.5
        %v2288 = vadd.f32 %v2032, 0.5
        %v2289 = vadd.f32 %v2033, 0.5
        %v2290 = vadd.f32 %v2034, 0.5
        %v2291 = vadd.f32 %v2035, 0.5
        %v2292 = vadd.f32 %v2036, 0.5
        %v2293 = vadd.f32 %v2037, 0.5
        %v2294 = vadd.f32 %v2038, 0.5
        %v2295 = vadd.f32 %v2039, 0.5
        %v2296 = vadd.f32 %v2040, 0.5
        %v2297 = vadd.f32 %v2041, 0.5
        %v2298 = vadd.f32 %v2042, 0.5
        %v2299 = vadd.f32 %v2043, 0.5
        %v2300 = vadd.f32 %v2044, 0.5
        %v2301 = vadd.f32 %v2045, 0.5
        %v2302 = vadd.f32 %v2046, 0.5
        %v2303 = vadd.f32 %v2047, 0.5
        %v2304 = vadd.f32 %v2048, 0.5
        %v2305 = vadd.f32 %v2049, 0.5
        %v2306 = vadd.f32 %v2050, 0.5
        %v2307 = vadd.f32 %v2051, 0.5
        %v2308 = vadd.f32 %v2052, 0.5
        %v2309 = vadd.f32 %v2053, 0.5
        %v2310 = vadd.f32 %v2054, 0.5
        %v2311 = vadd.f32 %v2055, 0.5
        %v2312 = vadd.f32 %v2056, 0.5
        %v2313 = vadd.f32 %v2057, 0.5
        %v2314 = vadd.f32 %v2058, 0.5
        %v2315 = vadd.f32 %v2059, 0.5
        %v2316 = vadd.f32 %v2060, 0.5
        %v2317 = vadd.f32 %v2061, 0.5
        %v2318 = vadd.f32 %v2062, 0.5
        %v2319 = vadd.f32 %v2063, 0.5
        %v2320 = vadd.f32 %v2064, 0.5
        %v2321 = vadd.f32 %v2065, 0.5
        %v2322 = vadd.f32 %v2066, 0.5
        %v2323 = vadd.f32 %v2067, 0.5
        %v2324 = vadd.f32 %v2068, 0.5
        %v2325 = vadd.f32 %v2069, 0.5
        %v2326 = vadd.f32 %v2070, 0.5
        %v2327 = vadd.f32 %v2071, 0.5
        %v2328 = vadd.f32 %v2072, 0.5
        %v2329 = vadd.f32 %v2073, 0.5
        %v2330 = vadd.f32 %v2074, 0.5
        %v2331 = vadd.f32 %v2075, 0.5
        %v2332 = vadd.f32 %v2076, 0.5
        %v2333 = vadd.f32 %v2077, 0.5
        %v2334 = vadd.f32 %v2078, 0.5
        %v2335 = vadd.f32 %v2079, 0.5
        %v2336 = vadd.f32 %v2080, 0.5
        %v2337 = vadd.f32 %v2081, 0.5
        %v2338 = vadd.f32 %v2082, 0.5
        %v2339 = vadd.f32 %v2083, 0.5
        %v2340 = vadd.f32 %v2084, 0.5
        %v2341 = vadd.f32 %v2085, 0.5
        %v2342 = vadd.f32 %v2086, 0.5
        %v2343 = vadd.f32 %v2087, 0.5
        %v2344 = vadd.f32 %v2088, 0.5
        %v2345 = vadd.f32 %v2089, 0.5
        %v2346 = vadd.f32 %v2090, 0.5
        %v2347 = vadd.f32 %v2091, 0.5
        %v2348 = vadd.f32 %v2092, 0.5
        %v2349 = vadd.f32 %v2093, 0.5
        %v2350 = vadd.f32 %v2094, 0.5
        %v2351 = vadd.f32 %v2095, 0.5
        %v2352 = vadd.f32 %v2096, 0.5
        %v2353 = vadd.f32 %v2097, 0.5
        %v2354 = vadd.f32 %v2098, 0.5
        %v2355 = vadd.f32 %v2099, 0.5
        %v2356 = vadd.f32 %v2100, 0.5
        %v2357 = vadd.f32 %v2101, 0.5
        %v2358 = vadd.f32 %v2102, 0.5
        %v2359 = vadd.f32 %v2103, 0.5
        %v2360 = vadd.f32 %v2104, 0.5
        %v2361 = vadd.f32 %v2105, 0.5
        %v2362 = vadd.f32 %v2106, 0.5
        %v2363 = vadd.f32 %v2107, 0.5
        %v2364 = vadd.f32 %v2108, 0.5
        %v2365 = vadd.f32 %v2109, 0.5
        %v2366 = vadd.f32 %v2110, 0.5
        %v2367 = vadd.f32 %v2111, 0.5
        %v2368 = vadd.f32 %v2112, 0.5
        %v2369 = vadd.f32 %v2113, 0.5
        %v2370 = vadd.f32 %v2114, 0.5
        %v2371 = vadd.f32 %v2115, 0.5
        %v2372 = vadd.f32 %v2116, 0.5
        %v2373 = vadd.f32 %v2117, 0.5
        %v2374 = vadd.f32 %v2118, 0.5
        %v2375 = vadd.f32 %v2119, 0.5
        %v2376 = vadd.f32 %v2120, 0.5
        %v2377 = vadd.f32 %v2121, 0.5
        %v2378 = vadd.f32 %v2122, 0.5
        %v2379 = vadd.f32 %v2123, 0.5
        %v2380 = vadd.f32 %v2124, 0.5
        %v2381 = vadd.f32 %v2125, 0.5
        %v2382 = vadd.f32 %v2126, 0.5
        %v2383 = vadd.f32 %v2127, 0.5
        %v2384 = vadd.f32 %v2128, 0.5
        %v2385 = vadd.f32 %v2129, 0.5
        %v2386 = vadd.f32 %v2130, 0.5
        %v2387 = vadd.f32 %v2131, 0.5
        %v2388 = vadd.f32 %v2132, 0.5
        %v2389 = vadd.f32 %v2133, 0.5
        %v2390 = vadd.f32 %v2134, 0.5
        %v2391 = vadd.f32 %v2135, 0.5
        %v2392 = vadd.f32 %v2136, 0.5
        %v2393 = vadd.f32 %v2137, 0.5
        %v2394 = vmax.f32 %v2138, 0.0
        %v2395 = vmax.f32 %v2139, 0.0
        %v2396 = vmax.f32 %v2140, 0.0
        %v2397 = vmax.f32 %v2141, 0.0
        %v2398 = vmax.f32 %v2142, 0.0
        %v2399 = vmax.f32 %v2143, 0.0
        %v2400 = vmax.f32 %v2144, 0.0
        %v2401 = vmax.f32 %v2145, 0.0
        %v2402 = vmax.f32 %v2146, 0.0
        %v2403 = vmax.f32 %v2147, 0.0
        %v2404 = vmax.f32 %v2148, 0.0
        %v2405 = vmax.f32 %v2149, 0.0
        %v2406 = vmax.f32 %v2150, 0.0
        %v2407 = vmax.f32 %v2151, 0.0
        %v2408 = vmax.f32 %v2152, 0.0
        %v2409 = vmax.f32 %v2153, 0.0
        %v2410 = vmax.f32 %v2154, 0.0
        %v2411 = vmax.f32 %v2155, 0.0
        %v2412 = vmax.f32 %v2156, 0.0
        %v2413 = vmax.f32 %v2157, 0.0
        %v2414 = vmax.f32 %v2158, 0.0
        %v2415 = vmax.f32 %v2159, 0.0
        %v2416 = vmax.f32 %v2160, 0.0
        %v2417 = vmax.f32 %v2161, 0.0
        %v2418 = vmax.f32 %v2162, 0.0
        %v2419 = vmax.f32 %v2163, 0.0
        %v2420 = vmax.f32 %v2164, 0.0
        %v2421 = vmax.f32 %v2165, 0.0
        %v2422 = vmax.f32 %v2166, 0.0
        %v2423 = vmax.f32 %v2167, 0.0
        %v2424 = vmax.f32 %v2168, 0.0
        %v2425 = vmax.f32 %v2169, 0.0
        %v2426 = vmax.f32 %v2170, 0.0
        %v2427 = vmax.f32 %v2171, 0.0
        %v2428 = vmax.f32 %v2172, 0.0
        %v2429 = vmax.f32 %v2173, 0.0
        %v2430 = vmax.f32 %v2174, 0.0
        %v2431 = vmax.f32 %v2175, 0.0
        %v2432 = vmax.f32 %v2176, 0.0
        %v2433 = vmax.f32 %v2177, 0.0
        %v2434 = vmax.f32 %v2178, 0.0
        %v2435 = vmax.f32 %v2179, 0.0
        %v2436 = vmax.f32 %v2180, 0.0
        %v2437 = vmax.f32 %v2181, 0.0
        %v2438 = vmax.f32 %v2182, 0.0
        %v2439 = vmax.f32 %v2183, 0.0
        %v2440 = vmax.f32 %v2184, 0.0
        %v2441 = vmax.f32 %v2185, 0.0
        %v2442 = vmax.f32 %v2186, 0.0
        %v2443 = vmax.f32 %v2187, 0.0
        %v2444 = vmax.f32 %v2188, 0.0
        %v2445 = vmax.f32 %v2189, 0.0
        %v2446 = vmax.f32 %v2190, 0.0
        %v2447 = vmax.f32 %v2191, 0.0
        %v2448 = vmax.f32 %v2192, 0.0
        %v2449 = vmax.f32 %v2193, 0.0
        %v2450 = vmax.f32 %v2194, 0.0
        %v2451 = vmax.f32 %v2195, 0.0
        %v2452 = vmax.f32 %v2196, 0.0
        %v2453 = vmax.f32 %v2197, 0.0
        %v2454 = vmax.f32 %v2198, 0.0
        %v2455 = vmax.f32 %v2199, 0.0
        %v2456 = vmax.f32 %v2200, 0.0
        %v2457 = vmax.f32 %v2201, 0.0
        %v2458 = vmax.f32 %v2202, 0.0
        %v2459 = vmax.f32 %v2203, 0.0
        %v2460 = vmax.f32 %v2204, 0.0
        %v2461 = vmax.f32 %v2205, 0.0
        %v2462 = vmax.f32 %v2206, 0.0
        %v2463 = vmax.f32 %v2207, 0.0
        %v2464 = vmax.f32 %v2208, 0.0
        %v2465 = vmax.f32 %v2209, 0.0
        %v2466 = vmax.f32 %v2210, 0.0
        %v2467 = vmax.f32 %v2211, 0.0
        %v2468 = vmax.f32 %v2212, 0.0
        %v2469 = vmax.f32 %v2213, 0.0
        %v2470 = vmax.f32 %v2214, 0.0
        %v2471 = vmax.f32 %v2215, 0.0
        %v2472 = vmax.f32 %v2216, 0.0
        %v2473 = vmax.f32 %v2217, 0.0
        %v2474 = vmax.f32 %v2218, 0.0
        %v2475 = vmax.f32 %v2219, 0.0
        %v2476 = vmax.f32 %v2220, 0.0
        %v2477 = vmax.f32 %v2221, 0.0
        %v2478 = vmax.f32 %v2222, 0.0
        %v2479 = vmax.f32 %v2223, 0.0
        %v2480 = vmax.f32 %v2224, 0.0
        %v2481 = vmax.f32 %v2225, 0.0
        %v2482 = vmax.f32 %v2226, 0.0
        %v2483 = vmax.f32 %v2227, 0.0
        %v2484 = vmax.f32 %v2228, 0.0
        %v2485 = vmax.f32 %v2229, 0.0
        %v2486 = vmax.f32 %v2230, 0.0
        %v2487 = vmax.f32 %v2231, 0.0
        %v2488 = vmax.f32 %v2232, 0.0
        %v2489 = vmax.f32 %v2233, 0.0
        %v2490 = vmax.f32 %v2234, 0.0
        %v2491 = vmax.f32 %v2235, 0.0
        %v2492 = vmax.f32 %v2236, 0.0
        %v2493 = vmax.f32 %v2237, 0.0
        %v2494 = vmax.f32 %v2238, 0.0
        %v2495 = vmax.f32 %v2239, 0.0
        %v2496 = vmax.f32 %v2240, 0.0
        %v2497 = vmax.f32 %v2241, 0.0
        %v2498 = vmax.f32 %v2242, 0.0
        %v2499 = vmax.f32 %v2243, 0.0
        %v2500 = vmax.f32 %v2244, 0.0
        %v2501 = vmax.f32 %v2245, 0.0
        %v2502 = vmax.f32 %v2246, 0.0
        %v2503 = vmax.f32 %v2247, 0.0
        %v2504 = vmax.f32 %v2248, 0.0
        %v2505 = vmax.f32 %v2249, 0.0
        %v2506 = vmax.f32 %v2250, 0.0
        %v2507 = vmax.f32 %v2251, 0.0
        %v2508 = vmax.f32 %v2252, 0.0
        %v2509 = vmax.f32 %v2253, 0.0
        %v2510 = vmax.f32 %v2254, 0.0
        %v2511 = vmax.f32 %v2255, 0.0
        %v2512 = vmax.f32 %v2256, 0.0
        %v2513 = vmax.f32 %v2257, 0.0
        %v2514 = vmax.f32 %v2258, 0.0
        %v2515 = vmax.f32 %v2259, 0.0
        %v2516 = vmax.f32 %v2260, 0.0
        %v2517 = vmax.f32 %v2261, 0.0
        %v2518 = vmax.f32 %v2262, 0.0
        %v2519 = vmax.f32 %v2263, 0.0
        %v2520 = vmax.f32 %v2264, 0.0
        %v2521 = vmax.f32 %v2265, 0.0
        %v2522 = vmax.f32 %v2266, 0.0
        %v2523 = vmax.f32 %v2267, 0.0
        %v2524 = vmax.f32 %v2268, 0.0
        %v2525 = vmax.f32 %v2269, 0.0
        %v2526 = vmax.f32 %v2270, 0.0
        %v2527 = vmax.f32 %v2271, 0.0
        %v2528 = vmax.f32 %v2272, 0.0
        %v2529 = vmax.f32 %v2273, 0.0
        %v2530 = vmax.f32 %v2274, 0.0
        %v2531 = vmax.f32 %v2275, 0.0
        %v2532 = vmax.f32 %v2276, 0.0
        %v2533 = vmax.f32 %v2277, 0.0
        %v2534 = vmax.f32 %v2278, 0.0
        %v2535 = vmax.f32 %v2279, 0.0
        %v2536 = vmax.f32 %v2280, 0.0
        %v2537 = vmax.f32 %v2281, 0.0
        %v2538 = vmax.f32 %v2282, 0.0
        %v2539 = vmax.f32 %v2283, 0.0
        %v2540 = vmax.f32 %v2284, 0.0
        %v2541 = vmax.f32 %v2285, 0.0
        %v2542 = vmax.f32 %v2286, 0.0
        %v2543 = vmax.f32 %v2287, 0.0
        %v2544 = vmax.f32 %v2288, 0.0
        %v2545 = vmax.f32 %v2289, 0.0
        %v2546 = vmax.f32 %v2290, 0.0
        %v2547 = vmax.f32 %v2291, 0.0
        %v2548 = vmax.f32 %v2292, 0.0
        %v2549 = vmax.f32 %v2293, 0.0
        %v2550 = vmax.f32 %v2294, 0.0
        %v2551 = vmax.f32 %v2295, 0.0
        %v2552 = vmax.f32 %v2296, 0.0
        %v2553 = vmax.f32 %v2297, 0.0
        %v2554 = vmax.f32 %v2298, 0.0
        %v2555 = vmax.f32 %v2299, 0.0
        %v2556 = vmax.f32 %v2300, 0.0
        %v2557 = vmax.f32 %v2301, 0.0
        %v2558 = vmax.f32 %v2302, 0.0
        %v2559 = vmax.f32 %v2303, 0.0
        %v2560 = vmax.f32 %v2304, 0.0
        %v2561 = vmax.f32 %v2305, 0.0
        %v2562 = vmax.f32 %v2306, 0.0
        %v2563 = vmax.f32 %v2307, 0.0
        %v2564 = vmax.f32 %v2308, 0.0
        %v2565 = vmax.f32 %v2309, 0.0
        %v2566 = vmax.f32 %v2310, 0.0
        %v2567 = vmax.f32 %v2311, 0.0
        %v2568 = vmax.f32 %v2312, 0.0
        %v2569 = vmax.f32 %v2313, 0.0
        %v2570 = vmax.f32 %v2314, 0.0
        %v2571 = vmax.f32 %v2315, 0.0
        %v2572 = vmax.f32 %v2316, 0.0
        %v2573 = vmax.f32 %v2317, 0.0
        %v2574 = vmax.f32 %v2318, 0.0
        %v2575 = vmax.f32 %v2319, 0.0
        %v2576 = vmax.f32 %v2320, 0.0
        %v2577 = vmax.f32 %v2321, 0.0
        %v2578 = vmax.f32 %v2322, 0.0
        %v2579 = vmax.f32 %v2323, 0.0
        %v2580 = vmax.f32 %v2324, 0.0
        %v2581 = vmax.f32 %v2325, 0.0
        %v2582 = vmax.f32 %v2326, 0.0
        %v2583 = vmax.f32 %v2327, 0.0
        %v2584 = vmax.f32 %v2328, 0.0
        %v2585 = vmax.f32 %v2329, 0.0
        %v2586 = vmax.f32 %v2330, 0.0
        %v2587 = vmax.f32 %v2331, 0.0
        %v2588 = vmax.f32 %v2332, 0.0
        %v2589 = vmax.f32 %v2333, 0.0
        %v2590 = vmax.f32 %v2334, 0.0
        %v2591 = vmax.f32 %v2335, 0.0
        %v2592 = vmax.f32 %v2336, 0.0
        %v2593 = vmax.f32 %v2337, 0.0
        %v2594 = vmax.f32 %v2338, 0.0
        %v2595 = vmax.f32 %v2339, 0.0
        %v2596 = vmax.f32 %v2340, 0.0
        %v2597 = vmax.f32 %v2341, 0.0
        %v2598 = vmax.f32 %v2342, 0.0
        %v2599 = vmax.f32 %v2343, 0.0
        %v2600 = vmax.f32 %v2344, 0.0
        %v2601 = vmax.f32 %v2345, 0.0
        %v2602 = vmax.f32 %v2346, 0.0
        %v2603 = vmax.f32 %v2347, 0.0
        %v2604 = vmax.f32 %v2348, 0.0
        %v2605 = vmax.f32 %v2349, 0.0
        %v2606 = vmax.f32 %v2350, 0.0
        %v2607 = vmax.f32 %v2351, 0.0
        %v2608 = vmax.f32 %v2352, 0.0
        %v2609 = vmax.f32 %v2353, 0.0
        %v2610 = vmax.f32 %v2354, 0.0
        %v2611 = vmax.f32 %v2355, 0.0
        %v2612 = vmax.f32 %v2356, 0.0
        %v2613 = vmax.f32 %v2357, 0.0
        %v2614 = vmax.f32 %v2358, 0.0
        %v2615 = vmax.f32 %v2359, 0.0
        %v2616 = vmax.f32 %v2360, 0.0
        %v2617 = vmax.f32 %v2361, 0.0
        %v2618 = vmax.f32 %v2362, 0.0
        %v2619 = vmax.f32 %v2363, 0.0
        %v2620 = vmax.f32 %v2364, 0.0
        %v2621 = vmax.f32 %v2365, 0.0
        %v2622 = vmax.f32 %v2366, 0.0
        %v2623 = vmax.f32 %v2367, 0.0
        %v2624 = vmax.f32 %v2368, 0.0
        %v2625 = vmax.f32 %v2369, 0.0
        %v2626 = vmax.f32 %v2370, 0.0
        %v2627 = vmax.f32 %v2371, 0.0
        %v2628 = vmax.f32 %v2372, 0.0
        %v2629 = vmax.f32 %v2373, 0.0
        %v2630 = vmax.f32 %v2374, 0.0
        %v2631 = vmax.f32 %v2375, 0.0
        %v2632 = vmax.f32 %v2376, 0.0
        %v2633 = vmax.f32 %v2377, 0.0
        %v2634 = vmax.f32 %v2378, 0.0
        %v2635 = vmax.f32 %v2379, 0.0
        %v2636 = vmax.f32 %v2380, 0.0
        %v2637 = vmax.f32 %v2381, 0.0
        %v2638 = vmax.f32 %v2382, 0.0
        %v2639 = vmax.f32 %v2383, 0.0
        %v2640 = vmax.f32 %v2384, 0.0
        %v2641 = vmax.f32 %v2385, 0.0
        %v2642 = vmax.f32 %v2386, 0.0
        %v2643 = vmax.f32 %v2387, 0.0
        %v2644 = vmax.f32 %v2388, 0.0
        %v2645 = vmax.f32 %v2389, 0.0
        %v2646 = vmax.f32 %v2390, 0.0
        %v2647 = vmax.f32 %v2391, 0.0
        %v2648 = vmax.f32 %v2392, 0.0
        %v2649 = vmax.f32 %v2393, 0.0
        %v2650 = vmin.f32 %v2394, 1.0
        %v2651 = vmin.f32 %v2395, 1.0
        %v2652 = vmin.f32 %v2396, 1.0
        %v2653 = vmin.f32 %v2397, 1.0
        %v2654 = vmin.f32 %v2398, 1.0
        %v2655 = vmin.f32 %v2399, 1.0
        %v2656 = vmin.f32 %v2400, 1.0
        %v2657 = vmin.f32 %v2401, 1.0
        %v2658 = vmin.f32 %v2402, 1.0
        %v2659 = vmin.f32 %v2403, 1.0
        %v2660 = vmin.f32 %v2404, 1.0
        %v2661 = vmin.f32 %v2405, 1.0
        %v2662 = vmin.f32 %v2406, 1.0
        %v2663 = vmin.f32 %v2407, 1.0
        %v2664 = vmin.f32 %v2408, 1.0
        %v2665 = vmin.f32 %v2409, 1.0
        %v2666 = vmin.f32 %v2410, 1.0
        %v2667 = vmin.f32 %v2411, 1.0
        %v2668 = vmin.f32 %v2412, 1.0
        %v2669 = vmin.f32 %v2413, 1.0
        %v2670 = vmin.f32 %v2414, 1.0
        %v2671 = vmin.f32 %v2415, 1.0
        %v2672 = vmin.f32 %v2416, 1.0
        %v2673 = vmin.f32 %v2417, 1.0
        %v2674 = vmin.f32 %v2418, 1.0
        %v2675 = vmin.f32 %v2419, 1.0
        %v2676 = vmin.f32 %v2420, 1.0
        %v2677 = vmin.f32 %v2421, 1.0
        %v2678 = vmin.f32 %v2422, 1.0
        %v2679 = vmin.f32 %v2423, 1.0
        %v2680 = vmin.f32 %v2424, 1.0
        %v2681 = vmin.f32 %v2425, 1.0
        %v2682 = vmin.f32 %v2426, 1.0
        %v2683 = vmin.f32 %v2427, 1.0
        %v2684 = vmin.f32 %v2428, 1.0
        %v2685 = vmin.f32 %v2429, 1.0
        %v2686 = vmin.f32 %v2430, 1.0
        %v2687 = vmin.f32 %v2431, 1.0
        %v2688 = vmin.f32 %v2432, 1.0
        %v2689 = vmin.f32 %v2433, 1.0
        %v2690 = vmin.f32 %v2434, 1.0
        %v2691 = vmin.f32 %v2435, 1.0
        %v2692 = vmin.f32 %v2436, 1.0
        %v2693 = vmin.f32 %v2437, 1.0
        %v2694 = vmin.f32 %v2438, 1.0
        %v2695 = vmin.f32 %v2439, 1.0
        %v2696 = vmin.f32 %v2440, 1.0
        %v2697 = vmin.f32 %v2441, 1.0
        %v2698 = vmin.f32 %v2442, 1.0
        %v2699 = vmin.f32 %v2443, 1.0
        %v2700 = vmin.f32 %v2444, 1.0
        %v2701 = vmin.f32 %v2445, 1.0
        %v2702 = vmin.f32 %v2446, 1.0
        %v2703 = vmin.f32 %v2447, 1.0
        %v2704 = vmin.f32 %v2448, 1.0
        %v2705 = vmin.f32 %v2449, 1.0
        %v2706 = vmin.f32 %v2450, 1.0
        %v2707 = vmin.f32 %v2451, 1.0
        %v2708 = vmin.f32 %v2452, 1.0
        %v2709 = vmin.f32 %v2453, 1.0
        %v2710 = vmin.f32 %v2454, 1.0
        %v2711 = vmin.f32 %v2455, 1.0
        %v2712 = vmin.f32 %v2456, 1.0
        %v2713 = vmin.f32 %v2457, 1.0
        %v2714 = vmin.f32 %v2458, 1.0
        %v2715 = vmin.f32 %v2459, 1.0
        %v2716 = vmin.f32 %v2460, 1.0
        %v2717 = vmin.f32 %v2461, 1.0
        %v2718 = vmin.f32 %v2462, 1.0
        %v2719 = vmin.f32 %v2463, 1.0
        %v2720 = vmin.f32 %v2464, 1.0
        %v2721 = vmin.f32 %v2465, 1.0
        %v2722 = vmin.f32 %v2466, 1.0
        %v2723 = vmin.f32 %v2467, 1.0
        %v2724 = vmin.f32 %v2468, 1.0
        %v2725 = vmin.f32 %v2469, 1.0
        %v2726 = vmin.f32 %v2470, 1.0
        %v2727 = vmin.f32 %v2471, 1.0
        %v2728 = vmin.f32 %v2472, 1.0
        %v2729 = vmin.f32 %v2473, 1.0
        %v2730 = vmin.f32 %v2474, 1.0
        %v2731 = vmin.f32 %v2475, 1.0
        %v2732 = vmin.f32 %v2476, 1.0
        %v2733 = vmin.f32 %v2477, 1.0
        %v2734 = vmin.f32 %v2478, 1.0
        %v2735 = vmin.f32 %v2479, 1.0
        %v2736 = vmin.f32 %v2480, 1.0
        %v2737 = vmin.f32 %v2481, 1.0
        %v2738 = vmin.f32 %v2482, 1.0
        %v2739 = vmin.f32 %v2483, 1.0
        %v2740 = vmin.f32 %v2484, 1.0
        %v2741 = vmin.f32 %v2485, 1.0
        %v2742 = vmin.f32 %v2486, 1.0
        %v2743 = vmin.f32 %v2487, 1.0
        %v2744 = vmin.f32 %v2488, 1.0
        %v2745 = vmin.f32 %v2489, 1.0
        %v2746 = vmin.f32 %v2490, 1.0
        %v2747 = vmin.f32 %v2491, 1.0
        %v2748 = vmin.f32 %v2492, 1.0
        %v2749 = vmin.f32 %v2493, 1.0
        %v2750 = vmin.f32 %v2494, 1.0
        %v2751 = vmin.f32 %v2495, 1.0
        %v2752 = vmin.f32 %v2496, 1.0
        %v2753 = vmin.f32 %v2497, 1.0
        %v2754 = vmin.f32 %v2498, 1.0
        %v2755 = vmin.f32 %v2499, 1.0
        %v2756 = vmin.f32 %v2500, 1.0
        %v2757 = vmin.f32 %v2501, 1.0
        %v2758 = vmin.f32 %v2502, 1.0
        %v2759 = vmin.f32 %v2503, 1.0
        %v2760 = vmin.f32 %v2504, 1.0
        %v2761 = vmin.f32 %v2505, 1.0
        %v2762 = vmin.f32 %v2506, 1.0
        %v2763 = vmin.f32 %v2507, 1.0
        %v2764 = vmin.f32 %v2508, 1.0
        %v2765 = vmin.f32 %v2509, 1.0
        %v2766 = vmin.f32 %v2510, 1.0
        %v2767 = vmin.f32 %v2511, 1.0
        %v2768 = vmin.f32 %v2512, 1.0
        %v2769 = vmin.f32 %v2513, 1.0
        %v2770 = vmin.f32 %v2514, 1.0
        %v2771 = vmin.f32 %v2515, 1.0
        %v2772 = vmin.f32 %v2516, 1.0
        %v2773 = vmin.f32 %v2517, 1.0
        %v2774 = vmin.f32 %v2518, 1.0
        %v2775 = vmin.f32 %v2519, 1.0
        %v2776 = vmin.f32 %v2520, 1.0
        %v2777 = vmin.f32 %v2521, 1.0
        %v2778 = vmin.f32 %v2522, 1.0
        %v2779 = vmin.f32 %v2523, 1.0
        %v2780 = vmin.f32 %v2524, 1.0
        %v2781 = vmin.f32 %v2525, 1.0
        %v2782 = vmin.f32 %v2526, 1.0
        %v2783 = vmin.f32 %v2527, 1.0
        %v2784 = vmin.f32 %v2528, 1.0
        %v2785 = vmin.f32 %v2529, 1.0
        %v2786 = vmin.f32 %v2530, 1.0
        %v2787 = vmin.f32 %v2531, 1.0
        %v2788 = vmin.f32 %v2532, 1.0
        %v2789 = vmin.f32 %v2533, 1.0
        %v2790 = vmin.f32 %v2534, 1.0
        %v2791 = vmin.f32 %v2535, 1.0
        %v2792 = vmin.f32 %v2536, 1.0
        %v2793 = vmin.f32 %v2537, 1.0
        %v2794 = vmin.f32 %v2538, 1.0
        %v2795 = vmin.f32 %v2539, 1.0
        %v2796 = vmin.f32 %v2540, 1.0
        %v2797 = vmin.f32 %v2541, 1.0
        %v2798 = vmin.f32 %v2542, 1.0
        %v2799 = vmin.f32 %v2543, 1.0
        %v2800 = vmin.f32 %v2544, 1.0
        %v2801 = vmin.f32 %v2545, 1.0
        %v2802 = vmin.f32 %v2546, 1.0
        %v2803 = vmin.f32 %v2547, 1.0
        %v2804 = vmin.f32 %v2548, 1.0
        %v2805 = vmin.f32 %v2549, 1.0
        %v2806 = vmin.f32 %v2550, 1.0
        %v2807 = vmin.f32 %v2551, 1.0
        %v2808 = vmin.f32 %v2552, 1.0
        %v2809 = vmin.f32 %v2553, 1.0
        %v2810 = vmin.f32 %v2554, 1.0
        %v2811 = vmin.f32 %v2555, 1.0
        %v2812 = vmin.f32 %v2556, 1.0
        %v2813 = vmin.f32 %v2557, 1.0
        %v2814 = vmin.f32 %v2558, 1.0
        %v2815 = vmin.f32 %v2559, 1.0
        %v2816 = vmin.f32 %v2560, 1.0
        %v2817 = vmin.f32 %v2561, 1.0
        %v2818 = vmin.f32 %v2562, 1.0
        %v2819 = vmin.f32 %v2563, 1.0
        %v2820 = vmin.f32 %v2564, 1.0
        %v2821 = vmin.f32 %v2565, 1.0
        %v2822 = vmin.f32 %v2566, 1.0
        %v2823 = vmin.f32 %v2567, 1.0
        %v2824 = vmin.f32 %v2568, 1.0
        %v2825 = vmin.f32 %v2569, 1.0
        %v2826 = vmin.f32 %v2570, 1.0
        %v2827 = vmin.f32 %v2571, 1.0
        %v2828 = vmin.f32 %v2572, 1.0
        %v2829 = vmin.f32 %v2573, 1.0
        %v2830 = vmin.f32 %v2574, 1.0
        %v2831 = vmin.f32 %v2575, 1.0
        %v2832 = vmin.f32 %v2576, 1.0
        %v2833 = vmin.f32 %v2577, 1.0
        %v2834 = vmin.f32 %v2578, 1.0
        %v2835 = vmin.f32 %v2579, 1.0
        %v2836 = vmin.f32 %v2580, 1.0
        %v2837 = vmin.f32 %v2581, 1.0
        %v2838 = vmin.f32 %v2582, 1.0
        %v2839 = vmin.f32 %v2583, 1.0
        %v2840 = vmin.f32 %v2584, 1.0
        %v2841 = vmin.f32 %v2585, 1.0
        %v2842 = vmin.f32 %v2586, 1.0
        %v2843 = vmin.f32 %v2587, 1.0
        %v2844 = vmin.f32 %v2588, 1.0
        %v2845 = vmin.f32 %v2589, 1.0
        %v2846 = vmin.f32 %v2590, 1.0
        %v2847 = vmin.f32 %v2591, 1.0
        %v2848 = vmin.f32 %v2592, 1.0
        %v2849 = vmin.f32 %v2593, 1.0
        %v2850 = vmin.f32 %v2594, 1.0
        %v2851 = vmin.f32 %v2595, 1.0
        %v2852 = vmin.f32 %v2596, 1.0
        %v2853 = vmin.f32 %v2597, 1.0
        %v2854 = vmin.f32 %v2598, 1.0
        %v2855 = vmin.f32 %v2599, 1.0
        %v2856 = vmin.f32 %v2600, 1.0
        %v2857 = vmin.f32 %v2601, 1.0
        %v2858 = vmin.f32 %v2602, 1.0
        %v2859 = vmin.f32 %v2603, 1.0
        %v2860 = vmin.f32 %v2604, 1.0
        %v2861 = vmin.f32 %v2605, 1.0
        %v2862 = vmin.f32 %v2606, 1.0
        %v2863 = vmin.f32 %v2607, 1.0
        %v2864 = vmin.f32 %v2608, 1.0
        %v2865 = vmin.f32 %v2609, 1.0
        %v2866 = vmin.f32 %v2610, 1.0
        %v2867 = vmin.f32 %v2611, 1.0
        %v2868 = vmin.f32 %v2612, 1.0
        %v2869 = vmin.f32 %v2613, 1.0
        %v2870 = vmin.f32 %v2614, 1.0
        %v2871 = vmin.f32 %v2615, 1.0
        %v2872 = vmin.f32 %v2616, 1.0
        %v2873 = vmin.f32 %v2617, 1.0
        %v2874 = vmin.f32 %v2618, 1.0
        %v2875 = vmin.f32 %v2619, 1.0
        %v2876 = vmin.f32 %v2620, 1.0
        %v2877 = vmin.f32 %v2621, 1.0
        %v2878 = vmin.f32 %v2622, 1.0
        %v2879 = vmin.f32 %v2623, 1.0
        %v2880 = vmin.f32 %v2624, 1.0
        %v2881 = vmin.f32 %v2625, 1.0
        %v2882 = vmin.f32 %v2626, 1.0
        %v2883 = vmin.f32 %v2627, 1.0
        %v2884 = vmin.f32 %v2628, 1.0
        %v2885 = vmin.f32 %v2629, 1.0
        %v2886 = vmin.f32 %v2630, 1.0
        %v2887 = vmin.f32 %v2631, 1.0
        %v2888 = vmin.f32 %v2632, 1.0
        %v2889 = vmin.f32 %v2633, 1.0
        %v2890 = vmin.f32 %v2634, 1.0
        %v2891 = vmin.f32 %v2635, 1.0
        %v2892 = vmin.f32 %v2636, 1.0
        %v2893 = vmin.f32 %v2637, 1.0
        %v2894 = vmin.f32 %v2638, 1.0
        %v2895 = vmin.f32 %v2639, 1.0
        %v2896 = vmin.f32 %v2640, 1.0
        %v2897 = vmin.f32 %v2641, 1.0
        %v2898 = vmin.f32 %v2642, 1.0
        %v2899 = vmin.f32 %v2643, 1.0
        %v2900 = vmin.f32 %v2644, 1.0
        %v2901 = vmin.f32 %v2645, 1.0
        %v2902 = vmin.f32 %v2646, 1.0
        %v2903 = vmin.f32 %v2647, 1.0
        %v2904 = vmin.f32 %v2648, 1.0
        %v2905 = vmin.f32 %v2649, 1.0
        %v2906 = vpack.c.bf16 %v2651, %v2650
        %v2907 = vpack.c.bf16 %v2653, %v2652
        %v2908 = vpack.c.bf16 %v2655, %v2654
        %v2909 = vpack.c.bf16 %v2657, %v2656
        %v2910 = vpack.c.bf16 %v2659, %v2658
        %v2911 = vpack.c.bf16 %v2661, %v2660
        %v2912 = vpack.c.bf16 %v2663, %v2662
        %v2913 = vpack.c.bf16 %v2665, %v2664
        %v2914 = vpack.c.bf16 %v2667, %v2666
        %v2915 = vpack.c.bf16 %v2669, %v2668
        %v2916 = vpack.c.bf16 %v2671, %v2670
        %v2917 = vpack.c.bf16 %v2673, %v2672
        %v2918 = vpack.c.bf16 %v2675, %v2674
        %v2919 = vpack.c.bf16 %v2677, %v2676
        %v2920 = vpack.c.bf16 %v2679, %v2678
        %v2921 = vpack.c.bf16 %v2681, %v2680
        %v2922 = vpack.c.bf16 %v2683, %v2682
        %v2923 = vpack.c.bf16 %v2685, %v2684
        %v2924 = vpack.c.bf16 %v2687, %v2686
        %v2925 = vpack.c.bf16 %v2689, %v2688
        %v2926 = vpack.c.bf16 %v2691, %v2690
        %v2927 = vpack.c.bf16 %v2693, %v2692
        %v2928 = vpack.c.bf16 %v2695, %v2694
        %v2929 = vpack.c.bf16 %v2697, %v2696
        %v2930 = vpack.c.bf16 %v2699, %v2698
        %v2931 = vpack.c.bf16 %v2701, %v2700
        %v2932 = vpack.c.bf16 %v2703, %v2702
        %v2933 = vpack.c.bf16 %v2705, %v2704
        %v2934 = vpack.c.bf16 %v2707, %v2706
        %v2935 = vpack.c.bf16 %v2709, %v2708
        %v2936 = vpack.c.bf16 %v2711, %v2710
        %v2937 = vpack.c.bf16 %v2713, %v2712
        %v2938 = vpack.c.bf16 %v2715, %v2714
        %v2939 = vpack.c.bf16 %v2717, %v2716
        %v2940 = vpack.c.bf16 %v2719, %v2718
        %v2941 = vpack.c.bf16 %v2721, %v2720
        %v2942 = vpack.c.bf16 %v2723, %v2722
        %v2943 = vpack.c.bf16 %v2725, %v2724
        %v2944 = vpack.c.bf16 %v2727, %v2726
        %v2945 = vpack.c.bf16 %v2729, %v2728
        %v2946 = vpack.c.bf16 %v2731, %v2730
        %v2947 = vpack.c.bf16 %v2733, %v2732
        %v2948 = vpack.c.bf16 %v2735, %v2734
        %v2949 = vpack.c.bf16 %v2737, %v2736
        %v2950 = vpack.c.bf16 %v2739, %v2738
        %v2951 = vpack.c.bf16 %v2741, %v2740
        %v2952 = vpack.c.bf16 %v2743, %v2742
        %v2953 = vpack.c.bf16 %v2745, %v2744
        %v2954 = vpack.c.bf16 %v2747, %v2746
        %v2955 = vpack.c.bf16 %v2749, %v2748
        %v2956 = vpack.c.bf16 %v2751, %v2750
        %v2957 = vpack.c.bf16 %v2753, %v2752
        %v2958 = vpack.c.bf16 %v2755, %v2754
        %v2959 = vpack.c.bf16 %v2757, %v2756
        %v2960 = vpack.c.bf16 %v2759, %v2758
        %v2961 = vpack.c.bf16 %v2761, %v2760
        %v2962 = vpack.c.bf16 %v2763, %v2762
        %v2963 = vpack.c.bf16 %v2765, %v2764
        %v2964 = vpack.c.bf16 %v2767, %v2766
        %v2965 = vpack.c.bf16 %v2769, %v2768
        %v2966 = vpack.c.bf16 %v2771, %v2770
        %v2967 = vpack.c.bf16 %v2773, %v2772
        %v2968 = vpack.c.bf16 %v2775, %v2774
        %v2969 = vpack.c.bf16 %v2777, %v2776
        %v2970 = vpack.c.bf16 %v2779, %v2778
        %v2971 = vpack.c.bf16 %v2781, %v2780
        %v2972 = vpack.c.bf16 %v2783, %v2782
        %v2973 = vpack.c.bf16 %v2785, %v2784
        %v2974 = vpack.c.bf16 %v2787, %v2786
        %v2975 = vpack.c.bf16 %v2789, %v2788
        %v2976 = vpack.c.bf16 %v2791, %v2790
        %v2977 = vpack.c.bf16 %v2793, %v2792
        %v2978 = vpack.c.bf16 %v2795, %v2794
        %v2979 = vpack.c.bf16 %v2797, %v2796
        %v2980 = vpack.c.bf16 %v2799, %v2798
        %v2981 = vpack.c.bf16 %v2801, %v2800
        %v2982 = vpack.c.bf16 %v2803, %v2802
        %v2983 = vpack.c.bf16 %v2805, %v2804
        %v2984 = vpack.c.bf16 %v2807, %v2806
        %v2985 = vpack.c.bf16 %v2809, %v2808
        %v2986 = vpack.c.bf16 %v2811, %v2810
        %v2987 = vpack.c.bf16 %v2813, %v2812
        %v2988 = vpack.c.bf16 %v2815, %v2814
        %v2989 = vpack.c.bf16 %v2817, %v2816
        %v2990 = vpack.c.bf16 %v2819, %v2818
        %v2991 = vpack.c.bf16 %v2821, %v2820
        %v2992 = vpack.c.bf16 %v2823, %v2822
        %v2993 = vpack.c.bf16 %v2825, %v2824
        %v2994 = vpack.c.bf16 %v2827, %v2826
        %v2995 = vpack.c.bf16 %v2829, %v2828
        %v2996 = vpack.c.bf16 %v2831, %v2830
        %v2997 = vpack.c.bf16 %v2833, %v2832
        %v2998 = vpack.c.bf16 %v2835, %v2834
        %v2999 = vpack.c.bf16 %v2837, %v2836
        %v3000 = vpack.c.bf16 %v2839, %v2838
        %v3001 = vpack.c.bf16 %v2841, %v2840
        %v3002 = vpack.c.bf16 %v2843, %v2842
        %v3003 = vpack.c.bf16 %v2845, %v2844
        %v3004 = vpack.c.bf16 %v2847, %v2846
        %v3005 = vpack.c.bf16 %v2849, %v2848
        %v3006 = vpack.c.bf16 %v2851, %v2850
        %v3007 = vpack.c.bf16 %v2853, %v2852
        %v3008 = vpack.c.bf16 %v2855, %v2854
        %v3009 = vpack.c.bf16 %v2857, %v2856
        %v3010 = vpack.c.bf16 %v2859, %v2858
        %v3011 = vpack.c.bf16 %v2861, %v2860
        %v3012 = vpack.c.bf16 %v2863, %v2862
        %v3013 = vpack.c.bf16 %v2865, %v2864
        %v3014 = vpack.c.bf16 %v2867, %v2866
        %v3015 = vpack.c.bf16 %v2869, %v2868
        %v3016 = vpack.c.bf16 %v2871, %v2870
        %v3017 = vpack.c.bf16 %v2873, %v2872
        %v3018 = vpack.c.bf16 %v2875, %v2874
        %v3019 = vpack.c.bf16 %v2877, %v2876
        %v3020 = vpack.c.bf16 %v2879, %v2878
        %v3021 = vpack.c.bf16 %v2881, %v2880
        %v3022 = vpack.c.bf16 %v2883, %v2882
        %v3023 = vpack.c.bf16 %v2885, %v2884
        %v3024 = vpack.c.bf16 %v2887, %v2886
        %v3025 = vpack.c.bf16 %v2889, %v2888
        %v3026 = vpack.c.bf16 %v2891, %v2890
        %v3027 = vpack.c.bf16 %v2893, %v2892
        %v3028 = vpack.c.bf16 %v2895, %v2894
        %v3029 = vpack.c.bf16 %v2897, %v2896
        %v3030 = vpack.c.bf16 %v2899, %v2898
        %v3031 = vpack.c.bf16 %v2901, %v2900
        %v3032 = vpack.c.bf16 %v2903, %v2902
        %v3033 = vpack.c.bf16 %v2905, %v2904
        %3034 = vst [vmem:[%s167] sm:$0xff] %v2906
        %3035 = vst [vmem:[%s167 + $0x8] sm:$0xff] %v2907
        %3036 = vst [vmem:[%s167 + $0x10] sm:$0xff] %v2908
        %3037 = vst [vmem:[%s167 + $0x18] sm:$0xff] %v2909
        %3038 = vst [vmem:[%s167 + $0x20] sm:$0xff] %v2910
        %3039 = vst [vmem:[%s167 + $0x28] sm:$0xff] %v2911
        %3040 = vst [vmem:[%s167 + $0x30] sm:$0xff] %v2912
        %3041 = vst [vmem:[%s167 + $0x38] sm:$0xff] %v2913
        %3042 = vst [vmem:[%s167 + $0x40] sm:$0xff] %v2914
        %3043 = vst [vmem:[%s167 + $0x48] sm:$0xff] %v2915
        %3044 = vst [vmem:[%s167 + $0x50] sm:$0xff] %v2916
        %3045 = vst [vmem:[%s167 + $0x58] sm:$0xff] %v2917
        %3046 = vst [vmem:[%s167 + $0x60] sm:$0xff] %v2918
        %3047 = vst [vmem:[%s167 + $0x68] sm:$0xff] %v2919
        %3048 = vst [vmem:[%s167 + $0x70] sm:$0xff] %v2920
        %3049 = vst [vmem:[%s167 + $0x78] sm:$0xff] %v2921
        %3050 = vst [vmem:[%s167 + $0x80] sm:$0xff] %v2922
        %3051 = vst [vmem:[%s167 + $0x88] sm:$0xff] %v2923
        %3052 = vst [vmem:[%s167 + $0x90] sm:$0xff] %v2924
        %3053 = vst [vmem:[%s167 + $0x98] sm:$0xff] %v2925
        %3054 = vst [vmem:[%s167 + $0xa0] sm:$0xff] %v2926
        %3055 = vst [vmem:[%s167 + $0xa8] sm:$0xff] %v2927
        %3056 = vst [vmem:[%s167 + $0xb0] sm:$0xff] %v2928
        %3057 = vst [vmem:[%s167 + $0xb8] sm:$0xff] %v2929
        %3058 = vst [vmem:[%s167 + $0xc0] sm:$0xff] %v2930
        %3059 = vst [vmem:[%s167 + $0xc8] sm:$0xff] %v2931
        %3060 = vst [vmem:[%s167 + $0xd0] sm:$0xff] %v2932
        %3061 = vst [vmem:[%s167 + $0xd8] sm:$0xff] %v2933
        %3062 = vst [vmem:[%s167 + $0xe0] sm:$0xff] %v2934
        %3063 = vst [vmem:[%s167 + $0xe8] sm:$0xff] %v2935
        %3064 = vst [vmem:[%s167 + $0xf0] sm:$0xff] %v2936
        %3065 = vst [vmem:[%s167 + $0xf8] sm:$0xff] %v2937
        %3066 = vst [vmem:[%s167 + $0x100] sm:$0xff] %v2938
        %3067 = vst [vmem:[%s167 + $0x108] sm:$0xff] %v2939
        %3068 = vst [vmem:[%s167 + $0x110] sm:$0xff] %v2940
        %3069 = vst [vmem:[%s167 + $0x118] sm:$0xff] %v2941
        %3070 = vst [vmem:[%s167 + $0x120] sm:$0xff] %v2942
        %3071 = vst [vmem:[%s167 + $0x128] sm:$0xff] %v2943
        %3072 = vst [vmem:[%s167 + $0x130] sm:$0xff] %v2944
        %3073 = vst [vmem:[%s167 + $0x138] sm:$0xff] %v2945
        %3074 = vst [vmem:[%s167 + $0x140] sm:$0xff] %v2946
        %3075 = vst [vmem:[%s167 + $0x148] sm:$0xff] %v2947
        %3076 = vst [vmem:[%s167 + $0x150] sm:$0xff] %v2948
        %3077 = vst [vmem:[%s167 + $0x158] sm:$0xff] %v2949
        %3078 = vst [vmem:[%s167 + $0x160] sm:$0xff] %v2950
        %3079 = vst [vmem:[%s167 + $0x168] sm:$0xff] %v2951
        %3080 = vst [vmem:[%s167 + $0x170] sm:$0xff] %v2952
        %3081 = vst [vmem:[%s167 + $0x178] sm:$0xff] %v2953
        %3082 = vst [vmem:[%s167 + $0x180] sm:$0xff] %v2954
        %3083 = vst [vmem:[%s167 + $0x188] sm:$0xff] %v2955
        %3084 = vst [vmem:[%s167 + $0x190] sm:$0xff] %v2956
        %3085 = vst [vmem:[%s167 + $0x198] sm:$0xff] %v2957
        %3086 = vst [vmem:[%s167 + $0x1a0] sm:$0xff] %v2958
        %3087 = vst [vmem:[%s167 + $0x1a8] sm:$0xff] %v2959
        %3088 = vst [vmem:[%s167 + $0x1b0] sm:$0xff] %v2960
        %3089 = vst [vmem:[%s167 + $0x1b8] sm:$0xff] %v2961
        %3090 = vst [vmem:[%s167 + $0x1c0] sm:$0xff] %v2962
        %3091 = vst [vmem:[%s167 + $0x1c8] sm:$0xff] %v2963
        %3092 = vst [vmem:[%s167 + $0x1d0] sm:$0xff] %v2964
        %3093 = vst [vmem:[%s167 + $0x1d8] sm:$0xff] %v2965
        %3094 = vst [vmem:[%s167 + $0x1e0] sm:$0xff] %v2966
        %3095 = vst [vmem:[%s167 + $0x1e8] sm:$0xff] %v2967
        %3096 = vst [vmem:[%s167 + $0x1f0] sm:$0xff] %v2968
        %3097 = vst [vmem:[%s167 + $0x1f8] sm:$0xff] %v2969
        %3098 = vst [vmem:[%s167 + $0x200] sm:$0xff] %v2970
        %3099 = vst [vmem:[%s167 + $0x208] sm:$0xff] %v2971
        %3100 = vst [vmem:[%s167 + $0x210] sm:$0xff] %v2972
        %3101 = vst [vmem:[%s167 + $0x218] sm:$0xff] %v2973
        %3102 = vst [vmem:[%s167 + $0x220] sm:$0xff] %v2974
        %3103 = vst [vmem:[%s167 + $0x228] sm:$0xff] %v2975
        %3104 = vst [vmem:[%s167 + $0x230] sm:$0xff] %v2976
        %3105 = vst [vmem:[%s167 + $0x238] sm:$0xff] %v2977
        %3106 = vst [vmem:[%s167 + $0x240] sm:$0xff] %v2978
        %3107 = vst [vmem:[%s167 + $0x248] sm:$0xff] %v2979
        %3108 = vst [vmem:[%s167 + $0x250] sm:$0xff] %v2980
        %3109 = vst [vmem:[%s167 + $0x258] sm:$0xff] %v2981
        %3110 = vst [vmem:[%s167 + $0x260] sm:$0xff] %v2982
        %3111 = vst [vmem:[%s167 + $0x268] sm:$0xff] %v2983
        %3112 = vst [vmem:[%s167 + $0x270] sm:$0xff] %v2984
        %3113 = vst [vmem:[%s167 + $0x278] sm:$0xff] %v2985
        %3114 = vst [vmem:[%s167 + $0x280] sm:$0xff] %v2986
        %3115 = vst [vmem:[%s167 + $0x288] sm:$0xff] %v2987
        %3116 = vst [vmem:[%s167 + $0x290] sm:$0xff] %v2988
        %3117 = vst [vmem:[%s167 + $0x298] sm:$0xff] %v2989
        %3118 = vst [vmem:[%s167 + $0x2a0] sm:$0xff] %v2990
        %3119 = vst [vmem:[%s167 + $0x2a8] sm:$0xff] %v2991
        %3120 = vst [vmem:[%s167 + $0x2b0] sm:$0xff] %v2992
        %3121 = vst [vmem:[%s167 + $0x2b8] sm:$0xff] %v2993
        %3122 = vst [vmem:[%s167 + $0x2c0] sm:$0xff] %v2994
        %3123 = vst [vmem:[%s167 + $0x2c8] sm:$0xff] %v2995
        %3124 = vst [vmem:[%s167 + $0x2d0] sm:$0xff] %v2996
        %3125 = vst [vmem:[%s167 + $0x2d8] sm:$0xff] %v2997
        %3126 = vst [vmem:[%s167 + $0x2e0] sm:$0xff] %v2998
        %3127 = vst [vmem:[%s167 + $0x2e8] sm:$0xff] %v2999
        %3128 = vst [vmem:[%s167 + $0x2f0] sm:$0xff] %v3000
        %3129 = vst [vmem:[%s167 + $0x2f8] sm:$0xff] %v3001
        %3130 = vst [vmem:[%s167 + $0x300] sm:$0xff] %v3002
        %3131 = vst [vmem:[%s167 + $0x308] sm:$0xff] %v3003
        %3132 = vst [vmem:[%s167 + $0x310] sm:$0xff] %v3004
        %3133 = vst [vmem:[%s167 + $0x318] sm:$0xff] %v3005
        %3134 = vst [vmem:[%s167 + $0x320] sm:$0xff] %v3006
        %3135 = vst [vmem:[%s167 + $0x328] sm:$0xff] %v3007
        %3136 = vst [vmem:[%s167 + $0x330] sm:$0xff] %v3008
        %3137 = vst [vmem:[%s167 + $0x338] sm:$0xff] %v3009
        %3138 = vst [vmem:[%s167 + $0x340] sm:$0xff] %v3010
        %3139 = vst [vmem:[%s167 + $0x348] sm:$0xff] %v3011
        %3140 = vst [vmem:[%s167 + $0x350] sm:$0xff] %v3012
        %3141 = vst [vmem:[%s167 + $0x358] sm:$0xff] %v3013
        %3142 = vst [vmem:[%s167 + $0x360] sm:$0xff] %v3014
        %3143 = vst [vmem:[%s167 + $0x368] sm:$0xff] %v3015
        %3144 = vst [vmem:[%s167 + $0x370] sm:$0xff] %v3016
        %3145 = vst [vmem:[%s167 + $0x378] sm:$0xff] %v3017
        %3146 = vst [vmem:[%s167 + $0x380] sm:$0xff] %v3018
        %3147 = vst [vmem:[%s167 + $0x388] sm:$0xff] %v3019
        %3148 = vst [vmem:[%s167 + $0x390] sm:$0xff] %v3020
        %3149 = vst [vmem:[%s167 + $0x398] sm:$0xff] %v3021
        %3150 = vst [vmem:[%s167 + $0x3a0] sm:$0xff] %v3022
        %3151 = vst [vmem:[%s167 + $0x3a8] sm:$0xff] %v3023
        %3152 = vst [vmem:[%s167 + $0x3b0] sm:$0xff] %v3024
        %3153 = vst [vmem:[%s167 + $0x3b8] sm:$0xff] %v3025
        %3154 = vst [vmem:[%s167 + $0x3c0] sm:$0xff] %v3026
        %3155 = vst [vmem:[%s167 + $0x3c8] sm:$0xff] %v3027
        %3156 = vst [vmem:[%s167 + $0x3d0] sm:$0xff] %v3028
        %3157 = vst [vmem:[%s167 + $0x3d8] sm:$0xff] %v3029
        %3158 = vst [vmem:[%s167 + $0x3e0] sm:$0xff] %v3030
        %3159 = vst [vmem:[%s167 + $0x3e8] sm:$0xff] %v3031
        %3160 = vst [vmem:[%s167 + $0x3f0] sm:$0xff] %v3032
        %3161 = vst [vmem:[%s167 + $0x3f8] sm:$0xff] %v3033
        %s3162 = sand.u32 %s90, 1
        %s3163 = scalar_lea.sflag [#allocation3], %s3162
        %s3164 = sand.u32 %s90, 1
        %s3165 = smul.addr %s3164, 1024
        %s3166 = scalar_lea.vmem [#allocation2], %s3165
        // Predicated region
        $region29: #{gnn_decoder_forward.3} parent=27 // pred_check
          %p3167 = pneg %p100
        $region30: #{gnn_decoder_forward.3} parent=27 // pred_check_branch
          %3169 = sbr.rel (%p3167) target = $region32
        $region31: #{gnn_decoder_forward.3} parent=27 // pred_region
          %s3170 = smul.u32 64, %s20
          %s3171 = smul.u32 4, %s21
          %3173 = vsyncadd %s3163, 0
          %s3174 = smul.addr %s3170, 8
          %s3175 = sadd.s32 %s3171, %s3174
          %s3176 = smul.addr %s3175, 4
          %s3177 = scalar_lea.hbm %s2, %s3176
          %s3178 = sshll.u32 %s3166, 4
          %s3179 = int_to_ptr.vmem [resolvable:$true] %s3178
          %s3180 = sshll.u32 %s3177, 4
          %s3181 = int_to_ptr.hbm [resolvable:$true] %s3180
          %3186 = dma.vmem_to_hbm [thread:$0]  %s3179, 16384, %s3181, %s3163, 256, 512, 16
        $region32: #{gnn_decoder_forward.3} parent=27 // pred_fallthru
          _
      $region28: #{gnn_decoder_forward.3} parent=5 // pred_fallthru
        _
      %p3187 = scmp.le.s32.totalorder 2, %s11
      // Predicated region
      $region33: #{gnn_decoder_forward.3} parent=5 // pred_check
        %p3188 = pneg %p3187
      $region34: #{gnn_decoder_forward.3} parent=5 // pred_check_branch
        %3190 = sbr.rel (%p3188) target = $region36
      $region35: #{gnn_decoder_forward.3} parent=5 // pred_region
        %s3191 = ssub.s32 %s11, 2
        // Predicated region
        $region37: #{gnn_decoder_forward.3} parent=35 // pred_check
          %p3192 = pneg %p106
        $region38: #{gnn_decoder_forward.3} parent=35 // pred_check_branch
          %3194 = sbr.rel (%p3192) target = $region40
        $region39: #{gnn_decoder_forward.3} parent=35 // pred_region
          %s3195 = sand.u32 %s91, 1
          %s3196 = scalar_lea.sflag [#allocation3], %s3195
          %s3197 = sand.u32 %s91, 1
          %s3198 = smul.addr %s3197, 1024
          %s3199 = scalar_lea.vmem [#allocation2], %s3198
          %3201 = dma.done %s3196, 16384
        $region40: #{gnn_decoder_forward.3} parent=35 // pred_fallthru
          _
      $region36: #{gnn_decoder_forward.3} parent=5 // pred_fallthru
        _
    $region6: #{gnn_decoder_forward.3} parent=1 // loop_footer
      %s15 = sadd.s32 1, %s11
    $region7: #{gnn_decoder_forward.3} parent=1 // loop_footer_branch
      %10 = sbr.rel target = $region3
    $region8: #{gnn_decoder_forward.3} parent=1 // loop_exit
      _
    %3202 = vsyncpa [#allocation3], 1
    %s3203 = scalar_lea.sflag [#allocation3], 1
    %3204 = vsyncpa %s3203, 1

</llo_original>
